<compile_context>
chip_gen: v7x
topology: tpu7x:2x2x1
jax: 0.10.0
libtpu: 0.0.40
codegen_flags: <defaults>
</compile_context>

<pallas_src>
import jax
import jax.numpy as jnp
from jax.experimental import pallas as pl
from jax.experimental.pallas import tpu as pltpu

F_IN = 8     # input features
F_OUT = 8    # output features
F_PAD = 64   # every layer width zero-padded to the max width (64)

_PREC = jax.lax.Precision.HIGHEST  # keep f32 accuracy (1e-5) across TPU generations


def mlp_kernel(x_ref, w_ref, b_ref, o_ref):
    """One batch tile of the MLP.

    x_ref: (TB, 8)      natural input layout (batch on sublanes), streamed
    w_ref: (4, 64, 64)  zero-padded weights, PyTorch (out, in) layout, VMEM-resident
    b_ref: (4, 64, 1)   zero-padded biases, VMEM-resident
    o_ref: (TB, 8)      natural output layout, streamed

    Zero-padding invariant (do not break): padded weight rows/cols and padded bias rows
    are exactly 0, so padded activation rows stay 0 through every bias-add/ReLU and
    never leak into the 8 real output rows of layer 4.
    """
    # Feature-major: put the (large) batch dim on the 128-lane axis.  XLU transpose,
    # hidden under the input DMA.
    xt = x_ref[...].T                                              # (8, TB)

    # net1: Linear(8, 16) + ReLU  (only the first 8 input columns of W1 are real).
    h = jnp.dot(w_ref[0, :, 0:F_IN], xt,
                preferred_element_type=jnp.float32, precision=_PREC)
    h = jnp.maximum(h + b_ref[0], 0.0)

    # net2: Linear(16, 32) + ReLU  (padded rows/cols are zero -> padded rows stay zero).
    h = jnp.dot(w_ref[1], h, preferred_element_type=jnp.float32, precision=_PREC)
    h = jnp.maximum(h + b_ref[1], 0.0)

    # net3: Linear(32, 64), no activation (all 64 output rows are real).
    h = jnp.dot(w_ref[2], h, preferred_element_type=jnp.float32, precision=_PREC)
    h = h + b_ref[2]

    # net4: ReLU then Linear(64, 8)  (only the first 8 output rows are real).
    h = jnp.maximum(h, 0.0)
    out = jnp.dot(w_ref[3, 0:F_OUT, :], h,
                  preferred_element_type=jnp.float32, precision=_PREC)
    out = out + b_ref[3, 0:F_OUT, :]

    # Back to the natural (TB, 8) layout for the store; XLU work hidden under the DMA.
    o_ref[...] = out.T.astype(o_ref.dtype)


def _pick_tile(batch, requested):
    """Batch-tile size: exact single block for small batches, otherwise a multiple of
    128 capped so there are >= 2 grid steps (megacore + DMA pipelining)."""
    requested = max(128, (requested // 128) * 128)
    if batch <= 2 * 128:
        return batch                                   # one exact block (== full dim)
    tile = min(requested, ((batch // 2) // 128) * 128)
    return max(128, tile)


def mlp_forward(x, w_slab, b_slab, *, tile_b=4096):
    """x: [B, 8] float32 -> [B, 8] float32 (same semantics as MyTestModule.forward)."""
    B = x.shape[0]
    assert x.shape[1] == F_IN
    tile = _pick_tile(B, tile_b)
    # Last block may be ragged: out-of-bounds input rows read garbage which only
    # affects their own (discarded) output rows; out-of-bounds stores are masked.
    n_tiles = pl.cdiv(B, tile)

    cost = pl.CostEstimate(
        flops=2 * B * (F_PAD * F_IN + 2 * F_PAD * F_PAD + F_OUT * F_PAD),
        transcendentals=0,
        bytes_accessed=(x.size + B * F_OUT + w_slab.size + b_slab.size) * 4,
    )

    return pl.pallas_call(
        mlp_kernel,
        out_shape=jax.ShapeDtypeStruct((B, F_OUT), jnp.float32),
        grid=(n_tiles,),
        in_specs=[
            pl.BlockSpec((tile, F_IN), lambda i: (i, 0)),          # x tile (streamed)
            pl.BlockSpec((4, F_PAD, F_PAD), lambda i: (0, 0, 0)),  # weights (resident)
            pl.BlockSpec((4, F_PAD, 1), lambda i: (0, 0, 0)),      # biases  (resident)
        ],
        out_specs=pl.BlockSpec((tile, F_OUT), lambda i: (i, 0)),
        compiler_params=pltpu.CompilerParams(
            dimension_semantics=("parallel",),      # megacore-shard the batch axis
            vmem_limit_bytes=32 * 1024 * 1024,      # headroom for larger tile_b sweeps
        ),
        cost_estimate=cost,
    )(x, w_slab, b_slab)


def init_params(key):
    """PyTorch-style nn.Linear params: weight (out, in), bias (out,)."""
    dims = [(8, 16), (16, 32), (32, 64), (64, 8)]
    params = []
    for din, dout in dims:
        key, kw, kb = jax.random.split(key, 3)
        bound = 1.0 / (din ** 0.5)  # same scale as torch Linear default init
        w = jax.random.uniform(kw, (dout, din), jnp.float32, minval=-bound, maxval=bound)
        b = jax.random.uniform(kb, (dout,), jnp.float32, minval=-bound, maxval=bound)
        params.append((w, b))
    return params


def pack_params(params):
    """Pack the 4 (weight, bias) pairs into two zero-padded resident slabs.

    The kernel relies on the padded regions being exactly zero (see mlp_kernel docstring).
    """
    w_slab = jnp.zeros((4, F_PAD, F_PAD), jnp.float32)
    b_slab = jnp.zeros((4, F_PAD, 1), jnp.float32)
    for j, (w, b) in enumerate(params):
        assert w.shape[0] <= F_PAD and w.shape[1] <= F_PAD and b.shape[0] <= F_PAD
        w_slab = w_slab.at[j, : w.shape[0], : w.shape[1]].set(w)
        b_slab = b_slab.at[j, : b.shape[0], 0].set(b)
    return w_slab, b_slab


def reference_forward(x, params):
    (w1, b1), (w2, b2), (w3, b3), (w4, b4) = params
    h = jnp.maximum(x @ w1.T + b1, 0.0)
    h = jnp.maximum(h @ w2.T + b2, 0.0)
    h = h @ w3.T + b3
    h = jnp.maximum(h, 0.0)
    return h @ w4.T + b4


if __name__ == "__main__":
    key = jax.random.PRNGKey(0)
    key, kx = jax.random.split(key)
    batch = 16
    x = jax.random.normal(kx, (batch, F_IN), jnp.float32)

    params = init_params(key)
    w_slab, b_slab = pack_params(params)

    fwd = jax.jit(mlp_forward)
    out = jax.block_until_ready(fwd(x, w_slab, b_slab))

    ref = reference_forward(x, params)
    assert out.shape == (batch, F_OUT), out.shape
    assert jnp.allclose(out, ref, atol=1e-5, rtol=1e-5), "mismatch vs reference"

    print("KERNEL_OK")
</pallas_src>

<mosaic_0001>
module attributes {stable_mosaic.version = 11 : i64} {
  func.func @mlp_kernel(%arg0: i32, %arg1: memref<16x8xf32, #tpu.memory_space<vmem>>, %arg2: memref<4x64x64xf32, #tpu.memory_space<vmem>>, %arg3: memref<4x64x1xf32, #tpu.memory_space<vmem>>, %arg4: memref<16x8xf32, #tpu.memory_space<vmem>>) attributes {dimension_semantics = [#tpu.dimension_semantics<parallel>], iteration_bounds = array<i64: 1>, scalar_prefetch = 0 : i64, scratch_operands = 0 : i64, tpu.core_type = #tpu.core_type<tc>, window_params = [{transform_indices = @transform_0, window_bounds = array<i64: 16, 8>}, {pipeline_mode = #tpu.pipeline_mode<synchronous>, transform_indices = @transform_1, window_bounds = array<i64: 4, 64, 64>}, {pipeline_mode = #tpu.pipeline_mode<synchronous>, transform_indices = @transform_2, window_bounds = array<i64: 4, 64, 1>}, {transform_indices = @transform_3, window_bounds = array<i64: 16, 8>}]} {
    %c0 = arith.constant 0 : index
    %c0_0 = arith.constant 0 : index
    %0 = vector.load %arg1[%c0, %c0_0] : memref<16x8xf32, #tpu.memory_space<vmem>>, vector<16x8xf32>
    %1 = tpu.transpose %0, [1, 0] : vector<16x8xf32> -> vector<8x16xf32>
    %c0_1 = arith.constant 0 : index
    %c0_2 = arith.constant 0 : index
    %c0_3 = arith.constant 0 : index
    %2 = vector.load %arg2[%c0_1, %c0_2, %c0_3] : memref<4x64x64xf32, #tpu.memory_space<vmem>>, vector<1x64x8xf32>
    %3 = vector.shape_cast %2 : vector<1x64x8xf32> to vector<64x8xf32>
    %cst = arith.constant dense<0.000000e+00> : vector<64x16xf32>
    %4 = tpu.matmul %3, %1, %cst {dimension_numbers = #tpu.dot_dimension_numbers<[1], [0], [0], [1], [0, 0, 1, 1], [], []>, precision = #tpu.contract_precision<fp32>} : vector<64x8xf32>, vector<8x16xf32>, vector<64x16xf32> -> vector<64x16xf32>
    %c0_4 = arith.constant 0 : index
    %c0_5 = arith.constant 0 : index
    %c0_6 = arith.constant 0 : index
    %5 = vector.load %arg3[%c0_4, %c0_5, %c0_6] : memref<4x64x1xf32, #tpu.memory_space<vmem>>, vector<1x64x1xf32>
    %6 = vector.shape_cast %5 : vector<1x64x1xf32> to vector<64x1xf32>
    %7 = vector.broadcast %6 : vector<64x1xf32> to vector<64x16xf32>
    %8 = arith.addf %4, %7 : vector<64x16xf32>
    %cst_7 = arith.constant 0.000000e+00 : f32
    %9 = vector.broadcast %cst_7 : f32 to vector<64x16xf32>
    %10 = arith.maximumf %8, %9 : vector<64x16xf32>
    %c1 = arith.constant 1 : index
    %c0_8 = arith.constant 0 : index
    %c0_9 = arith.constant 0 : index
    %11 = vector.load %arg2[%c1, %c0_8, %c0_9] : memref<4x64x64xf32, #tpu.memory_space<vmem>>, vector<1x64x64xf32>
    %12 = vector.shape_cast %11 : vector<1x64x64xf32> to vector<64x64xf32>
    %cst_10 = arith.constant dense<0.000000e+00> : vector<64x16xf32>
    %13 = tpu.matmul %12, %10, %cst_10 {dimension_numbers = #tpu.dot_dimension_numbers<[1], [0], [0], [1], [0, 0, 1, 1], [], []>, precision = #tpu.contract_precision<fp32>} : vector<64x64xf32>, vector<64x16xf32>, vector<64x16xf32> -> vector<64x16xf32>
    %c1_11 = arith.constant 1 : index
    %c0_12 = arith.constant 0 : index
    %c0_13 = arith.constant 0 : index
    %14 = vector.load %arg3[%c1_11, %c0_12, %c0_13] : memref<4x64x1xf32, #tpu.memory_space<vmem>>, vector<1x64x1xf32>
    %15 = vector.shape_cast %14 : vector<1x64x1xf32> to vector<64x1xf32>
    %16 = vector.broadcast %15 : vector<64x1xf32> to vector<64x16xf32>
    %17 = arith.addf %13, %16 : vector<64x16xf32>
    %cst_14 = arith.constant 0.000000e+00 : f32
    %18 = vector.broadcast %cst_14 : f32 to vector<64x16xf32>
    %19 = arith.maximumf %17, %18 : vector<64x16xf32>
    %c2 = arith.constant 2 : index
    %c0_15 = arith.constant 0 : index
    %c0_16 = arith.constant 0 : index
    %20 = vector.load %arg2[%c2, %c0_15, %c0_16] : memref<4x64x64xf32, #tpu.memory_space<vmem>>, vector<1x64x64xf32>
    %21 = vector.shape_cast %20 : vector<1x64x64xf32> to vector<64x64xf32>
    %cst_17 = arith.constant dense<0.000000e+00> : vector<64x16xf32>
    %22 = tpu.matmul %21, %19, %cst_17 {dimension_numbers = #tpu.dot_dimension_numbers<[1], [0], [0], [1], [0, 0, 1, 1], [], []>, precision = #tpu.contract_precision<fp32>} : vector<64x64xf32>, vector<64x16xf32>, vector<64x16xf32> -> vector<64x16xf32>
    %c2_18 = arith.constant 2 : index
    %c0_19 = arith.constant 0 : index
    %c0_20 = arith.constant 0 : index
    %23 = vector.load %arg3[%c2_18, %c0_19, %c0_20] : memref<4x64x1xf32, #tpu.memory_space<vmem>>, vector<1x64x1xf32>
    %24 = vector.shape_cast %23 : vector<1x64x1xf32> to vector<64x1xf32>
    %25 = vector.broadcast %24 : vector<64x1xf32> to vector<64x16xf32>
    %26 = arith.addf %22, %25 : vector<64x16xf32>
    %cst_21 = arith.constant 0.000000e+00 : f32
    %27 = vector.broadcast %cst_21 : f32 to vector<64x16xf32>
    %28 = arith.maximumf %26, %27 : vector<64x16xf32>
    %c3 = arith.constant 3 : index
    %c0_22 = arith.constant 0 : index
    %c0_23 = arith.constant 0 : index
    %29 = vector.load %arg2[%c3, %c0_22, %c0_23] : memref<4x64x64xf32, #tpu.memory_space<vmem>>, vector<1x8x64xf32>
    %30 = vector.shape_cast %29 : vector<1x8x64xf32> to vector<8x64xf32>
    %cst_24 = arith.constant dense<0.000000e+00> : vector<8x16xf32>
    %31 = tpu.matmul %30, %28, %cst_24 {dimension_numbers = #tpu.dot_dimension_numbers<[1], [0], [0], [1], [0, 0, 1, 1], [], []>, precision = #tpu.contract_precision<fp32>} : vector<8x64xf32>, vector<64x16xf32>, vector<8x16xf32> -> vector<8x16xf32>
    %c3_25 = arith.constant 3 : index
    %c0_26 = arith.constant 0 : index
    %c0_27 = arith.constant 0 : index
    %32 = vector.load %arg3[%c3_25, %c0_26, %c0_27] : memref<4x64x1xf32, #tpu.memory_space<vmem>>, vector<1x8x1xf32>
    %33 = vector.shape_cast %32 : vector<1x8x1xf32> to vector<8x1xf32>
    %34 = vector.broadcast %33 : vector<8x1xf32> to vector<8x16xf32>
    %35 = arith.addf %31, %34 : vector<8x16xf32>
    %36 = tpu.transpose %35, [1, 0] : vector<8x16xf32> -> vector<16x8xf32>
    %c0_28 = arith.constant 0 : index
    %c0_29 = arith.constant 0 : index
    %37 = vector.load %arg4[%c0_28, %c0_29] : memref<16x8xf32, #tpu.memory_space<vmem>>, vector<16x8xf32>
    tpu.vector_store %arg4[%c0_28, %c0_29], %36 {strides = array<i32>} : memref<16x8xf32, #tpu.memory_space<vmem>>, vector<16x8xf32>,
    return
  }
  func.func @transform_0(%arg0: i32) -> (i32, i32) {
    %c0_i32 = arith.constant 0 : i32
    %c0_i32_0 = arith.constant 0 : i32
    return %arg0, %c0_i32 : i32, i32
  }
  func.func @transform_1(%arg0: i32) -> (i32, i32, i32) {
    %c0_i32 = arith.constant 0 : i32
    %c0_i32_0 = arith.constant 0 : i32
    %c0_i32_1 = arith.constant 0 : i32
    %c0_i32_2 = arith.constant 0 : i32
    return %c0_i32, %c0_i32_0, %c0_i32_1 : i32, i32, i32
  }
  func.func @transform_2(%arg0: i32) -> (i32, i32, i32) {
    %c0_i32 = arith.constant 0 : i32
    %c0_i32_0 = arith.constant 0 : i32
    %c0_i32_1 = arith.constant 0 : i32
    %c0_i32_2 = arith.constant 0 : i32
    return %c0_i32, %c0_i32_0, %c0_i32_1 : i32, i32, i32
  }
  func.func @transform_3(%arg0: i32) -> (i32, i32) {
    %c0_i32 = arith.constant 0 : i32
    %c0_i32_0 = arith.constant 0 : i32
    return %arg0, %c0_i32 : i32, i32
  }
}

</mosaic_0001>

<llo_original>
// kernel: mlp_forward.1
$region0: #{mlp_forward.1}
  #allocation0 [shape = 'u32[]', space=smem, size = 0x4, offset = 0x4, fixed_abs, tag = 'smem constant byte address 0x4 - core index']
  #allocation1 [shape = 'u32[144,128]{1,0:T(1,128)}', space=vmem, size = 0x12000, scoped, tag = 'internal scratch']
  %s0 = inlined_call_operand.vmem [shape: f32[16,8], index: 0, kind: input, shape index: {}]
  %s1 = inlined_call_operand.vmem [shape: f32[4,64,64], index: 1, kind: input, shape index: {}]
  %s2 = inlined_call_operand.vmem [shape: f32[4,64,1], index: 2, kind: input, shape index: {}]
  %s3 = inlined_call_operand.vmem [shape: f32[16,8], index: 3, kind: output, shape index: {}]
  %s4 = sld [smem:[#allocation0]]
  $region22: #{mlp_forward.1} parent=0
    _
  %s6 = ssub.s32 1, %s4
  %s7 = scalar_select 0, %s6, %s4
  // Predicated region
  $region2: #{mlp_forward.1} parent=0 // pred_check
    _
  $region3: #{mlp_forward.1} parent=0 // pred_check_branch
    %9 = sbr.rel (0) target = $region5
  $region4: #{mlp_forward.1} parent=0 // pred_region
    _
  $region5: #{mlp_forward.1} parent=0 // pred_fallthru
    _
  // Predicated region
  $region6: #{mlp_forward.1} parent=0 // pred_check
    _
  $region7: #{mlp_forward.1} parent=0 // pred_check_branch
    %11 = sbr.rel (0) target = $region9
  $region8: #{mlp_forward.1} parent=0 // pred_region
    _
  $region9: #{mlp_forward.1} parent=0 // pred_fallthru
    _
  // Predicated region
  $region10: #{mlp_forward.1} parent=0 // pred_check
    _
  $region11: #{mlp_forward.1} parent=0 // pred_check_branch
    %13 = sbr.rel (0) target = $region13
  $region12: #{mlp_forward.1} parent=0 // pred_region
    _
  $region13: #{mlp_forward.1} parent=0 // pred_fallthru
    _
  %v14 = vld [vmem:[%s0] sm:$0xff]
  %v15 = vld [vmem:[%s0 + $0x8] sm:$0xff]
  %v16 = vld [vmem:[%s1] sm:$0xff]
  %v17 = vld [vmem:[%s1 + $0x8] sm:$0xff]
  %v18 = vld [vmem:[%s1 + $0x10] sm:$0xff]
  %v19 = vld [vmem:[%s1 + $0x18] sm:$0xff]
  %v20 = vld [vmem:[%s1 + $0x20] sm:$0xff]
  %v21 = vld [vmem:[%s1 + $0x28] sm:$0xff]
  %v22 = vld [vmem:[%s1 + $0x30] sm:$0xff]
  %v23 = vld [vmem:[%s1 + $0x38] sm:$0xff]
  %v24 = vld [vmem:[%s2] sm:$0xff]
  %v25 = vld [vmem:[%s2 + $0x8] sm:$0xff]
  %v26 = vld [vmem:[%s2 + $0x10] sm:$0xff]
  %v27 = vld [vmem:[%s2 + $0x18] sm:$0xff]
  %v28 = vld [vmem:[%s2 + $0x20] sm:$0xff]
  %v29 = vld [vmem:[%s2 + $0x28] sm:$0xff]
  %v30 = vld [vmem:[%s2 + $0x30] sm:$0xff]
  %v31 = vld [vmem:[%s2 + $0x38] sm:$0xff]
  %33 = vset.pattern.permute.xlu0 0
  %34 = vperm.xlu0 %33, %v24
  %v35 = vpop.permute.xlu0 %34
  %38 = vset.pattern.permute.xlu0 0
  %39 = vperm.xlu0 %38, %v25
  %v40 = vpop.permute.xlu0 %39
  %43 = vset.pattern.permute.xlu0 0
  %44 = vperm.xlu0 %43, %v26
  %v45 = vpop.permute.xlu0 %44
  %48 = vset.pattern.permute.xlu0 0
  %49 = vperm.xlu0 %48, %v27
  %v50 = vpop.permute.xlu0 %49
  %53 = vset.pattern.permute.xlu0 0
  %54 = vperm.xlu0 %53, %v28
  %v55 = vpop.permute.xlu0 %54
  %58 = vset.pattern.permute.xlu0 0
  %59 = vperm.xlu0 %58, %v29
  %v60 = vpop.permute.xlu0 %59
  %63 = vset.pattern.permute.xlu0 0
  %64 = vperm.xlu0 %63, %v30
  %v65 = vpop.permute.xlu0 %64
  %68 = vset.pattern.permute.xlu0 0
  %69 = vperm.xlu0 %68, %v31
  %v70 = vpop.permute.xlu0 %69
  %vm72 = vcmask 64512
  %v74 = vsel %vm72, %v16, 0
  %v77 = vsel %vm72, %v17, 0
  %v80 = vsel %vm72, %v18, 0
  %v83 = vsel %vm72, %v19, 0
  %v86 = vsel %vm72, %v20, 0
  %v89 = vsel %vm72, %v21, 0
  %v92 = vsel %vm72, %v22, 0
  %v95 = vsel %vm72, %v23, 0
  %v98 = vsel %vm72, %v14, 0
  %v101 = vsel %vm72, %v15, 0
  %103 = vmatprep.subr.mxu0 0.0
  %v104 = vand.u32 %v98, 4294901760
  %105 = vmatpush1.xpose.msra.mxu0 %v104
  %106 = vmatprep.subr.mxu0 0.0
  %v107 = vand.u32 %v101, 4294901760
  %108 = vmatpush1.xpose.msra.mxu0 %v107
  %109 = vmatprep.subr.mxu0 0.0
  %110 = vmatpush1.xpose.msra.mxu0 0.0
  %111 = vmatprep.subr.mxu0 0.0
  %112 = vmatpush1.xpose.msra.mxu0 0.0
  %113 = vmatprep.subr.mxu0 0.0
  %114 = vmatpush1.xpose.msra.mxu0 0.0
  %115 = vmatprep.subr.mxu0 0.0
  %116 = vmatpush1.xpose.msra.mxu0 0.0
  %117 = vmatprep.subr.mxu0 0.0
  %118 = vmatpush1.xpose.msra.mxu0 0.0
  %119 = vmatprep.subr.mxu0 0.0
  %120 = vmatpush1.xpose.msra.mxu0 0.0
  %121 = vmatprep.subr.mxu0 0.0
  %122 = vmatpush1.xpose.msra.mxu0 0.0
  %123 = vmatprep.subr.mxu0 0.0
  %124 = vmatpush1.xpose.msra.mxu0 0.0
  %125 = vmatprep.subr.mxu0 0.0
  %126 = vmatpush1.xpose.msra.mxu0 0.0
  %127 = vmatprep.subr.mxu0 0.0
  %128 = vmatpush1.xpose.msra.mxu0 0.0
  %129 = vmatprep.subr.mxu0 0.0
  %130 = vmatpush1.xpose.msra.mxu0 0.0
  %131 = vmatprep.subr.mxu0 0.0
  %132 = vmatpush1.xpose.msra.mxu0 0.0
  %133 = vmatprep.subr.mxu0 0.0
  %134 = vmatpush1.xpose.msra.mxu0 0.0
  %135 = vmatprep.subr.mxu0 0.0
  %136 = vmatpush1.xpose.msra.mxu0 0.0
  %137 = vmatprep.subr.mxu0 0.0
  %138 = vmatpush1.xpose.msra.mxu0 0.0
  %139 = vmatprep.subr.mxu0 0.0
  %140 = vmatpush1.xpose.msra.mxu0 0.0
  %141 = vmatprep.subr.mxu0 0.0
  %142 = vmatpush1.xpose.msra.mxu0 0.0
  %143 = vmatprep.subr.mxu0 0.0
  %144 = vmatpush1.xpose.msra.mxu0 0.0
  %145 = vmatprep.subr.mxu0 0.0
  %146 = vmatpush1.xpose.msra.mxu0 0.0
  %147 = vmatprep.subr.mxu0 0.0
  %148 = vmatpush1.xpose.msra.mxu0 0.0
  %149 = vmatprep.subr.mxu0 0.0
  %150 = vmatpush1.xpose.msra.mxu0 0.0
  %151 = vmatprep.subr.mxu0 0.0
  %152 = vmatpush1.xpose.msra.mxu0 0.0
  %153 = vmatprep.subr.mxu0 0.0
  %154 = vmatpush1.xpose.msra.mxu0 0.0
  %155 = vmatprep.subr.mxu0 0.0
  %156 = vmatpush1.xpose.msra.mxu0 0.0
  %157 = vmatprep.subr.mxu0 0.0
  %158 = vmatpush1.xpose.msra.mxu0 0.0
  %159 = vmatprep.subr.mxu0 0.0
  %160 = vmatpush1.xpose.msra.mxu0 0.0
  %161 = vmatprep.subr.mxu0 0.0
  %162 = vmatpush1.xpose.msra.mxu0 0.0
  %163 = vmatprep.subr.mxu0 0.0
  %164 = vmatpush1.xpose.msra.mxu0 0.0
  %165 = vmatprep.subr.mxu0 0.0
  %166 = vmatpush1.xpose.msra.mxu0 0.0
  %167 = vmatprep.subr.mxu0 0.0
  %168 = vmatpush1.xpose.msra.mxu0 0.0
  %169 = vmatprep.mubr.f32.mxu0 0.0
  %v170 = vand.u32 %v74, 4294901760
  %v171 = vsub.f32 %v74, %v170
  %v172 = vand.u32 %v171, 4294901760
  %v173 = vsub.f32 %v171, %v172
  %v174 = vand.u32 %v173, 4294901760
  %175 = vmatmul.mubr.f32.gmra.mrb[0].mxu0 %v174
  %v176 = vpop.f32.mrb[0].mxu0
  %v177 = vadd.f32 %v35, %v176
  %v178 = vpop.f32.mrb[0].mxu0
  %179 = vmatprep.mubr.f32.mxu0 0.0
  %v180 = vand.u32 %v77, 4294901760
  %v181 = vsub.f32 %v77, %v180
  %v182 = vand.u32 %v181, 4294901760
  %v183 = vsub.f32 %v181, %v182
  %v184 = vand.u32 %v183, 4294901760
  %185 = vmatmul.mubr.f32.gmra.mrb[0].mxu0 %v184
  %v186 = vpop.f32.mrb[0].mxu0
  %v187 = vadd.f32 %v40, %v186
  %v188 = vpop.f32.mrb[0].mxu0
  %189 = vmatprep.mubr.f32.mxu0 0.0
  %v190 = vand.u32 %v80, 4294901760
  %v191 = vsub.f32 %v80, %v190
  %v192 = vand.u32 %v191, 4294901760
  %v193 = vsub.f32 %v191, %v192
  %v194 = vand.u32 %v193, 4294901760
  %195 = vmatmul.mubr.f32.gmra.mrb[0].mxu0 %v194
  %v196 = vpop.f32.mrb[0].mxu0
  %v197 = vadd.f32 %v45, %v196
  %v198 = vpop.f32.mrb[0].mxu0
  %199 = vmatprep.mubr.f32.mxu0 0.0
  %v200 = vand.u32 %v83, 4294901760
  %v201 = vsub.f32 %v83, %v200
  %v202 = vand.u32 %v201, 4294901760
  %v203 = vsub.f32 %v201, %v202
  %v204 = vand.u32 %v203, 4294901760
  %205 = vmatmul.mubr.f32.gmra.mrb[0].mxu0 %v204
  %v206 = vpop.f32.mrb[0].mxu0
  %v207 = vadd.f32 %v50, %v206
  %v208 = vpop.f32.mrb[0].mxu0
  %209 = vmatprep.mubr.f32.mxu0 0.0
  %v210 = vand.u32 %v86, 4294901760
  %v211 = vsub.f32 %v86, %v210
  %v212 = vand.u32 %v211, 4294901760
  %v213 = vsub.f32 %v211, %v212
  %v214 = vand.u32 %v213, 4294901760
  %215 = vmatmul.mubr.f32.gmra.mrb[0].mxu0 %v214
  %v216 = vpop.f32.mrb[0].mxu0
  %v217 = vadd.f32 %v55, %v216
  %v218 = vpop.f32.mrb[0].mxu0
  %219 = vmatprep.mubr.f32.mxu0 0.0
  %v220 = vand.u32 %v89, 4294901760
  %v221 = vsub.f32 %v89, %v220
  %v222 = vand.u32 %v221, 4294901760
  %v223 = vsub.f32 %v221, %v222
  %v224 = vand.u32 %v223, 4294901760
  %225 = vmatmul.mubr.f32.gmra.mrb[0].mxu0 %v224
  %v226 = vpop.f32.mrb[0].mxu0
  %v227 = vadd.f32 %v60, %v226
  %v228 = vpop.f32.mrb[0].mxu0
  %229 = vmatprep.mubr.f32.mxu0 0.0
  %v230 = vand.u32 %v92, 4294901760
  %v231 = vsub.f32 %v92, %v230
  %v232 = vand.u32 %v231, 4294901760
  %v233 = vsub.f32 %v231, %v232
  %v234 = vand.u32 %v233, 4294901760
  %235 = vmatmul.mubr.f32.gmra.mrb[0].mxu0 %v234
  %v236 = vpop.f32.mrb[0].mxu0
  %v237 = vadd.f32 %v65, %v236
  %v238 = vpop.f32.mrb[0].mxu0
  %239 = vmatprep.mubr.f32.mxu0 0.0
  %v240 = vand.u32 %v95, 4294901760
  %v241 = vsub.f32 %v95, %v240
  %v242 = vand.u32 %v241, 4294901760
  %v243 = vsub.f32 %v241, %v242
  %v244 = vand.u32 %v243, 4294901760
  %245 = vmatmul.mubr.f32.gmra.mrb[0].mxu0 %v244
  %v246 = vpop.f32.mrb[0].mxu0
  %v247 = vadd.f32 %v70, %v246
  %v248 = vpop.f32.mrb[0].mxu0
  %249 = vdwg.mxu0
  %250 = vmatprep.subr.mxu0 0.0
  %v251 = vand.u32 %v98, 4294901760
  %v252 = vsub.f32 %v98, %v251
  %v253 = vand.u32 %v252, 4294901760
  %v254 = vsub.f32 %v252, %v253
  %v255 = vand.u32 %v254, 4294901760
  %256 = vmatpush1.xpose.msra.mxu0 %v255
  %257 = vmatprep.subr.mxu0 0.0
  %v258 = vand.u32 %v101, 4294901760
  %v259 = vsub.f32 %v101, %v258
  %v260 = vand.u32 %v259, 4294901760
  %v261 = vsub.f32 %v259, %v260
  %v262 = vand.u32 %v261, 4294901760
  %263 = vmatpush1.xpose.msra.mxu0 %v262
  %264 = vmatprep.subr.mxu0 0.0
  %265 = vmatpush1.xpose.msra.mxu0 0.0
  %266 = vmatprep.subr.mxu0 0.0
  %267 = vmatpush1.xpose.msra.mxu0 0.0
  %268 = vmatprep.subr.mxu0 0.0
  %269 = vmatpush1.xpose.msra.mxu0 0.0
  %270 = vmatprep.subr.mxu0 0.0
  %271 = vmatpush1.xpose.msra.mxu0 0.0
  %272 = vmatprep.subr.mxu0 0.0
  %273 = vmatpush1.xpose.msra.mxu0 0.0
  %274 = vmatprep.subr.mxu0 0.0
  %275 = vmatpush1.xpose.msra.mxu0 0.0
  %276 = vmatprep.subr.mxu0 0.0
  %277 = vmatpush1.xpose.msra.mxu0 0.0
  %278 = vmatprep.subr.mxu0 0.0
  %279 = vmatpush1.xpose.msra.mxu0 0.0
  %280 = vmatprep.subr.mxu0 0.0
  %281 = vmatpush1.xpose.msra.mxu0 0.0
  %282 = vmatprep.subr.mxu0 0.0
  %283 = vmatpush1.xpose.msra.mxu0 0.0
  %284 = vmatprep.subr.mxu0 0.0
  %285 = vmatpush1.xpose.msra.mxu0 0.0
  %286 = vmatprep.subr.mxu0 0.0
  %287 = vmatpush1.xpose.msra.mxu0 0.0
  %288 = vmatprep.subr.mxu0 0.0
  %289 = vmatpush1.xpose.msra.mxu0 0.0
  %290 = vmatprep.subr.mxu0 0.0
  %291 = vmatpush1.xpose.msra.mxu0 0.0
  %292 = vmatprep.subr.mxu0 0.0
  %293 = vmatpush1.xpose.msra.mxu0 0.0
  %294 = vmatprep.subr.mxu0 0.0
  %295 = vmatpush1.xpose.msra.mxu0 0.0
  %296 = vmatprep.subr.mxu0 0.0
  %297 = vmatpush1.xpose.msra.mxu0 0.0
  %298 = vmatprep.subr.mxu0 0.0
  %299 = vmatpush1.xpose.msra.mxu0 0.0
  %300 = vmatprep.subr.mxu0 0.0
  %301 = vmatpush1.xpose.msra.mxu0 0.0
  %302 = vmatprep.subr.mxu0 0.0
  %303 = vmatpush1.xpose.msra.mxu0 0.0
  %304 = vmatprep.subr.mxu0 0.0
  %305 = vmatpush1.xpose.msra.mxu0 0.0
  %306 = vmatprep.subr.mxu0 0.0
  %307 = vmatpush1.xpose.msra.mxu0 0.0
  %308 = vmatprep.subr.mxu0 0.0
  %309 = vmatpush1.xpose.msra.mxu0 0.0
  %310 = vmatprep.subr.mxu0 0.0
  %311 = vmatpush1.xpose.msra.mxu0 0.0
  %312 = vmatprep.subr.mxu0 0.0
  %313 = vmatpush1.xpose.msra.mxu0 0.0
  %314 = vmatprep.subr.mxu0 0.0
  %315 = vmatpush1.xpose.msra.mxu0 0.0
  %316 = vmatprep.subr.mxu0 0.0
  %317 = vmatpush1.xpose.msra.mxu0 0.0
  %318 = vmatprep.subr.mxu0 0.0
  %319 = vmatpush1.xpose.msra.mxu0 0.0
  %320 = vmatprep.subr.mxu0 0.0
  %321 = vmatpush1.xpose.msra.mxu0 0.0
  %322 = vmatprep.subr.mxu0 0.0
  %323 = vmatpush1.xpose.msra.mxu0 0.0
  %324 = vmatprep.mubr.f32.mxu0 0.0
  %v325 = vand.u32 %v74, 4294901760
  %326 = vmatmul.mubr.f32.gmra.mrb[0].mxu0 %v325
  %v327 = vpop.f32.mrb[0].mxu0
  %v328 = vadd.f32 %v177, %v327
  %v329 = vpop.f32.mrb[0].mxu0
  %330 = vmatprep.mubr.f32.mxu0 0.0
  %v331 = vand.u32 %v77, 4294901760
  %332 = vmatmul.mubr.f32.gmra.mrb[0].mxu0 %v331
  %v333 = vpop.f32.mrb[0].mxu0
  %v334 = vadd.f32 %v187, %v333
  %v335 = vpop.f32.mrb[0].mxu0
  %336 = vmatprep.mubr.f32.mxu0 0.0
  %v337 = vand.u32 %v80, 4294901760
  %338 = vmatmul.mubr.f32.gmra.mrb[0].mxu0 %v337
  %v339 = vpop.f32.mrb[0].mxu0
  %v340 = vadd.f32 %v197, %v339
  %v341 = vpop.f32.mrb[0].mxu0
  %342 = vmatprep.mubr.f32.mxu0 0.0
  %v343 = vand.u32 %v83, 4294901760
  %344 = vmatmul.mubr.f32.gmra.mrb[0].mxu0 %v343
  %v345 = vpop.f32.mrb[0].mxu0
  %v346 = vadd.f32 %v207, %v345
  %v347 = vpop.f32.mrb[0].mxu0
  %348 = vmatprep.mubr.f32.mxu0 0.0
  %v349 = vand.u32 %v86, 4294901760
  %350 = vmatmul.mubr.f32.gmra.mrb[0].mxu0 %v349
  %v351 = vpop.f32.mrb[0].mxu0
  %v352 = vadd.f32 %v217, %v351
  %v353 = vpop.f32.mrb[0].mxu0
  %354 = vmatprep.mubr.f32.mxu0 0.0
  %v355 = vand.u32 %v89, 4294901760
  %356 = vmatmul.mubr.f32.gmra.mrb[0].mxu0 %v355
  %v357 = vpop.f32.mrb[0].mxu0
  %v358 = vadd.f32 %v227, %v357
  %v359 = vpop.f32.mrb[0].mxu0
  %360 = vmatprep.mubr.f32.mxu0 0.0
  %v361 = vand.u32 %v92, 4294901760
  %362 = vmatmul.mubr.f32.gmra.mrb[0].mxu0 %v361
  %v363 = vpop.f32.mrb[0].mxu0
  %v364 = vadd.f32 %v237, %v363
  %v365 = vpop.f32.mrb[0].mxu0
  %366 = vmatprep.mubr.f32.mxu0 0.0
  %v367 = vand.u32 %v95, 4294901760
  %368 = vmatmul.mubr.f32.gmra.mrb[0].mxu0 %v367
  %v369 = vpop.f32.mrb[0].mxu0
  %v370 = vadd.f32 %v247, %v369
  %v371 = vpop.f32.mrb[0].mxu0
  %372 = vdwg.mxu0
  %373 = vmatprep.subr.mxu0 0.0
  %v374 = vand.u32 %v98, 4294901760
  %v375 = vsub.f32 %v98, %v374
  %376 = vmatpush1.xpose.msra.mxu0 %v375
  %377 = vmatprep.subr.mxu0 0.0
  %v378 = vand.u32 %v101, 4294901760
  %v379 = vsub.f32 %v101, %v378
  %380 = vmatpush1.xpose.msra.mxu0 %v379
  %381 = vmatprep.subr.mxu0 0.0
  %382 = vmatpush1.xpose.msra.mxu0 0.0
  %383 = vmatprep.subr.mxu0 0.0
  %384 = vmatpush1.xpose.msra.mxu0 0.0
  %385 = vmatprep.subr.mxu0 0.0
  %386 = vmatpush1.xpose.msra.mxu0 0.0
  %387 = vmatprep.subr.mxu0 0.0
  %388 = vmatpush1.xpose.msra.mxu0 0.0
  %389 = vmatprep.subr.mxu0 0.0
  %390 = vmatpush1.xpose.msra.mxu0 0.0
  %391 = vmatprep.subr.mxu0 0.0
  %392 = vmatpush1.xpose.msra.mxu0 0.0
  %393 = vmatprep.subr.mxu0 0.0
  %394 = vmatpush1.xpose.msra.mxu0 0.0
  %395 = vmatprep.subr.mxu0 0.0
  %396 = vmatpush1.xpose.msra.mxu0 0.0
  %397 = vmatprep.subr.mxu0 0.0
  %398 = vmatpush1.xpose.msra.mxu0 0.0
  %399 = vmatprep.subr.mxu0 0.0
  %400 = vmatpush1.xpose.msra.mxu0 0.0
  %401 = vmatprep.subr.mxu0 0.0
  %402 = vmatpush1.xpose.msra.mxu0 0.0
  %403 = vmatprep.subr.mxu0 0.0
  %404 = vmatpush1.xpose.msra.mxu0 0.0
  %405 = vmatprep.subr.mxu0 0.0
  %406 = vmatpush1.xpose.msra.mxu0 0.0
  %407 = vmatprep.subr.mxu0 0.0
  %408 = vmatpush1.xpose.msra.mxu0 0.0
  %409 = vmatprep.subr.mxu0 0.0
  %410 = vmatpush1.xpose.msra.mxu0 0.0
  %411 = vmatprep.subr.mxu0 0.0
  %412 = vmatpush1.xpose.msra.mxu0 0.0
  %413 = vmatprep.subr.mxu0 0.0
  %414 = vmatpush1.xpose.msra.mxu0 0.0
  %415 = vmatprep.subr.mxu0 0.0
  %416 = vmatpush1.xpose.msra.mxu0 0.0
  %417 = vmatprep.subr.mxu0 0.0
  %418 = vmatpush1.xpose.msra.mxu0 0.0
  %419 = vmatprep.subr.mxu0 0.0
  %420 = vmatpush1.xpose.msra.mxu0 0.0
  %421 = vmatprep.subr.mxu0 0.0
  %422 = vmatpush1.xpose.msra.mxu0 0.0
  %423 = vmatprep.subr.mxu0 0.0
  %424 = vmatpush1.xpose.msra.mxu0 0.0
  %425 = vmatprep.subr.mxu0 0.0
  %426 = vmatpush1.xpose.msra.mxu0 0.0
  %427 = vmatprep.subr.mxu0 0.0
  %428 = vmatpush1.xpose.msra.mxu0 0.0
  %429 = vmatprep.subr.mxu0 0.0
  %430 = vmatpush1.xpose.msra.mxu0 0.0
  %431 = vmatprep.subr.mxu0 0.0
  %432 = vmatpush1.xpose.msra.mxu0 0.0
  %433 = vmatprep.subr.mxu0 0.0
  %434 = vmatpush1.xpose.msra.mxu0 0.0
  %435 = vmatprep.subr.mxu0 0.0
  %436 = vmatpush1.xpose.msra.mxu0 0.0
  %437 = vmatprep.subr.mxu0 0.0
  %438 = vmatpush1.xpose.msra.mxu0 0.0
  %439 = vmatprep.subr.mxu0 0.0
  %440 = vmatpush1.xpose.msra.mxu0 0.0
  %441 = vmatprep.mubr.f32.mxu0 0.0
  %v442 = vand.u32 %v74, 4294901760
  %v443 = vsub.f32 %v74, %v442
  %444 = vmatmul.mubr.f32.gmra.mrb[0].mxu0 %v443
  %v445 = vpop.f32.mrb[0].mxu0
  %v446 = vadd.f32 %v328, %v445
  %v447 = vpop.f32.mrb[0].mxu0
  %448 = vmatprep.mubr.f32.mxu0 0.0
  %v449 = vand.u32 %v77, 4294901760
  %v450 = vsub.f32 %v77, %v449
  %451 = vmatmul.mubr.f32.gmra.mrb[0].mxu0 %v450
  %v452 = vpop.f32.mrb[0].mxu0
  %v453 = vadd.f32 %v334, %v452
  %v454 = vpop.f32.mrb[0].mxu0
  %455 = vmatprep.mubr.f32.mxu0 0.0
  %v456 = vand.u32 %v80, 4294901760
  %v457 = vsub.f32 %v80, %v456
  %458 = vmatmul.mubr.f32.gmra.mrb[0].mxu0 %v457
  %v459 = vpop.f32.mrb[0].mxu0
  %v460 = vadd.f32 %v340, %v459
  %v461 = vpop.f32.mrb[0].mxu0
  %462 = vmatprep.mubr.f32.mxu0 0.0
  %v463 = vand.u32 %v83, 4294901760
  %v464 = vsub.f32 %v83, %v463
  %465 = vmatmul.mubr.f32.gmra.mrb[0].mxu0 %v464
  %v466 = vpop.f32.mrb[0].mxu0
  %v467 = vadd.f32 %v346, %v466
  %v468 = vpop.f32.mrb[0].mxu0
  %469 = vmatprep.mubr.f32.mxu0 0.0
  %v470 = vand.u32 %v86, 4294901760
  %v471 = vsub.f32 %v86, %v470
  %472 = vmatmul.mubr.f32.gmra.mrb[0].mxu0 %v471
  %v473 = vpop.f32.mrb[0].mxu0
  %v474 = vadd.f32 %v352, %v473
  %v475 = vpop.f32.mrb[0].mxu0
  %476 = vmatprep.mubr.f32.mxu0 0.0
  %v477 = vand.u32 %v89, 4294901760
  %v478 = vsub.f32 %v89, %v477
  %479 = vmatmul.mubr.f32.gmra.mrb[0].mxu0 %v478
  %v480 = vpop.f32.mrb[0].mxu0
  %v481 = vadd.f32 %v358, %v480
  %v482 = vpop.f32.mrb[0].mxu0
  %483 = vmatprep.mubr.f32.mxu0 0.0
  %v484 = vand.u32 %v92, 4294901760
  %v485 = vsub.f32 %v92, %v484
  %486 = vmatmul.mubr.f32.gmra.mrb[0].mxu0 %v485
  %v487 = vpop.f32.mrb[0].mxu0
  %v488 = vadd.f32 %v364, %v487
  %v489 = vpop.f32.mrb[0].mxu0
  %490 = vmatprep.mubr.f32.mxu0 0.0
  %v491 = vand.u32 %v95, 4294901760
  %v492 = vsub.f32 %v95, %v491
  %493 = vmatmul.mubr.f32.gmra.mrb[0].mxu0 %v492
  %v494 = vpop.f32.mrb[0].mxu0
  %v495 = vadd.f32 %v370, %v494
  %v496 = vpop.f32.mrb[0].mxu0
  %497 = vdwg.mxu0
  %498 = vmatprep.subr.mxu0 0.0
  %v499 = vand.u32 %v98, 4294901760
  %500 = vmatpush1.xpose.msra.mxu0 %v499
  %501 = vmatprep.subr.mxu0 0.0
  %v502 = vand.u32 %v101, 4294901760
  %503 = vmatpush1.xpose.msra.mxu0 %v502
  %504 = vmatprep.subr.mxu0 0.0
  %505 = vmatpush1.xpose.msra.mxu0 0.0
  %506 = vmatprep.subr.mxu0 0.0
  %507 = vmatpush1.xpose.msra.mxu0 0.0
  %508 = vmatprep.subr.mxu0 0.0
  %509 = vmatpush1.xpose.msra.mxu0 0.0
  %510 = vmatprep.subr.mxu0 0.0
  %511 = vmatpush1.xpose.msra.mxu0 0.0
  %512 = vmatprep.subr.mxu0 0.0
  %513 = vmatpush1.xpose.msra.mxu0 0.0
  %514 = vmatprep.subr.mxu0 0.0
  %515 = vmatpush1.xpose.msra.mxu0 0.0
  %516 = vmatprep.subr.mxu0 0.0
  %517 = vmatpush1.xpose.msra.mxu0 0.0
  %518 = vmatprep.subr.mxu0 0.0
  %519 = vmatpush1.xpose.msra.mxu0 0.0
  %520 = vmatprep.subr.mxu0 0.0
  %521 = vmatpush1.xpose.msra.mxu0 0.0
  %522 = vmatprep.subr.mxu0 0.0
  %523 = vmatpush1.xpose.msra.mxu0 0.0
  %524 = vmatprep.subr.mxu0 0.0
  %525 = vmatpush1.xpose.msra.mxu0 0.0
  %526 = vmatprep.subr.mxu0 0.0
  %527 = vmatpush1.xpose.msra.mxu0 0.0
  %528 = vmatprep.subr.mxu0 0.0
  %529 = vmatpush1.xpose.msra.mxu0 0.0
  %530 = vmatprep.subr.mxu0 0.0
  %531 = vmatpush1.xpose.msra.mxu0 0.0
  %532 = vmatprep.subr.mxu0 0.0
  %533 = vmatpush1.xpose.msra.mxu0 0.0
  %534 = vmatprep.subr.mxu0 0.0
  %535 = vmatpush1.xpose.msra.mxu0 0.0
  %536 = vmatprep.subr.mxu0 0.0
  %537 = vmatpush1.xpose.msra.mxu0 0.0
  %538 = vmatprep.subr.mxu0 0.0
  %539 = vmatpush1.xpose.msra.mxu0 0.0
  %540 = vmatprep.subr.mxu0 0.0
  %541 = vmatpush1.xpose.msra.mxu0 0.0
  %542 = vmatprep.subr.mxu0 0.0
  %543 = vmatpush1.xpose.msra.mxu0 0.0
  %544 = vmatprep.subr.mxu0 0.0
  %545 = vmatpush1.xpose.msra.mxu0 0.0
  %546 = vmatprep.subr.mxu0 0.0
  %547 = vmatpush1.xpose.msra.mxu0 0.0
  %548 = vmatprep.subr.mxu0 0.0
  %549 = vmatpush1.xpose.msra.mxu0 0.0
  %550 = vmatprep.subr.mxu0 0.0
  %551 = vmatpush1.xpose.msra.mxu0 0.0
  %552 = vmatprep.subr.mxu0 0.0
  %553 = vmatpush1.xpose.msra.mxu0 0.0
  %554 = vmatprep.subr.mxu0 0.0
  %555 = vmatpush1.xpose.msra.mxu0 0.0
  %556 = vmatprep.subr.mxu0 0.0
  %557 = vmatpush1.xpose.msra.mxu0 0.0
  %558 = vmatprep.subr.mxu0 0.0
  %559 = vmatpush1.xpose.msra.mxu0 0.0
  %560 = vmatprep.subr.mxu0 0.0
  %561 = vmatpush1.xpose.msra.mxu0 0.0
  %562 = vmatprep.subr.mxu0 0.0
  %563 = vmatpush1.xpose.msra.mxu0 0.0
  %564 = vmatprep.mubr.f32.mxu0 0.0
  %v565 = vand.u32 %v74, 4294901760
  %v566 = vsub.f32 %v74, %v565
  %v567 = vand.u32 %v566, 4294901760
  %568 = vmatmul.mubr.f32.gmra.mrb[0].mxu0 %v567
  %v569 = vpop.f32.mrb[0].mxu0
  %v570 = vadd.f32 %v446, %v569
  %v571 = vpop.f32.mrb[0].mxu0
  %572 = vmatprep.mubr.f32.mxu0 0.0
  %v573 = vand.u32 %v77, 4294901760
  %v574 = vsub.f32 %v77, %v573
  %v575 = vand.u32 %v574, 4294901760
  %576 = vmatmul.mubr.f32.gmra.mrb[0].mxu0 %v575
  %v577 = vpop.f32.mrb[0].mxu0
  %v578 = vadd.f32 %v453, %v577
  %v579 = vpop.f32.mrb[0].mxu0
  %580 = vmatprep.mubr.f32.mxu0 0.0
  %v581 = vand.u32 %v80, 4294901760
  %v582 = vsub.f32 %v80, %v581
  %v583 = vand.u32 %v582, 4294901760
  %584 = vmatmul.mubr.f32.gmra.mrb[0].mxu0 %v583
  %v585 = vpop.f32.mrb[0].mxu0
  %v586 = vadd.f32 %v460, %v585
  %v587 = vpop.f32.mrb[0].mxu0
  %588 = vmatprep.mubr.f32.mxu0 0.0
  %v589 = vand.u32 %v83, 4294901760
  %v590 = vsub.f32 %v83, %v589
  %v591 = vand.u32 %v590, 4294901760
  %592 = vmatmul.mubr.f32.gmra.mrb[0].mxu0 %v591
  %v593 = vpop.f32.mrb[0].mxu0
  %v594 = vadd.f32 %v467, %v593
  %v595 = vpop.f32.mrb[0].mxu0
  %596 = vmatprep.mubr.f32.mxu0 0.0
  %v597 = vand.u32 %v86, 4294901760
  %v598 = vsub.f32 %v86, %v597
  %v599 = vand.u32 %v598, 4294901760
  %600 = vmatmul.mubr.f32.gmra.mrb[0].mxu0 %v599
  %v601 = vpop.f32.mrb[0].mxu0
  %v602 = vadd.f32 %v474, %v601
  %v603 = vpop.f32.mrb[0].mxu0
  %604 = vmatprep.mubr.f32.mxu0 0.0
  %v605 = vand.u32 %v89, 4294901760
  %v606 = vsub.f32 %v89, %v605
  %v607 = vand.u32 %v606, 4294901760
  %608 = vmatmul.mubr.f32.gmra.mrb[0].mxu0 %v607
  %v609 = vpop.f32.mrb[0].mxu0
  %v610 = vadd.f32 %v481, %v609
  %v611 = vpop.f32.mrb[0].mxu0
  %612 = vmatprep.mubr.f32.mxu0 0.0
  %v613 = vand.u32 %v92, 4294901760
  %v614 = vsub.f32 %v92, %v613
  %v615 = vand.u32 %v614, 4294901760
  %616 = vmatmul.mubr.f32.gmra.mrb[0].mxu0 %v615
  %v617 = vpop.f32.mrb[0].mxu0
  %v618 = vadd.f32 %v488, %v617
  %v619 = vpop.f32.mrb[0].mxu0
  %620 = vmatprep.mubr.f32.mxu0 0.0
  %v621 = vand.u32 %v95, 4294901760
  %v622 = vsub.f32 %v95, %v621
  %v623 = vand.u32 %v622, 4294901760
  %624 = vmatmul.mubr.f32.gmra.mrb[0].mxu0 %v623
  %v625 = vpop.f32.mrb[0].mxu0
  %v626 = vadd.f32 %v495, %v625
  %v627 = vpop.f32.mrb[0].mxu0
  %628 = vdwg.mxu0
  %629 = vmatprep.subr.mxu0 0.0
  %v630 = vand.u32 %v98, 4294901760
  %v631 = vsub.f32 %v98, %v630
  %v632 = vand.u32 %v631, 4294901760
  %633 = vmatpush1.xpose.msra.mxu0 %v632
  %634 = vmatprep.subr.mxu0 0.0
  %v635 = vand.u32 %v101, 4294901760
  %v636 = vsub.f32 %v101, %v635
  %v637 = vand.u32 %v636, 4294901760
  %638 = vmatpush1.xpose.msra.mxu0 %v637
  %639 = vmatprep.subr.mxu0 0.0
  %640 = vmatpush1.xpose.msra.mxu0 0.0
  %641 = vmatprep.subr.mxu0 0.0
  %642 = vmatpush1.xpose.msra.mxu0 0.0
  %643 = vmatprep.subr.mxu0 0.0
  %644 = vmatpush1.xpose.msra.mxu0 0.0
  %645 = vmatprep.subr.mxu0 0.0
  %646 = vmatpush1.xpose.msra.mxu0 0.0
  %647 = vmatprep.subr.mxu0 0.0
  %648 = vmatpush1.xpose.msra.mxu0 0.0
  %649 = vmatprep.subr.mxu0 0.0
  %650 = vmatpush1.xpose.msra.mxu0 0.0
  %651 = vmatprep.subr.mxu0 0.0
  %652 = vmatpush1.xpose.msra.mxu0 0.0
  %653 = vmatprep.subr.mxu0 0.0
  %654 = vmatpush1.xpose.msra.mxu0 0.0
  %655 = vmatprep.subr.mxu0 0.0
  %656 = vmatpush1.xpose.msra.mxu0 0.0
  %657 = vmatprep.subr.mxu0 0.0
  %658 = vmatpush1.xpose.msra.mxu0 0.0
  %659 = vmatprep.subr.mxu0 0.0
  %660 = vmatpush1.xpose.msra.mxu0 0.0
  %661 = vmatprep.subr.mxu0 0.0
  %662 = vmatpush1.xpose.msra.mxu0 0.0
  %663 = vmatprep.subr.mxu0 0.0
  %664 = vmatpush1.xpose.msra.mxu0 0.0
  %665 = vmatprep.subr.mxu0 0.0
  %666 = vmatpush1.xpose.msra.mxu0 0.0
  %667 = vmatprep.subr.mxu0 0.0
  %668 = vmatpush1.xpose.msra.mxu0 0.0
  %669 = vmatprep.subr.mxu0 0.0
  %670 = vmatpush1.xpose.msra.mxu0 0.0
  %671 = vmatprep.subr.mxu0 0.0
  %672 = vmatpush1.xpose.msra.mxu0 0.0
  %673 = vmatprep.subr.mxu0 0.0
  %674 = vmatpush1.xpose.msra.mxu0 0.0
  %675 = vmatprep.subr.mxu0 0.0
  %676 = vmatpush1.xpose.msra.mxu0 0.0
  %677 = vmatprep.subr.mxu0 0.0
  %678 = vmatpush1.xpose.msra.mxu0 0.0
  %679 = vmatprep.subr.mxu0 0.0
  %680 = vmatpush1.xpose.msra.mxu0 0.0
  %681 = vmatprep.subr.mxu0 0.0
  %682 = vmatpush1.xpose.msra.mxu0 0.0
  %683 = vmatprep.subr.mxu0 0.0
  %684 = vmatpush1.xpose.msra.mxu0 0.0
  %685 = vmatprep.subr.mxu0 0.0
  %686 = vmatpush1.xpose.msra.mxu0 0.0
  %687 = vmatprep.subr.mxu0 0.0
  %688 = vmatpush1.xpose.msra.mxu0 0.0
  %689 = vmatprep.subr.mxu0 0.0
  %690 = vmatpush1.xpose.msra.mxu0 0.0
  %691 = vmatprep.subr.mxu0 0.0
  %692 = vmatpush1.xpose.msra.mxu0 0.0
  %693 = vmatprep.subr.mxu0 0.0
  %694 = vmatpush1.xpose.msra.mxu0 0.0
  %695 = vmatprep.subr.mxu0 0.0
  %696 = vmatpush1.xpose.msra.mxu0 0.0
  %697 = vmatprep.subr.mxu0 0.0
  %698 = vmatpush1.xpose.msra.mxu0 0.0
  %699 = vmatprep.mubr.f32.mxu0 0.0
  %v700 = vand.u32 %v74, 4294901760
  %701 = vmatmul.mubr.f32.gmra.mrb[0].mxu0 %v700
  %v702 = vpop.f32.mrb[0].mxu0
  %v703 = vadd.f32 %v570, %v702
  %v704 = vpop.f32.mrb[0].mxu0
  %705 = vmatprep.mubr.f32.mxu0 0.0
  %v706 = vand.u32 %v77, 4294901760
  %707 = vmatmul.mubr.f32.gmra.mrb[0].mxu0 %v706
  %v708 = vpop.f32.mrb[0].mxu0
  %v709 = vadd.f32 %v578, %v708
  %v710 = vpop.f32.mrb[0].mxu0
  %711 = vmatprep.mubr.f32.mxu0 0.0
  %v712 = vand.u32 %v80, 4294901760
  %713 = vmatmul.mubr.f32.gmra.mrb[0].mxu0 %v712
  %v714 = vpop.f32.mrb[0].mxu0
  %v715 = vadd.f32 %v586, %v714
  %v716 = vpop.f32.mrb[0].mxu0
  %717 = vmatprep.mubr.f32.mxu0 0.0
  %v718 = vand.u32 %v83, 4294901760
  %719 = vmatmul.mubr.f32.gmra.mrb[0].mxu0 %v718
  %v720 = vpop.f32.mrb[0].mxu0
  %v721 = vadd.f32 %v594, %v720
  %v722 = vpop.f32.mrb[0].mxu0
  %723 = vmatprep.mubr.f32.mxu0 0.0
  %v724 = vand.u32 %v86, 4294901760
  %725 = vmatmul.mubr.f32.gmra.mrb[0].mxu0 %v724
  %v726 = vpop.f32.mrb[0].mxu0
  %v727 = vadd.f32 %v602, %v726
  %v728 = vpop.f32.mrb[0].mxu0
  %729 = vmatprep.mubr.f32.mxu0 0.0
  %v730 = vand.u32 %v89, 4294901760
  %731 = vmatmul.mubr.f32.gmra.mrb[0].mxu0 %v730
  %v732 = vpop.f32.mrb[0].mxu0
  %v733 = vadd.f32 %v610, %v732
  %v734 = vpop.f32.mrb[0].mxu0
  %735 = vmatprep.mubr.f32.mxu0 0.0
  %v736 = vand.u32 %v92, 4294901760
  %737 = vmatmul.mubr.f32.gmra.mrb[0].mxu0 %v736
  %v738 = vpop.f32.mrb[0].mxu0
  %v739 = vadd.f32 %v618, %v738
  %v740 = vpop.f32.mrb[0].mxu0
  %741 = vmatprep.mubr.f32.mxu0 0.0
  %v742 = vand.u32 %v95, 4294901760
  %743 = vmatmul.mubr.f32.gmra.mrb[0].mxu0 %v742
  %v744 = vpop.f32.mrb[0].mxu0
  %v745 = vadd.f32 %v626, %v744
  %v746 = vpop.f32.mrb[0].mxu0
  %747 = vdwg.mxu0
  %748 = vmatprep.subr.mxu0 0.0
  %v749 = vand.u32 %v98, 4294901760
  %750 = vmatpush1.xpose.msra.mxu0 %v749
  %751 = vmatprep.subr.mxu0 0.0
  %v752 = vand.u32 %v101, 4294901760
  %753 = vmatpush1.xpose.msra.mxu0 %v752
  %754 = vmatprep.subr.mxu0 0.0
  %755 = vmatpush1.xpose.msra.mxu0 0.0
  %756 = vmatprep.subr.mxu0 0.0
  %757 = vmatpush1.xpose.msra.mxu0 0.0
  %758 = vmatprep.subr.mxu0 0.0
  %759 = vmatpush1.xpose.msra.mxu0 0.0
  %760 = vmatprep.subr.mxu0 0.0
  %761 = vmatpush1.xpose.msra.mxu0 0.0
  %762 = vmatprep.subr.mxu0 0.0
  %763 = vmatpush1.xpose.msra.mxu0 0.0
  %764 = vmatprep.subr.mxu0 0.0
  %765 = vmatpush1.xpose.msra.mxu0 0.0
  %766 = vmatprep.subr.mxu0 0.0
  %767 = vmatpush1.xpose.msra.mxu0 0.0
  %768 = vmatprep.subr.mxu0 0.0
  %769 = vmatpush1.xpose.msra.mxu0 0.0
  %770 = vmatprep.subr.mxu0 0.0
  %771 = vmatpush1.xpose.msra.mxu0 0.0
  %772 = vmatprep.subr.mxu0 0.0
  %773 = vmatpush1.xpose.msra.mxu0 0.0
  %774 = vmatprep.subr.mxu0 0.0
  %775 = vmatpush1.xpose.msra.mxu0 0.0
  %776 = vmatprep.subr.mxu0 0.0
  %777 = vmatpush1.xpose.msra.mxu0 0.0
  %778 = vmatprep.subr.mxu0 0.0
  %779 = vmatpush1.xpose.msra.mxu0 0.0
  %780 = vmatprep.subr.mxu0 0.0
  %781 = vmatpush1.xpose.msra.mxu0 0.0
  %782 = vmatprep.subr.mxu0 0.0
  %783 = vmatpush1.xpose.msra.mxu0 0.0
  %784 = vmatprep.subr.mxu0 0.0
  %785 = vmatpush1.xpose.msra.mxu0 0.0
  %786 = vmatprep.subr.mxu0 0.0
  %787 = vmatpush1.xpose.msra.mxu0 0.0
  %788 = vmatprep.subr.mxu0 0.0
  %789 = vmatpush1.xpose.msra.mxu0 0.0
  %790 = vmatprep.subr.mxu0 0.0
  %791 = vmatpush1.xpose.msra.mxu0 0.0
  %792 = vmatprep.subr.mxu0 0.0
  %793 = vmatpush1.xpose.msra.mxu0 0.0
  %794 = vmatprep.subr.mxu0 0.0
  %795 = vmatpush1.xpose.msra.mxu0 0.0
  %796 = vmatprep.subr.mxu0 0.0
  %797 = vmatpush1.xpose.msra.mxu0 0.0
  %798 = vmatprep.subr.mxu0 0.0
  %799 = vmatpush1.xpose.msra.mxu0 0.0
  %800 = vmatprep.subr.mxu0 0.0
  %801 = vmatpush1.xpose.msra.mxu0 0.0
  %802 = vmatprep.subr.mxu0 0.0
  %803 = vmatpush1.xpose.msra.mxu0 0.0
  %804 = vmatprep.subr.mxu0 0.0
  %805 = vmatpush1.xpose.msra.mxu0 0.0
  %806 = vmatprep.subr.mxu0 0.0
  %807 = vmatpush1.xpose.msra.mxu0 0.0
  %808 = vmatprep.subr.mxu0 0.0
  %809 = vmatpush1.xpose.msra.mxu0 0.0
  %810 = vmatprep.subr.mxu0 0.0
  %811 = vmatpush1.xpose.msra.mxu0 0.0
  %812 = vmatprep.subr.mxu0 0.0
  %813 = vmatpush1.xpose.msra.mxu0 0.0
  %814 = vmatprep.mubr.f32.mxu0 0.0
  %v815 = vand.u32 %v74, 4294901760
  %816 = vmatmul.mubr.f32.gmra.mrb[0].mxu0 %v815
  %v817 = vpop.f32.mrb[0].mxu0
  %v818 = vadd.f32 %v703, %v817
  %v819 = vpop.f32.mrb[0].mxu0
  %820 = vmatprep.mubr.f32.mxu0 0.0
  %v821 = vand.u32 %v77, 4294901760
  %822 = vmatmul.mubr.f32.gmra.mrb[0].mxu0 %v821
  %v823 = vpop.f32.mrb[0].mxu0
  %v824 = vadd.f32 %v709, %v823
  %v825 = vpop.f32.mrb[0].mxu0
  %826 = vmatprep.mubr.f32.mxu0 0.0
  %v827 = vand.u32 %v80, 4294901760
  %828 = vmatmul.mubr.f32.gmra.mrb[0].mxu0 %v827
  %v829 = vpop.f32.mrb[0].mxu0
  %v830 = vadd.f32 %v715, %v829
  %v831 = vpop.f32.mrb[0].mxu0
  %832 = vmatprep.mubr.f32.mxu0 0.0
  %v833 = vand.u32 %v83, 4294901760
  %834 = vmatmul.mubr.f32.gmra.mrb[0].mxu0 %v833
  %v835 = vpop.f32.mrb[0].mxu0
  %v836 = vadd.f32 %v721, %v835
  %v837 = vpop.f32.mrb[0].mxu0
  %838 = vmatprep.mubr.f32.mxu0 0.0
  %v839 = vand.u32 %v86, 4294901760
  %840 = vmatmul.mubr.f32.gmra.mrb[0].mxu0 %v839
  %v841 = vpop.f32.mrb[0].mxu0
  %v842 = vadd.f32 %v727, %v841
  %v843 = vpop.f32.mrb[0].mxu0
  %844 = vmatprep.mubr.f32.mxu0 0.0
  %v845 = vand.u32 %v89, 4294901760
  %846 = vmatmul.mubr.f32.gmra.mrb[0].mxu0 %v845
  %v847 = vpop.f32.mrb[0].mxu0
  %v848 = vadd.f32 %v733, %v847
  %v849 = vpop.f32.mrb[0].mxu0
  %850 = vmatprep.mubr.f32.mxu0 0.0
  %v851 = vand.u32 %v92, 4294901760
  %852 = vmatmul.mubr.f32.gmra.mrb[0].mxu0 %v851
  %v853 = vpop.f32.mrb[0].mxu0
  %v854 = vadd.f32 %v739, %v853
  %v855 = vpop.f32.mrb[0].mxu0
  %856 = vmatprep.mubr.f32.mxu0 0.0
  %v857 = vand.u32 %v95, 4294901760
  %858 = vmatmul.mubr.f32.gmra.mrb[0].mxu0 %v857
  %v859 = vpop.f32.mrb[0].mxu0
  %v860 = vadd.f32 %v745, %v859
  %v861 = vpop.f32.mrb[0].mxu0
  %862 = vdwg.mxu0
  %v863 = vmax.f32 %v818, 0.0
  %v864 = vmax.f32 %v824, 0.0
  %v865 = vmax.f32 %v830, 0.0
  %v866 = vmax.f32 %v836, 0.0
  %v867 = vmax.f32 %v842, 0.0
  %v868 = vmax.f32 %v848, 0.0
  %v869 = vmax.f32 %v854, 0.0
  %v870 = vmax.f32 %v860, 0.0
  %s871 = scalar_lea.vmem %s1, 64
  %v872 = vld [vmem:[%s871] sm:$0xff]
  %v873 = vld [vmem:[%s871 + $0x8] sm:$0xff]
  %v874 = vld [vmem:[%s871 + $0x10] sm:$0xff]
  %v875 = vld [vmem:[%s871 + $0x18] sm:$0xff]
  %v876 = vld [vmem:[%s871 + $0x20] sm:$0xff]
  %v877 = vld [vmem:[%s871 + $0x28] sm:$0xff]
  %v878 = vld [vmem:[%s871 + $0x30] sm:$0xff]
  %v879 = vld [vmem:[%s871 + $0x38] sm:$0xff]
  %s880 = scalar_lea.vmem %s2, 64
  %v881 = vld [vmem:[%s880] sm:$0xff]
  %v882 = vld [vmem:[%s880 + $0x8] sm:$0xff]
  %v883 = vld [vmem:[%s880 + $0x10] sm:$0xff]
  %v884 = vld [vmem:[%s880 + $0x18] sm:$0xff]
  %v885 = vld [vmem:[%s880 + $0x20] sm:$0xff]
  %v886 = vld [vmem:[%s880 + $0x28] sm:$0xff]
  %v887 = vld [vmem:[%s880 + $0x30] sm:$0xff]
  %v888 = vld [vmem:[%s880 + $0x38] sm:$0xff]
  %890 = vset.pattern.permute.xlu0 0
  %891 = vperm.xlu0 %890, %v881
  %v892 = vpop.permute.xlu0 %891
  %895 = vset.pattern.permute.xlu0 0
  %896 = vperm.xlu0 %895, %v882
  %v897 = vpop.permute.xlu0 %896
  %900 = vset.pattern.permute.xlu0 0
  %901 = vperm.xlu0 %900, %v883
  %v902 = vpop.permute.xlu0 %901
  %905 = vset.pattern.permute.xlu0 0
  %906 = vperm.xlu0 %905, %v884
  %v907 = vpop.permute.xlu0 %906
  %910 = vset.pattern.permute.xlu0 0
  %911 = vperm.xlu0 %910, %v885
  %v912 = vpop.permute.xlu0 %911
  %915 = vset.pattern.permute.xlu0 0
  %916 = vperm.xlu0 %915, %v886
  %v917 = vpop.permute.xlu0 %916
  %920 = vset.pattern.permute.xlu0 0
  %921 = vperm.xlu0 %920, %v887
  %v922 = vpop.permute.xlu0 %921
  %925 = vset.pattern.permute.xlu0 0
  %926 = vperm.xlu0 %925, %v888
  %v927 = vpop.permute.xlu0 %926
  %vm929 = vcmask 523264
  %v931 = vsel %vm929, %v872, 0
  %v934 = vsel %vm929, %v873, 0
  %v937 = vsel %vm929, %v874, 0
  %v940 = vsel %vm929, %v875, 0
  %v943 = vsel %vm929, %v876, 0
  %v946 = vsel %vm929, %v877, 0
  %v949 = vsel %vm929, %v878, 0
  %v952 = vsel %vm929, %v879, 0
  %954 = vmatprep.subr.mxu0 0.0
  %v955 = vand.u32 %v863, 4294901760
  %956 = vmatpush1.msra.mxu0 %v955
  %957 = vmatprep.subr.mxu0 0.0
  %v958 = vand.u32 %v864, 4294901760
  %959 = vmatpush1.msra.mxu0 %v958
  %960 = vmatprep.subr.mxu0 0.0
  %v961 = vand.u32 %v865, 4294901760
  %962 = vmatpush1.msra.mxu0 %v961
  %963 = vmatprep.subr.mxu0 0.0
  %v964 = vand.u32 %v866, 4294901760
  %965 = vmatpush1.msra.mxu0 %v964
  %966 = vmatprep.subr.mxu0 0.0
  %v967 = vand.u32 %v867, 4294901760
  %968 = vmatpush1.msra.mxu0 %v967
  %969 = vmatprep.subr.mxu0 0.0
  %v970 = vand.u32 %v868, 4294901760
  %971 = vmatpush1.msra.mxu0 %v970
  %972 = vmatprep.subr.mxu0 0.0
  %v973 = vand.u32 %v869, 4294901760
  %974 = vmatpush1.msra.mxu0 %v973
  %975 = vmatprep.subr.mxu0 0.0
  %v976 = vand.u32 %v870, 4294901760
  %977 = vmatpush1.msra.mxu0 %v976
  %978 = vmatprep.subr.mxu0 0.0
  %979 = vmatpush1.msra.mxu0 0.0
  %980 = vmatprep.subr.mxu0 0.0
  %981 = vmatpush1.msra.mxu0 0.0
  %982 = vmatprep.subr.mxu0 0.0
  %983 = vmatpush1.msra.mxu0 0.0
  %984 = vmatprep.subr.mxu0 0.0
  %985 = vmatpush1.msra.mxu0 0.0
  %986 = vmatprep.subr.mxu0 0.0
  %987 = vmatpush1.msra.mxu0 0.0
  %988 = vmatprep.subr.mxu0 0.0
  %989 = vmatpush1.msra.mxu0 0.0
  %990 = vmatprep.subr.mxu0 0.0
  %991 = vmatpush1.msra.mxu0 0.0
  %992 = vmatprep.subr.mxu0 0.0
  %993 = vmatpush1.msra.mxu0 0.0
  %994 = vmatprep.subr.mxu0 0.0
  %995 = vmatpush1.msra.mxu0 0.0
  %996 = vmatprep.subr.mxu0 0.0
  %997 = vmatpush1.msra.mxu0 0.0
  %998 = vmatprep.subr.mxu0 0.0
  %999 = vmatpush1.msra.mxu0 0.0
  %1000 = vmatprep.subr.mxu0 0.0
  %1001 = vmatpush1.msra.mxu0 0.0
  %1002 = vmatprep.subr.mxu0 0.0
  %1003 = vmatpush1.msra.mxu0 0.0
  %1004 = vmatprep.subr.mxu0 0.0
  %1005 = vmatpush1.msra.mxu0 0.0
  %1006 = vmatprep.subr.mxu0 0.0
  %1007 = vmatpush1.msra.mxu0 0.0
  %1008 = vmatprep.subr.mxu0 0.0
  %1009 = vmatpush1.msra.mxu0 0.0
  %1010 = vmatprep.subr.mxu0 0.0
  %1011 = vmatpush1.msra.mxu0 0.0
  %1012 = vmatprep.subr.mxu0 0.0
  %1013 = vmatpush1.msra.mxu0 0.0
  %1014 = vmatprep.subr.mxu0 0.0
  %1015 = vmatpush1.msra.mxu0 0.0
  %1016 = vmatprep.subr.mxu0 0.0
  %1017 = vmatpush1.msra.mxu0 0.0
  %1018 = vmatprep.subr.mxu0 0.0
  %1019 = vmatpush1.msra.mxu0 0.0
  %1020 = vmatprep.subr.mxu0 0.0
  %1021 = vmatpush1.msra.mxu0 0.0
  %1022 = vmatprep.subr.mxu0 0.0
  %1023 = vmatpush1.msra.mxu0 0.0
  %1024 = vmatprep.subr.mxu0 0.0
  %1025 = vmatpush1.msra.mxu0 0.0
  %1026 = vmatprep.mubr.f32.mxu0 0.0
  %v1027 = vand.u32 %v931, 4294901760
  %v1028 = vsub.f32 %v931, %v1027
  %v1029 = vand.u32 %v1028, 4294901760
  %v1030 = vsub.f32 %v1028, %v1029
  %v1031 = vand.u32 %v1030, 4294901760
  %1032 = vmatmul.mubr.f32.gmra.mrb[0].mxu0 %v1031
  %v1033 = vpop.f32.mrb[0].mxu0
  %v1034 = vadd.f32 %v892, %v1033
  %v1035 = vpop.f32.mrb[0].mxu0
  %1036 = vmatprep.mubr.f32.mxu0 0.0
  %v1037 = vand.u32 %v934, 4294901760
  %v1038 = vsub.f32 %v934, %v1037
  %v1039 = vand.u32 %v1038, 4294901760
  %v1040 = vsub.f32 %v1038, %v1039
  %v1041 = vand.u32 %v1040, 4294901760
  %1042 = vmatmul.mubr.f32.gmra.mrb[0].mxu0 %v1041
  %v1043 = vpop.f32.mrb[0].mxu0
  %v1044 = vadd.f32 %v897, %v1043
  %v1045 = vpop.f32.mrb[0].mxu0
  %1046 = vmatprep.mubr.f32.mxu0 0.0
  %v1047 = vand.u32 %v937, 4294901760
  %v1048 = vsub.f32 %v937, %v1047
  %v1049 = vand.u32 %v1048, 4294901760
  %v1050 = vsub.f32 %v1048, %v1049
  %v1051 = vand.u32 %v1050, 4294901760
  %1052 = vmatmul.mubr.f32.gmra.mrb[0].mxu0 %v1051
  %v1053 = vpop.f32.mrb[0].mxu0
  %v1054 = vadd.f32 %v902, %v1053
  %v1055 = vpop.f32.mrb[0].mxu0
  %1056 = vmatprep.mubr.f32.mxu0 0.0
  %v1057 = vand.u32 %v940, 4294901760
  %v1058 = vsub.f32 %v940, %v1057
  %v1059 = vand.u32 %v1058, 4294901760
  %v1060 = vsub.f32 %v1058, %v1059
  %v1061 = vand.u32 %v1060, 4294901760
  %1062 = vmatmul.mubr.f32.gmra.mrb[0].mxu0 %v1061
  %v1063 = vpop.f32.mrb[0].mxu0
  %v1064 = vadd.f32 %v907, %v1063
  %v1065 = vpop.f32.mrb[0].mxu0
  %1066 = vmatprep.mubr.f32.mxu0 0.0
  %v1067 = vand.u32 %v943, 4294901760
  %v1068 = vsub.f32 %v943, %v1067
  %v1069 = vand.u32 %v1068, 4294901760
  %v1070 = vsub.f32 %v1068, %v1069
  %v1071 = vand.u32 %v1070, 4294901760
  %1072 = vmatmul.mubr.f32.gmra.mrb[0].mxu0 %v1071
  %v1073 = vpop.f32.mrb[0].mxu0
  %v1074 = vadd.f32 %v912, %v1073
  %v1075 = vpop.f32.mrb[0].mxu0
  %1076 = vmatprep.mubr.f32.mxu0 0.0
  %v1077 = vand.u32 %v946, 4294901760
  %v1078 = vsub.f32 %v946, %v1077
  %v1079 = vand.u32 %v1078, 4294901760
  %v1080 = vsub.f32 %v1078, %v1079
  %v1081 = vand.u32 %v1080, 4294901760
  %1082 = vmatmul.mubr.f32.gmra.mrb[0].mxu0 %v1081
  %v1083 = vpop.f32.mrb[0].mxu0
  %v1084 = vadd.f32 %v917, %v1083
  %v1085 = vpop.f32.mrb[0].mxu0
  %1086 = vmatprep.mubr.f32.mxu0 0.0
  %v1087 = vand.u32 %v949, 4294901760
  %v1088 = vsub.f32 %v949, %v1087
  %v1089 = vand.u32 %v1088, 4294901760
  %v1090 = vsub.f32 %v1088, %v1089
  %v1091 = vand.u32 %v1090, 4294901760
  %1092 = vmatmul.mubr.f32.gmra.mrb[0].mxu0 %v1091
  %v1093 = vpop.f32.mrb[0].mxu0
  %v1094 = vadd.f32 %v922, %v1093
  %v1095 = vpop.f32.mrb[0].mxu0
  %1096 = vmatprep.mubr.f32.mxu0 0.0
  %v1097 = vand.u32 %v952, 4294901760
  %v1098 = vsub.f32 %v952, %v1097
  %v1099 = vand.u32 %v1098, 4294901760
  %v1100 = vsub.f32 %v1098, %v1099
  %v1101 = vand.u32 %v1100, 4294901760
  %1102 = vmatmul.mubr.f32.gmra.mrb[0].mxu0 %v1101
  %v1103 = vpop.f32.mrb[0].mxu0
  %v1104 = vadd.f32 %v927, %v1103
  %v1105 = vpop.f32.mrb[0].mxu0
  %1106 = vdwg.mxu0
  %1107 = vmatprep.subr.mxu0 0.0
  %v1108 = vand.u32 %v863, 4294901760
  %v1109 = vsub.f32 %v863, %v1108
  %v1110 = vand.u32 %v1109, 4294901760
  %v1111 = vsub.f32 %v1109, %v1110
  %v1112 = vand.u32 %v1111, 4294901760
  %1113 = vmatpush1.msra.mxu0 %v1112
  %1114 = vmatprep.subr.mxu0 0.0
  %v1115 = vand.u32 %v864, 4294901760
  %v1116 = vsub.f32 %v864, %v1115
  %v1117 = vand.u32 %v1116, 4294901760
  %v1118 = vsub.f32 %v1116, %v1117
  %v1119 = vand.u32 %v1118, 4294901760
  %1120 = vmatpush1.msra.mxu0 %v1119
  %1121 = vmatprep.subr.mxu0 0.0
  %v1122 = vand.u32 %v865, 4294901760
  %v1123 = vsub.f32 %v865, %v1122
  %v1124 = vand.u32 %v1123, 4294901760
  %v1125 = vsub.f32 %v1123, %v1124
  %v1126 = vand.u32 %v1125, 4294901760
  %1127 = vmatpush1.msra.mxu0 %v1126
  %1128 = vmatprep.subr.mxu0 0.0
  %v1129 = vand.u32 %v866, 4294901760
  %v1130 = vsub.f32 %v866, %v1129
  %v1131 = vand.u32 %v1130, 4294901760
  %v1132 = vsub.f32 %v1130, %v1131
  %v1133 = vand.u32 %v1132, 4294901760
  %1134 = vmatpush1.msra.mxu0 %v1133
  %1135 = vmatprep.subr.mxu0 0.0
  %v1136 = vand.u32 %v867, 4294901760
  %v1137 = vsub.f32 %v867, %v1136
  %v1138 = vand.u32 %v1137, 4294901760
  %v1139 = vsub.f32 %v1137, %v1138
  %v1140 = vand.u32 %v1139, 4294901760
  %1141 = vmatpush1.msra.mxu0 %v1140
  %1142 = vmatprep.subr.mxu0 0.0
  %v1143 = vand.u32 %v868, 4294901760
  %v1144 = vsub.f32 %v868, %v1143
  %v1145 = vand.u32 %v1144, 4294901760
  %v1146 = vsub.f32 %v1144, %v1145
  %v1147 = vand.u32 %v1146, 4294901760
  %1148 = vmatpush1.msra.mxu0 %v1147
  %1149 = vmatprep.subr.mxu0 0.0
  %v1150 = vand.u32 %v869, 4294901760
  %v1151 = vsub.f32 %v869, %v1150
  %v1152 = vand.u32 %v1151, 4294901760
  %v1153 = vsub.f32 %v1151, %v1152
  %v1154 = vand.u32 %v1153, 4294901760
  %1155 = vmatpush1.msra.mxu0 %v1154
  %1156 = vmatprep.subr.mxu0 0.0
  %v1157 = vand.u32 %v870, 4294901760
  %v1158 = vsub.f32 %v870, %v1157
  %v1159 = vand.u32 %v1158, 4294901760
  %v1160 = vsub.f32 %v1158, %v1159
  %v1161 = vand.u32 %v1160, 4294901760
  %1162 = vmatpush1.msra.mxu0 %v1161
  %1163 = vmatprep.subr.mxu0 0.0
  %1164 = vmatpush1.msra.mxu0 0.0
  %1165 = vmatprep.subr.mxu0 0.0
  %1166 = vmatpush1.msra.mxu0 0.0
  %1167 = vmatprep.subr.mxu0 0.0
  %1168 = vmatpush1.msra.mxu0 0.0
  %1169 = vmatprep.subr.mxu0 0.0
  %1170 = vmatpush1.msra.mxu0 0.0
  %1171 = vmatprep.subr.mxu0 0.0
  %1172 = vmatpush1.msra.mxu0 0.0
  %1173 = vmatprep.subr.mxu0 0.0
  %1174 = vmatpush1.msra.mxu0 0.0
  %1175 = vmatprep.subr.mxu0 0.0
  %1176 = vmatpush1.msra.mxu0 0.0
  %1177 = vmatprep.subr.mxu0 0.0
  %1178 = vmatpush1.msra.mxu0 0.0
  %1179 = vmatprep.subr.mxu0 0.0
  %1180 = vmatpush1.msra.mxu0 0.0
  %1181 = vmatprep.subr.mxu0 0.0
  %1182 = vmatpush1.msra.mxu0 0.0
  %1183 = vmatprep.subr.mxu0 0.0
  %1184 = vmatpush1.msra.mxu0 0.0
  %1185 = vmatprep.subr.mxu0 0.0
  %1186 = vmatpush1.msra.mxu0 0.0
  %1187 = vmatprep.subr.mxu0 0.0
  %1188 = vmatpush1.msra.mxu0 0.0
  %1189 = vmatprep.subr.mxu0 0.0
  %1190 = vmatpush1.msra.mxu0 0.0
  %1191 = vmatprep.subr.mxu0 0.0
  %1192 = vmatpush1.msra.mxu0 0.0
  %1193 = vmatprep.subr.mxu0 0.0
  %1194 = vmatpush1.msra.mxu0 0.0
  %1195 = vmatprep.subr.mxu0 0.0
  %1196 = vmatpush1.msra.mxu0 0.0
  %1197 = vmatprep.subr.mxu0 0.0
  %1198 = vmatpush1.msra.mxu0 0.0
  %1199 = vmatprep.subr.mxu0 0.0
  %1200 = vmatpush1.msra.mxu0 0.0
  %1201 = vmatprep.subr.mxu0 0.0
  %1202 = vmatpush1.msra.mxu0 0.0
  %1203 = vmatprep.subr.mxu0 0.0
  %1204 = vmatpush1.msra.mxu0 0.0
  %1205 = vmatprep.subr.mxu0 0.0
  %1206 = vmatpush1.msra.mxu0 0.0
  %1207 = vmatprep.subr.mxu0 0.0
  %1208 = vmatpush1.msra.mxu0 0.0
  %1209 = vmatprep.subr.mxu0 0.0
  %1210 = vmatpush1.msra.mxu0 0.0
  %1211 = vmatprep.mubr.f32.mxu0 0.0
  %v1212 = vand.u32 %v931, 4294901760
  %1213 = vmatmul.mubr.f32.gmra.mrb[0].mxu0 %v1212
  %v1214 = vpop.f32.mrb[0].mxu0
  %v1215 = vadd.f32 %v1034, %v1214
  %v1216 = vpop.f32.mrb[0].mxu0
  %1217 = vmatprep.mubr.f32.mxu0 0.0
  %v1218 = vand.u32 %v934, 4294901760
  %1219 = vmatmul.mubr.f32.gmra.mrb[0].mxu0 %v1218
  %v1220 = vpop.f32.mrb[0].mxu0
  %v1221 = vadd.f32 %v1044, %v1220
  %v1222 = vpop.f32.mrb[0].mxu0
  %1223 = vmatprep.mubr.f32.mxu0 0.0
  %v1224 = vand.u32 %v937, 4294901760
  %1225 = vmatmul.mubr.f32.gmra.mrb[0].mxu0 %v1224
  %v1226 = vpop.f32.mrb[0].mxu0
  %v1227 = vadd.f32 %v1054, %v1226
  %v1228 = vpop.f32.mrb[0].mxu0
  %1229 = vmatprep.mubr.f32.mxu0 0.0
  %v1230 = vand.u32 %v940, 4294901760
  %1231 = vmatmul.mubr.f32.gmra.mrb[0].mxu0 %v1230
  %v1232 = vpop.f32.mrb[0].mxu0
  %v1233 = vadd.f32 %v1064, %v1232
  %v1234 = vpop.f32.mrb[0].mxu0
  %1235 = vmatprep.mubr.f32.mxu0 0.0
  %v1236 = vand.u32 %v943, 4294901760
  %1237 = vmatmul.mubr.f32.gmra.mrb[0].mxu0 %v1236
  %v1238 = vpop.f32.mrb[0].mxu0
  %v1239 = vadd.f32 %v1074, %v1238
  %v1240 = vpop.f32.mrb[0].mxu0
  %1241 = vmatprep.mubr.f32.mxu0 0.0
  %v1242 = vand.u32 %v946, 4294901760
  %1243 = vmatmul.mubr.f32.gmra.mrb[0].mxu0 %v1242
  %v1244 = vpop.f32.mrb[0].mxu0
  %v1245 = vadd.f32 %v1084, %v1244
  %v1246 = vpop.f32.mrb[0].mxu0
  %1247 = vmatprep.mubr.f32.mxu0 0.0
  %v1248 = vand.u32 %v949, 4294901760
  %1249 = vmatmul.mubr.f32.gmra.mrb[0].mxu0 %v1248
  %v1250 = vpop.f32.mrb[0].mxu0
  %v1251 = vadd.f32 %v1094, %v1250
  %v1252 = vpop.f32.mrb[0].mxu0
  %1253 = vmatprep.mubr.f32.mxu0 0.0
  %v1254 = vand.u32 %v952, 4294901760
  %1255 = vmatmul.mubr.f32.gmra.mrb[0].mxu0 %v1254
  %v1256 = vpop.f32.mrb[0].mxu0
  %v1257 = vadd.f32 %v1104, %v1256
  %v1258 = vpop.f32.mrb[0].mxu0
  %1259 = vdwg.mxu0
  %1260 = vmatprep.subr.mxu0 0.0
  %v1261 = vand.u32 %v863, 4294901760
  %v1262 = vsub.f32 %v863, %v1261
  %1263 = vmatpush1.msra.mxu0 %v1262
  %1264 = vmatprep.subr.mxu0 0.0
  %v1265 = vand.u32 %v864, 4294901760
  %v1266 = vsub.f32 %v864, %v1265
  %1267 = vmatpush1.msra.mxu0 %v1266
  %1268 = vmatprep.subr.mxu0 0.0
  %v1269 = vand.u32 %v865, 4294901760
  %v1270 = vsub.f32 %v865, %v1269
  %1271 = vmatpush1.msra.mxu0 %v1270
  %1272 = vmatprep.subr.mxu0 0.0
  %v1273 = vand.u32 %v866, 4294901760
  %v1274 = vsub.f32 %v866, %v1273
  %1275 = vmatpush1.msra.mxu0 %v1274
  %1276 = vmatprep.subr.mxu0 0.0
  %v1277 = vand.u32 %v867, 4294901760
  %v1278 = vsub.f32 %v867, %v1277
  %1279 = vmatpush1.msra.mxu0 %v1278
  %1280 = vmatprep.subr.mxu0 0.0
  %v1281 = vand.u32 %v868, 4294901760
  %v1282 = vsub.f32 %v868, %v1281
  %1283 = vmatpush1.msra.mxu0 %v1282
  %1284 = vmatprep.subr.mxu0 0.0
  %v1285 = vand.u32 %v869, 4294901760
  %v1286 = vsub.f32 %v869, %v1285
  %1287 = vmatpush1.msra.mxu0 %v1286
  %1288 = vmatprep.subr.mxu0 0.0
  %v1289 = vand.u32 %v870, 4294901760
  %v1290 = vsub.f32 %v870, %v1289
  %1291 = vmatpush1.msra.mxu0 %v1290
  %1292 = vmatprep.subr.mxu0 0.0
  %1293 = vmatpush1.msra.mxu0 0.0
  %1294 = vmatprep.subr.mxu0 0.0
  %1295 = vmatpush1.msra.mxu0 0.0
  %1296 = vmatprep.subr.mxu0 0.0
  %1297 = vmatpush1.msra.mxu0 0.0
  %1298 = vmatprep.subr.mxu0 0.0
  %1299 = vmatpush1.msra.mxu0 0.0
  %1300 = vmatprep.subr.mxu0 0.0
  %1301 = vmatpush1.msra.mxu0 0.0
  %1302 = vmatprep.subr.mxu0 0.0
  %1303 = vmatpush1.msra.mxu0 0.0
  %1304 = vmatprep.subr.mxu0 0.0
  %1305 = vmatpush1.msra.mxu0 0.0
  %1306 = vmatprep.subr.mxu0 0.0
  %1307 = vmatpush1.msra.mxu0 0.0
  %1308 = vmatprep.subr.mxu0 0.0
  %1309 = vmatpush1.msra.mxu0 0.0
  %1310 = vmatprep.subr.mxu0 0.0
  %1311 = vmatpush1.msra.mxu0 0.0
  %1312 = vmatprep.subr.mxu0 0.0
  %1313 = vmatpush1.msra.mxu0 0.0
  %1314 = vmatprep.subr.mxu0 0.0
  %1315 = vmatpush1.msra.mxu0 0.0
  %1316 = vmatprep.subr.mxu0 0.0
  %1317 = vmatpush1.msra.mxu0 0.0
  %1318 = vmatprep.subr.mxu0 0.0
  %1319 = vmatpush1.msra.mxu0 0.0
  %1320 = vmatprep.subr.mxu0 0.0
  %1321 = vmatpush1.msra.mxu0 0.0
  %1322 = vmatprep.subr.mxu0 0.0
  %1323 = vmatpush1.msra.mxu0 0.0
  %1324 = vmatprep.subr.mxu0 0.0
  %1325 = vmatpush1.msra.mxu0 0.0
  %1326 = vmatprep.subr.mxu0 0.0
  %1327 = vmatpush1.msra.mxu0 0.0
  %1328 = vmatprep.subr.mxu0 0.0
  %1329 = vmatpush1.msra.mxu0 0.0
  %1330 = vmatprep.subr.mxu0 0.0
  %1331 = vmatpush1.msra.mxu0 0.0
  %1332 = vmatprep.subr.mxu0 0.0
  %1333 = vmatpush1.msra.mxu0 0.0
  %1334 = vmatprep.subr.mxu0 0.0
  %1335 = vmatpush1.msra.mxu0 0.0
  %1336 = vmatprep.subr.mxu0 0.0
  %1337 = vmatpush1.msra.mxu0 0.0
  %1338 = vmatprep.subr.mxu0 0.0
  %1339 = vmatpush1.msra.mxu0 0.0
  %1340 = vmatprep.mubr.f32.mxu0 0.0
  %v1341 = vand.u32 %v931, 4294901760
  %v1342 = vsub.f32 %v931, %v1341
  %1343 = vmatmul.mubr.f32.gmra.mrb[0].mxu0 %v1342
  %v1344 = vpop.f32.mrb[0].mxu0
  %v1345 = vadd.f32 %v1215, %v1344
  %v1346 = vpop.f32.mrb[0].mxu0
  %1347 = vmatprep.mubr.f32.mxu0 0.0
  %v1348 = vand.u32 %v934, 4294901760
  %v1349 = vsub.f32 %v934, %v1348
  %1350 = vmatmul.mubr.f32.gmra.mrb[0].mxu0 %v1349
  %v1351 = vpop.f32.mrb[0].mxu0
  %v1352 = vadd.f32 %v1221, %v1351
  %v1353 = vpop.f32.mrb[0].mxu0
  %1354 = vmatprep.mubr.f32.mxu0 0.0
  %v1355 = vand.u32 %v937, 4294901760
  %v1356 = vsub.f32 %v937, %v1355
  %1357 = vmatmul.mubr.f32.gmra.mrb[0].mxu0 %v1356
  %v1358 = vpop.f32.mrb[0].mxu0
  %v1359 = vadd.f32 %v1227, %v1358
  %v1360 = vpop.f32.mrb[0].mxu0
  %1361 = vmatprep.mubr.f32.mxu0 0.0
  %v1362 = vand.u32 %v940, 4294901760
  %v1363 = vsub.f32 %v940, %v1362
  %1364 = vmatmul.mubr.f32.gmra.mrb[0].mxu0 %v1363
  %v1365 = vpop.f32.mrb[0].mxu0
  %v1366 = vadd.f32 %v1233, %v1365
  %v1367 = vpop.f32.mrb[0].mxu0
  %1368 = vmatprep.mubr.f32.mxu0 0.0
  %v1369 = vand.u32 %v943, 4294901760
  %v1370 = vsub.f32 %v943, %v1369
  %1371 = vmatmul.mubr.f32.gmra.mrb[0].mxu0 %v1370
  %v1372 = vpop.f32.mrb[0].mxu0
  %v1373 = vadd.f32 %v1239, %v1372
  %v1374 = vpop.f32.mrb[0].mxu0
  %1375 = vmatprep.mubr.f32.mxu0 0.0
  %v1376 = vand.u32 %v946, 4294901760
  %v1377 = vsub.f32 %v946, %v1376
  %1378 = vmatmul.mubr.f32.gmra.mrb[0].mxu0 %v1377
  %v1379 = vpop.f32.mrb[0].mxu0
  %v1380 = vadd.f32 %v1245, %v1379
  %v1381 = vpop.f32.mrb[0].mxu0
  %1382 = vmatprep.mubr.f32.mxu0 0.0
  %v1383 = vand.u32 %v949, 4294901760
  %v1384 = vsub.f32 %v949, %v1383
  %1385 = vmatmul.mubr.f32.gmra.mrb[0].mxu0 %v1384
  %v1386 = vpop.f32.mrb[0].mxu0
  %v1387 = vadd.f32 %v1251, %v1386
  %v1388 = vpop.f32.mrb[0].mxu0
  %1389 = vmatprep.mubr.f32.mxu0 0.0
  %v1390 = vand.u32 %v952, 4294901760
  %v1391 = vsub.f32 %v952, %v1390
  %1392 = vmatmul.mubr.f32.gmra.mrb[0].mxu0 %v1391
  %v1393 = vpop.f32.mrb[0].mxu0
  %v1394 = vadd.f32 %v1257, %v1393
  %v1395 = vpop.f32.mrb[0].mxu0
  %1396 = vdwg.mxu0
  %1397 = vmatprep.subr.mxu0 0.0
  %v1398 = vand.u32 %v863, 4294901760
  %1399 = vmatpush1.msra.mxu0 %v1398
  %1400 = vmatprep.subr.mxu0 0.0
  %v1401 = vand.u32 %v864, 4294901760
  %1402 = vmatpush1.msra.mxu0 %v1401
  %1403 = vmatprep.subr.mxu0 0.0
  %v1404 = vand.u32 %v865, 4294901760
  %1405 = vmatpush1.msra.mxu0 %v1404
  %1406 = vmatprep.subr.mxu0 0.0
  %v1407 = vand.u32 %v866, 4294901760
  %1408 = vmatpush1.msra.mxu0 %v1407
  %1409 = vmatprep.subr.mxu0 0.0
  %v1410 = vand.u32 %v867, 4294901760
  %1411 = vmatpush1.msra.mxu0 %v1410
  %1412 = vmatprep.subr.mxu0 0.0
  %v1413 = vand.u32 %v868, 4294901760
  %1414 = vmatpush1.msra.mxu0 %v1413
  %1415 = vmatprep.subr.mxu0 0.0
  %v1416 = vand.u32 %v869, 4294901760
  %1417 = vmatpush1.msra.mxu0 %v1416
  %1418 = vmatprep.subr.mxu0 0.0
  %v1419 = vand.u32 %v870, 4294901760
  %1420 = vmatpush1.msra.mxu0 %v1419
  %1421 = vmatprep.subr.mxu0 0.0
  %1422 = vmatpush1.msra.mxu0 0.0
  %1423 = vmatprep.subr.mxu0 0.0
  %1424 = vmatpush1.msra.mxu0 0.0
  %1425 = vmatprep.subr.mxu0 0.0
  %1426 = vmatpush1.msra.mxu0 0.0
  %1427 = vmatprep.subr.mxu0 0.0
  %1428 = vmatpush1.msra.mxu0 0.0
  %1429 = vmatprep.subr.mxu0 0.0
  %1430 = vmatpush1.msra.mxu0 0.0
  %1431 = vmatprep.subr.mxu0 0.0
  %1432 = vmatpush1.msra.mxu0 0.0
  %1433 = vmatprep.subr.mxu0 0.0
  %1434 = vmatpush1.msra.mxu0 0.0
  %1435 = vmatprep.subr.mxu0 0.0
  %1436 = vmatpush1.msra.mxu0 0.0
  %1437 = vmatprep.subr.mxu0 0.0
  %1438 = vmatpush1.msra.mxu0 0.0
  %1439 = vmatprep.subr.mxu0 0.0
  %1440 = vmatpush1.msra.mxu0 0.0
  %1441 = vmatprep.subr.mxu0 0.0
  %1442 = vmatpush1.msra.mxu0 0.0
  %1443 = vmatprep.subr.mxu0 0.0
  %1444 = vmatpush1.msra.mxu0 0.0
  %1445 = vmatprep.subr.mxu0 0.0
  %1446 = vmatpush1.msra.mxu0 0.0
  %1447 = vmatprep.subr.mxu0 0.0
  %1448 = vmatpush1.msra.mxu0 0.0
  %1449 = vmatprep.subr.mxu0 0.0
  %1450 = vmatpush1.msra.mxu0 0.0
  %1451 = vmatprep.subr.mxu0 0.0
  %1452 = vmatpush1.msra.mxu0 0.0
  %1453 = vmatprep.subr.mxu0 0.0
  %1454 = vmatpush1.msra.mxu0 0.0
  %1455 = vmatprep.subr.mxu0 0.0
  %1456 = vmatpush1.msra.mxu0 0.0
  %1457 = vmatprep.subr.mxu0 0.0
  %1458 = vmatpush1.msra.mxu0 0.0
  %1459 = vmatprep.subr.mxu0 0.0
  %1460 = vmatpush1.msra.mxu0 0.0
  %1461 = vmatprep.subr.mxu0 0.0
  %1462 = vmatpush1.msra.mxu0 0.0
  %1463 = vmatprep.subr.mxu0 0.0
  %1464 = vmatpush1.msra.mxu0 0.0
  %1465 = vmatprep.subr.mxu0 0.0
  %1466 = vmatpush1.msra.mxu0 0.0
  %1467 = vmatprep.subr.mxu0 0.0
  %1468 = vmatpush1.msra.mxu0 0.0
  %1469 = vmatprep.mubr.f32.mxu0 0.0
  %v1470 = vand.u32 %v931, 4294901760
  %v1471 = vsub.f32 %v931, %v1470
  %v1472 = vand.u32 %v1471, 4294901760
  %1473 = vmatmul.mubr.f32.gmra.mrb[0].mxu0 %v1472
  %v1474 = vpop.f32.mrb[0].mxu0
  %v1475 = vadd.f32 %v1345, %v1474
  %v1476 = vpop.f32.mrb[0].mxu0
  %1477 = vmatprep.mubr.f32.mxu0 0.0
  %v1478 = vand.u32 %v934, 4294901760
  %v1479 = vsub.f32 %v934, %v1478
  %v1480 = vand.u32 %v1479, 4294901760
  %1481 = vmatmul.mubr.f32.gmra.mrb[0].mxu0 %v1480
  %v1482 = vpop.f32.mrb[0].mxu0
  %v1483 = vadd.f32 %v1352, %v1482
  %v1484 = vpop.f32.mrb[0].mxu0
  %1485 = vmatprep.mubr.f32.mxu0 0.0
  %v1486 = vand.u32 %v937, 4294901760
  %v1487 = vsub.f32 %v937, %v1486
  %v1488 = vand.u32 %v1487, 4294901760
  %1489 = vmatmul.mubr.f32.gmra.mrb[0].mxu0 %v1488
  %v1490 = vpop.f32.mrb[0].mxu0
  %v1491 = vadd.f32 %v1359, %v1490
  %v1492 = vpop.f32.mrb[0].mxu0
  %1493 = vmatprep.mubr.f32.mxu0 0.0
  %v1494 = vand.u32 %v940, 4294901760
  %v1495 = vsub.f32 %v940, %v1494
  %v1496 = vand.u32 %v1495, 4294901760
  %1497 = vmatmul.mubr.f32.gmra.mrb[0].mxu0 %v1496
  %v1498 = vpop.f32.mrb[0].mxu0
  %v1499 = vadd.f32 %v1366, %v1498
  %v1500 = vpop.f32.mrb[0].mxu0
  %1501 = vmatprep.mubr.f32.mxu0 0.0
  %v1502 = vand.u32 %v943, 4294901760
  %v1503 = vsub.f32 %v943, %v1502
  %v1504 = vand.u32 %v1503, 4294901760
  %1505 = vmatmul.mubr.f32.gmra.mrb[0].mxu0 %v1504
  %v1506 = vpop.f32.mrb[0].mxu0
  %v1507 = vadd.f32 %v1373, %v1506
  %v1508 = vpop.f32.mrb[0].mxu0
  %1509 = vmatprep.mubr.f32.mxu0 0.0
  %v1510 = vand.u32 %v946, 4294901760
  %v1511 = vsub.f32 %v946, %v1510
  %v1512 = vand.u32 %v1511, 4294901760
  %1513 = vmatmul.mubr.f32.gmra.mrb[0].mxu0 %v1512
  %v1514 = vpop.f32.mrb[0].mxu0
  %v1515 = vadd.f32 %v1380, %v1514
  %v1516 = vpop.f32.mrb[0].mxu0
  %1517 = vmatprep.mubr.f32.mxu0 0.0
  %v1518 = vand.u32 %v949, 4294901760
  %v1519 = vsub.f32 %v949, %v1518
  %v1520 = vand.u32 %v1519, 4294901760
  %1521 = vmatmul.mubr.f32.gmra.mrb[0].mxu0 %v1520
  %v1522 = vpop.f32.mrb[0].mxu0
  %v1523 = vadd.f32 %v1387, %v1522
  %v1524 = vpop.f32.mrb[0].mxu0
  %1525 = vmatprep.mubr.f32.mxu0 0.0
  %v1526 = vand.u32 %v952, 4294901760
  %v1527 = vsub.f32 %v952, %v1526
  %v1528 = vand.u32 %v1527, 4294901760
  %1529 = vmatmul.mubr.f32.gmra.mrb[0].mxu0 %v1528
  %v1530 = vpop.f32.mrb[0].mxu0
  %v1531 = vadd.f32 %v1394, %v1530
  %v1532 = vpop.f32.mrb[0].mxu0
  %1533 = vdwg.mxu0
  %1534 = vmatprep.subr.mxu0 0.0
  %v1535 = vand.u32 %v863, 4294901760
  %v1536 = vsub.f32 %v863, %v1535
  %v1537 = vand.u32 %v1536, 4294901760
  %1538 = vmatpush1.msra.mxu0 %v1537
  %1539 = vmatprep.subr.mxu0 0.0
  %v1540 = vand.u32 %v864, 4294901760
  %v1541 = vsub.f32 %v864, %v1540
  %v1542 = vand.u32 %v1541, 4294901760
  %1543 = vmatpush1.msra.mxu0 %v1542
  %1544 = vmatprep.subr.mxu0 0.0
  %v1545 = vand.u32 %v865, 4294901760
  %v1546 = vsub.f32 %v865, %v1545
  %v1547 = vand.u32 %v1546, 4294901760
  %1548 = vmatpush1.msra.mxu0 %v1547
  %1549 = vmatprep.subr.mxu0 0.0
  %v1550 = vand.u32 %v866, 4294901760
  %v1551 = vsub.f32 %v866, %v1550
  %v1552 = vand.u32 %v1551, 4294901760
  %1553 = vmatpush1.msra.mxu0 %v1552
  %1554 = vmatprep.subr.mxu0 0.0
  %v1555 = vand.u32 %v867, 4294901760
  %v1556 = vsub.f32 %v867, %v1555
  %v1557 = vand.u32 %v1556, 4294901760
  %1558 = vmatpush1.msra.mxu0 %v1557
  %1559 = vmatprep.subr.mxu0 0.0
  %v1560 = vand.u32 %v868, 4294901760
  %v1561 = vsub.f32 %v868, %v1560
  %v1562 = vand.u32 %v1561, 4294901760
  %1563 = vmatpush1.msra.mxu0 %v1562
  %1564 = vmatprep.subr.mxu0 0.0
  %v1565 = vand.u32 %v869, 4294901760
  %v1566 = vsub.f32 %v869, %v1565
  %v1567 = vand.u32 %v1566, 4294901760
  %1568 = vmatpush1.msra.mxu0 %v1567
  %1569 = vmatprep.subr.mxu0 0.0
  %v1570 = vand.u32 %v870, 4294901760
  %v1571 = vsub.f32 %v870, %v1570
  %v1572 = vand.u32 %v1571, 4294901760
  %1573 = vmatpush1.msra.mxu0 %v1572
  %1574 = vmatprep.subr.mxu0 0.0
  %1575 = vmatpush1.msra.mxu0 0.0
  %1576 = vmatprep.subr.mxu0 0.0
  %1577 = vmatpush1.msra.mxu0 0.0
  %1578 = vmatprep.subr.mxu0 0.0
  %1579 = vmatpush1.msra.mxu0 0.0
  %1580 = vmatprep.subr.mxu0 0.0
  %1581 = vmatpush1.msra.mxu0 0.0
  %1582 = vmatprep.subr.mxu0 0.0
  %1583 = vmatpush1.msra.mxu0 0.0
  %1584 = vmatprep.subr.mxu0 0.0
  %1585 = vmatpush1.msra.mxu0 0.0
  %1586 = vmatprep.subr.mxu0 0.0
  %1587 = vmatpush1.msra.mxu0 0.0
  %1588 = vmatprep.subr.mxu0 0.0
  %1589 = vmatpush1.msra.mxu0 0.0
  %1590 = vmatprep.subr.mxu0 0.0
  %1591 = vmatpush1.msra.mxu0 0.0
  %1592 = vmatprep.subr.mxu0 0.0
  %1593 = vmatpush1.msra.mxu0 0.0
  %1594 = vmatprep.subr.mxu0 0.0
  %1595 = vmatpush1.msra.mxu0 0.0
  %1596 = vmatprep.subr.mxu0 0.0
  %1597 = vmatpush1.msra.mxu0 0.0
  %1598 = vmatprep.subr.mxu0 0.0
  %1599 = vmatpush1.msra.mxu0 0.0
  %1600 = vmatprep.subr.mxu0 0.0
  %1601 = vmatpush1.msra.mxu0 0.0
  %1602 = vmatprep.subr.mxu0 0.0
  %1603 = vmatpush1.msra.mxu0 0.0
  %1604 = vmatprep.subr.mxu0 0.0
  %1605 = vmatpush1.msra.mxu0 0.0
  %1606 = vmatprep.subr.mxu0 0.0
  %1607 = vmatpush1.msra.mxu0 0.0
  %1608 = vmatprep.subr.mxu0 0.0
  %1609 = vmatpush1.msra.mxu0 0.0
  %1610 = vmatprep.subr.mxu0 0.0
  %1611 = vmatpush1.msra.mxu0 0.0
  %1612 = vmatprep.subr.mxu0 0.0
  %1613 = vmatpush1.msra.mxu0 0.0
  %1614 = vmatprep.subr.mxu0 0.0
  %1615 = vmatpush1.msra.mxu0 0.0
  %1616 = vmatprep.subr.mxu0 0.0
  %1617 = vmatpush1.msra.mxu0 0.0
  %1618 = vmatprep.subr.mxu0 0.0
  %1619 = vmatpush1.msra.mxu0 0.0
  %1620 = vmatprep.subr.mxu0 0.0
  %1621 = vmatpush1.msra.mxu0 0.0
  %1622 = vmatprep.mubr.f32.mxu0 0.0
  %v1623 = vand.u32 %v931, 4294901760
  %1624 = vmatmul.mubr.f32.gmra.mrb[0].mxu0 %v1623
  %v1625 = vpop.f32.mrb[0].mxu0
  %v1626 = vadd.f32 %v1475, %v1625
  %v1627 = vpop.f32.mrb[0].mxu0
  %1628 = vmatprep.mubr.f32.mxu0 0.0
  %v1629 = vand.u32 %v934, 4294901760
  %1630 = vmatmul.mubr.f32.gmra.mrb[0].mxu0 %v1629
  %v1631 = vpop.f32.mrb[0].mxu0
  %v1632 = vadd.f32 %v1483, %v1631
  %v1633 = vpop.f32.mrb[0].mxu0
  %1634 = vmatprep.mubr.f32.mxu0 0.0
  %v1635 = vand.u32 %v937, 4294901760
  %1636 = vmatmul.mubr.f32.gmra.mrb[0].mxu0 %v1635
  %v1637 = vpop.f32.mrb[0].mxu0
  %v1638 = vadd.f32 %v1491, %v1637
  %v1639 = vpop.f32.mrb[0].mxu0
  %1640 = vmatprep.mubr.f32.mxu0 0.0
  %v1641 = vand.u32 %v940, 4294901760
  %1642 = vmatmul.mubr.f32.gmra.mrb[0].mxu0 %v1641
  %v1643 = vpop.f32.mrb[0].mxu0
  %v1644 = vadd.f32 %v1499, %v1643
  %v1645 = vpop.f32.mrb[0].mxu0
  %1646 = vmatprep.mubr.f32.mxu0 0.0
  %v1647 = vand.u32 %v943, 4294901760
  %1648 = vmatmul.mubr.f32.gmra.mrb[0].mxu0 %v1647
  %v1649 = vpop.f32.mrb[0].mxu0
  %v1650 = vadd.f32 %v1507, %v1649
  %v1651 = vpop.f32.mrb[0].mxu0
  %1652 = vmatprep.mubr.f32.mxu0 0.0
  %v1653 = vand.u32 %v946, 4294901760
  %1654 = vmatmul.mubr.f32.gmra.mrb[0].mxu0 %v1653
  %v1655 = vpop.f32.mrb[0].mxu0
  %v1656 = vadd.f32 %v1515, %v1655
  %v1657 = vpop.f32.mrb[0].mxu0
  %1658 = vmatprep.mubr.f32.mxu0 0.0
  %v1659 = vand.u32 %v949, 4294901760
  %1660 = vmatmul.mubr.f32.gmra.mrb[0].mxu0 %v1659
  %v1661 = vpop.f32.mrb[0].mxu0
  %v1662 = vadd.f32 %v1523, %v1661
  %v1663 = vpop.f32.mrb[0].mxu0
  %1664 = vmatprep.mubr.f32.mxu0 0.0
  %v1665 = vand.u32 %v952, 4294901760
  %1666 = vmatmul.mubr.f32.gmra.mrb[0].mxu0 %v1665
  %v1667 = vpop.f32.mrb[0].mxu0
  %v1668 = vadd.f32 %v1531, %v1667
  %v1669 = vpop.f32.mrb[0].mxu0
  %1670 = vdwg.mxu0
  %1671 = vmatprep.subr.mxu0 0.0
  %v1672 = vand.u32 %v863, 4294901760
  %1673 = vmatpush1.msra.mxu0 %v1672
  %1674 = vmatprep.subr.mxu0 0.0
  %v1675 = vand.u32 %v864, 4294901760
  %1676 = vmatpush1.msra.mxu0 %v1675
  %1677 = vmatprep.subr.mxu0 0.0
  %v1678 = vand.u32 %v865, 4294901760
  %1679 = vmatpush1.msra.mxu0 %v1678
  %1680 = vmatprep.subr.mxu0 0.0
  %v1681 = vand.u32 %v866, 4294901760
  %1682 = vmatpush1.msra.mxu0 %v1681
  %1683 = vmatprep.subr.mxu0 0.0
  %v1684 = vand.u32 %v867, 4294901760
  %1685 = vmatpush1.msra.mxu0 %v1684
  %1686 = vmatprep.subr.mxu0 0.0
  %v1687 = vand.u32 %v868, 4294901760
  %1688 = vmatpush1.msra.mxu0 %v1687
  %1689 = vmatprep.subr.mxu0 0.0
  %v1690 = vand.u32 %v869, 4294901760
  %1691 = vmatpush1.msra.mxu0 %v1690
  %1692 = vmatprep.subr.mxu0 0.0
  %v1693 = vand.u32 %v870, 4294901760
  %1694 = vmatpush1.msra.mxu0 %v1693
  %1695 = vmatprep.subr.mxu0 0.0
  %1696 = vmatpush1.msra.mxu0 0.0
  %1697 = vmatprep.subr.mxu0 0.0
  %1698 = vmatpush1.msra.mxu0 0.0
  %1699 = vmatprep.subr.mxu0 0.0
  %1700 = vmatpush1.msra.mxu0 0.0
  %1701 = vmatprep.subr.mxu0 0.0
  %1702 = vmatpush1.msra.mxu0 0.0
  %1703 = vmatprep.subr.mxu0 0.0
  %1704 = vmatpush1.msra.mxu0 0.0
  %1705 = vmatprep.subr.mxu0 0.0
  %1706 = vmatpush1.msra.mxu0 0.0
  %1707 = vmatprep.subr.mxu0 0.0
  %1708 = vmatpush1.msra.mxu0 0.0
  %1709 = vmatprep.subr.mxu0 0.0
  %1710 = vmatpush1.msra.mxu0 0.0
  %1711 = vmatprep.subr.mxu0 0.0
  %1712 = vmatpush1.msra.mxu0 0.0
  %1713 = vmatprep.subr.mxu0 0.0
  %1714 = vmatpush1.msra.mxu0 0.0
  %1715 = vmatprep.subr.mxu0 0.0
  %1716 = vmatpush1.msra.mxu0 0.0
  %1717 = vmatprep.subr.mxu0 0.0
  %1718 = vmatpush1.msra.mxu0 0.0
  %1719 = vmatprep.subr.mxu0 0.0
  %1720 = vmatpush1.msra.mxu0 0.0
  %1721 = vmatprep.subr.mxu0 0.0
  %1722 = vmatpush1.msra.mxu0 0.0
  %1723 = vmatprep.subr.mxu0 0.0
  %1724 = vmatpush1.msra.mxu0 0.0
  %1725 = vmatprep.subr.mxu0 0.0
  %1726 = vmatpush1.msra.mxu0 0.0
  %1727 = vmatprep.subr.mxu0 0.0
  %1728 = vmatpush1.msra.mxu0 0.0
  %1729 = vmatprep.subr.mxu0 0.0
  %1730 = vmatpush1.msra.mxu0 0.0
  %1731 = vmatprep.subr.mxu0 0.0
  %1732 = vmatpush1.msra.mxu0 0.0
  %1733 = vmatprep.subr.mxu0 0.0
  %1734 = vmatpush1.msra.mxu0 0.0
  %1735 = vmatprep.subr.mxu0 0.0
  %1736 = vmatpush1.msra.mxu0 0.0
  %1737 = vmatprep.subr.mxu0 0.0
  %1738 = vmatpush1.msra.mxu0 0.0
  %1739 = vmatprep.subr.mxu0 0.0
  %1740 = vmatpush1.msra.mxu0 0.0
  %1741 = vmatprep.subr.mxu0 0.0
  %1742 = vmatpush1.msra.mxu0 0.0
  %1743 = vmatprep.mubr.f32.mxu0 0.0
  %v1744 = vand.u32 %v931, 4294901760
  %1745 = vmatmul.mubr.f32.gmra.mrb[0].mxu0 %v1744
  %v1746 = vpop.f32.mrb[0].mxu0
  %v1747 = vadd.f32 %v1626, %v1746
  %v1748 = vpop.f32.mrb[0].mxu0
  %1749 = vmatprep.mubr.f32.mxu0 0.0
  %v1750 = vand.u32 %v934, 4294901760
  %1751 = vmatmul.mubr.f32.gmra.mrb[0].mxu0 %v1750
  %v1752 = vpop.f32.mrb[0].mxu0
  %v1753 = vadd.f32 %v1632, %v1752
  %v1754 = vpop.f32.mrb[0].mxu0
  %1755 = vmatprep.mubr.f32.mxu0 0.0
  %v1756 = vand.u32 %v937, 4294901760
  %1757 = vmatmul.mubr.f32.gmra.mrb[0].mxu0 %v1756
  %v1758 = vpop.f32.mrb[0].mxu0
  %v1759 = vadd.f32 %v1638, %v1758
  %v1760 = vpop.f32.mrb[0].mxu0
  %1761 = vmatprep.mubr.f32.mxu0 0.0
  %v1762 = vand.u32 %v940, 4294901760
  %1763 = vmatmul.mubr.f32.gmra.mrb[0].mxu0 %v1762
  %v1764 = vpop.f32.mrb[0].mxu0
  %v1765 = vadd.f32 %v1644, %v1764
  %v1766 = vpop.f32.mrb[0].mxu0
  %1767 = vmatprep.mubr.f32.mxu0 0.0
  %v1768 = vand.u32 %v943, 4294901760
  %1769 = vmatmul.mubr.f32.gmra.mrb[0].mxu0 %v1768
  %v1770 = vpop.f32.mrb[0].mxu0
  %v1771 = vadd.f32 %v1650, %v1770
  %v1772 = vpop.f32.mrb[0].mxu0
  %1773 = vmatprep.mubr.f32.mxu0 0.0
  %v1774 = vand.u32 %v946, 4294901760
  %1775 = vmatmul.mubr.f32.gmra.mrb[0].mxu0 %v1774
  %v1776 = vpop.f32.mrb[0].mxu0
  %v1777 = vadd.f32 %v1656, %v1776
  %v1778 = vpop.f32.mrb[0].mxu0
  %1779 = vmatprep.mubr.f32.mxu0 0.0
  %v1780 = vand.u32 %v949, 4294901760
  %1781 = vmatmul.mubr.f32.gmra.mrb[0].mxu0 %v1780
  %v1782 = vpop.f32.mrb[0].mxu0
  %v1783 = vadd.f32 %v1662, %v1782
  %v1784 = vpop.f32.mrb[0].mxu0
  %1785 = vmatprep.mubr.f32.mxu0 0.0
  %v1786 = vand.u32 %v952, 4294901760
  %1787 = vmatmul.mubr.f32.gmra.mrb[0].mxu0 %v1786
  %v1788 = vpop.f32.mrb[0].mxu0
  %v1789 = vadd.f32 %v1668, %v1788
  %v1790 = vpop.f32.mrb[0].mxu0
  %1791 = vdwg.mxu0
  %v1792 = vmax.f32 %v1747, 0.0
  %v1793 = vmax.f32 %v1753, 0.0
  %v1794 = vmax.f32 %v1759, 0.0
  %v1795 = vmax.f32 %v1765, 0.0
  %v1796 = vmax.f32 %v1771, 0.0
  %v1797 = vmax.f32 %v1777, 0.0
  %v1798 = vmax.f32 %v1783, 0.0
  %v1799 = vmax.f32 %v1789, 0.0
  %s1800 = scalar_lea.vmem %s1, 128
  %v1801 = vld [vmem:[%s1800] sm:$0xff]
  %v1802 = vld [vmem:[%s1800 + $0x8] sm:$0xff]
  %v1803 = vld [vmem:[%s1800 + $0x10] sm:$0xff]
  %v1804 = vld [vmem:[%s1800 + $0x18] sm:$0xff]
  %v1805 = vld [vmem:[%s1800 + $0x20] sm:$0xff]
  %v1806 = vld [vmem:[%s1800 + $0x28] sm:$0xff]
  %v1807 = vld [vmem:[%s1800 + $0x30] sm:$0xff]
  %v1808 = vld [vmem:[%s1800 + $0x38] sm:$0xff]
  %s1809 = scalar_lea.vmem %s2, 128
  %v1810 = vld [vmem:[%s1809] sm:$0xff]
  %v1811 = vld [vmem:[%s1809 + $0x8] sm:$0xff]
  %v1812 = vld [vmem:[%s1809 + $0x10] sm:$0xff]
  %v1813 = vld [vmem:[%s1809 + $0x18] sm:$0xff]
  %v1814 = vld [vmem:[%s1809 + $0x20] sm:$0xff]
  %v1815 = vld [vmem:[%s1809 + $0x28] sm:$0xff]
  %v1816 = vld [vmem:[%s1809 + $0x30] sm:$0xff]
  %v1817 = vld [vmem:[%s1809 + $0x38] sm:$0xff]
  %1819 = vset.pattern.permute.xlu0 0
  %1820 = vperm.xlu0 %1819, %v1810
  %v1821 = vpop.permute.xlu0 %1820
  %1824 = vset.pattern.permute.xlu0 0
  %1825 = vperm.xlu0 %1824, %v1811
  %v1826 = vpop.permute.xlu0 %1825
  %1829 = vset.pattern.permute.xlu0 0
  %1830 = vperm.xlu0 %1829, %v1812
  %v1831 = vpop.permute.xlu0 %1830
  %1834 = vset.pattern.permute.xlu0 0
  %1835 = vperm.xlu0 %1834, %v1813
  %v1836 = vpop.permute.xlu0 %1835
  %1839 = vset.pattern.permute.xlu0 0
  %1840 = vperm.xlu0 %1839, %v1814
  %v1841 = vpop.permute.xlu0 %1840
  %1844 = vset.pattern.permute.xlu0 0
  %1845 = vperm.xlu0 %1844, %v1815
  %v1846 = vpop.permute.xlu0 %1845
  %1849 = vset.pattern.permute.xlu0 0
  %1850 = vperm.xlu0 %1849, %v1816
  %v1851 = vpop.permute.xlu0 %1850
  %1854 = vset.pattern.permute.xlu0 0
  %1855 = vperm.xlu0 %1854, %v1817
  %v1856 = vpop.permute.xlu0 %1855
  %v1859 = vsel %vm929, %v1801, 0
  %v1862 = vsel %vm929, %v1802, 0
  %v1865 = vsel %vm929, %v1803, 0
  %v1868 = vsel %vm929, %v1804, 0
  %v1871 = vsel %vm929, %v1805, 0
  %v1874 = vsel %vm929, %v1806, 0
  %v1877 = vsel %vm929, %v1807, 0
  %v1880 = vsel %vm929, %v1808, 0
  %1882 = vmatprep.subr.mxu0 0.0
  %v1883 = vand.u32 %v1792, 4294901760
  %1884 = vmatpush1.msra.mxu0 %v1883
  %1885 = vmatprep.subr.mxu0 0.0
  %v1886 = vand.u32 %v1793, 4294901760
  %1887 = vmatpush1.msra.mxu0 %v1886
  %1888 = vmatprep.subr.mxu0 0.0
  %v1889 = vand.u32 %v1794, 4294901760
  %1890 = vmatpush1.msra.mxu0 %v1889
  %1891 = vmatprep.subr.mxu0 0.0
  %v1892 = vand.u32 %v1795, 4294901760
  %1893 = vmatpush1.msra.mxu0 %v1892
  %1894 = vmatprep.subr.mxu0 0.0
  %v1895 = vand.u32 %v1796, 4294901760
  %1896 = vmatpush1.msra.mxu0 %v1895
  %1897 = vmatprep.subr.mxu0 0.0
  %v1898 = vand.u32 %v1797, 4294901760
  %1899 = vmatpush1.msra.mxu0 %v1898
  %1900 = vmatprep.subr.mxu0 0.0
  %v1901 = vand.u32 %v1798, 4294901760
  %1902 = vmatpush1.msra.mxu0 %v1901
  %1903 = vmatprep.subr.mxu0 0.0
  %v1904 = vand.u32 %v1799, 4294901760
  %1905 = vmatpush1.msra.mxu0 %v1904
  %1906 = vmatprep.subr.mxu0 0.0
  %1907 = vmatpush1.msra.mxu0 0.0
  %1908 = vmatprep.subr.mxu0 0.0
  %1909 = vmatpush1.msra.mxu0 0.0
  %1910 = vmatprep.subr.mxu0 0.0
  %1911 = vmatpush1.msra.mxu0 0.0
  %1912 = vmatprep.subr.mxu0 0.0
  %1913 = vmatpush1.msra.mxu0 0.0
  %1914 = vmatprep.subr.mxu0 0.0
  %1915 = vmatpush1.msra.mxu0 0.0
  %1916 = vmatprep.subr.mxu0 0.0
  %1917 = vmatpush1.msra.mxu0 0.0
  %1918 = vmatprep.subr.mxu0 0.0
  %1919 = vmatpush1.msra.mxu0 0.0
  %1920 = vmatprep.subr.mxu0 0.0
  %1921 = vmatpush1.msra.mxu0 0.0
  %1922 = vmatprep.subr.mxu0 0.0
  %1923 = vmatpush1.msra.mxu0 0.0
  %1924 = vmatprep.subr.mxu0 0.0
  %1925 = vmatpush1.msra.mxu0 0.0
  %1926 = vmatprep.subr.mxu0 0.0
  %1927 = vmatpush1.msra.mxu0 0.0
  %1928 = vmatprep.subr.mxu0 0.0
  %1929 = vmatpush1.msra.mxu0 0.0
  %1930 = vmatprep.subr.mxu0 0.0
  %1931 = vmatpush1.msra.mxu0 0.0
  %1932 = vmatprep.subr.mxu0 0.0
  %1933 = vmatpush1.msra.mxu0 0.0
  %1934 = vmatprep.subr.mxu0 0.0
  %1935 = vmatpush1.msra.mxu0 0.0
  %1936 = vmatprep.subr.mxu0 0.0
  %1937 = vmatpush1.msra.mxu0 0.0
  %1938 = vmatprep.subr.mxu0 0.0
  %1939 = vmatpush1.msra.mxu0 0.0
  %1940 = vmatprep.subr.mxu0 0.0
  %1941 = vmatpush1.msra.mxu0 0.0
  %1942 = vmatprep.subr.mxu0 0.0
  %1943 = vmatpush1.msra.mxu0 0.0
  %1944 = vmatprep.subr.mxu0 0.0
  %1945 = vmatpush1.msra.mxu0 0.0
  %1946 = vmatprep.subr.mxu0 0.0
  %1947 = vmatpush1.msra.mxu0 0.0
  %1948 = vmatprep.subr.mxu0 0.0
  %1949 = vmatpush1.msra.mxu0 0.0
  %1950 = vmatprep.subr.mxu0 0.0
  %1951 = vmatpush1.msra.mxu0 0.0
  %1952 = vmatprep.subr.mxu0 0.0
  %1953 = vmatpush1.msra.mxu0 0.0
  %1954 = vmatprep.mubr.f32.mxu0 0.0
  %v1955 = vand.u32 %v1859, 4294901760
  %v1956 = vsub.f32 %v1859, %v1955
  %v1957 = vand.u32 %v1956, 4294901760
  %v1958 = vsub.f32 %v1956, %v1957
  %v1959 = vand.u32 %v1958, 4294901760
  %1960 = vmatmul.mubr.f32.gmra.mrb[0].mxu0 %v1959
  %v1961 = vpop.f32.mrb[0].mxu0
  %v1962 = vadd.f32 %v1821, %v1961
  %v1963 = vpop.f32.mrb[0].mxu0
  %1964 = vmatprep.mubr.f32.mxu0 0.0
  %v1965 = vand.u32 %v1862, 4294901760
  %v1966 = vsub.f32 %v1862, %v1965
  %v1967 = vand.u32 %v1966, 4294901760
  %v1968 = vsub.f32 %v1966, %v1967
  %v1969 = vand.u32 %v1968, 4294901760
  %1970 = vmatmul.mubr.f32.gmra.mrb[0].mxu0 %v1969
  %v1971 = vpop.f32.mrb[0].mxu0
  %v1972 = vadd.f32 %v1826, %v1971
  %v1973 = vpop.f32.mrb[0].mxu0
  %1974 = vmatprep.mubr.f32.mxu0 0.0
  %v1975 = vand.u32 %v1865, 4294901760
  %v1976 = vsub.f32 %v1865, %v1975
  %v1977 = vand.u32 %v1976, 4294901760
  %v1978 = vsub.f32 %v1976, %v1977
  %v1979 = vand.u32 %v1978, 4294901760
  %1980 = vmatmul.mubr.f32.gmra.mrb[0].mxu0 %v1979
  %v1981 = vpop.f32.mrb[0].mxu0
  %v1982 = vadd.f32 %v1831, %v1981
  %v1983 = vpop.f32.mrb[0].mxu0
  %1984 = vmatprep.mubr.f32.mxu0 0.0
  %v1985 = vand.u32 %v1868, 4294901760
  %v1986 = vsub.f32 %v1868, %v1985
  %v1987 = vand.u32 %v1986, 4294901760
  %v1988 = vsub.f32 %v1986, %v1987
  %v1989 = vand.u32 %v1988, 4294901760
  %1990 = vmatmul.mubr.f32.gmra.mrb[0].mxu0 %v1989
  %v1991 = vpop.f32.mrb[0].mxu0
  %v1992 = vadd.f32 %v1836, %v1991
  %v1993 = vpop.f32.mrb[0].mxu0
  %1994 = vmatprep.mubr.f32.mxu0 0.0
  %v1995 = vand.u32 %v1871, 4294901760
  %v1996 = vsub.f32 %v1871, %v1995
  %v1997 = vand.u32 %v1996, 4294901760
  %v1998 = vsub.f32 %v1996, %v1997
  %v1999 = vand.u32 %v1998, 4294901760
  %2000 = vmatmul.mubr.f32.gmra.mrb[0].mxu0 %v1999
  %v2001 = vpop.f32.mrb[0].mxu0
  %v2002 = vadd.f32 %v1841, %v2001
  %v2003 = vpop.f32.mrb[0].mxu0
  %2004 = vmatprep.mubr.f32.mxu0 0.0
  %v2005 = vand.u32 %v1874, 4294901760
  %v2006 = vsub.f32 %v1874, %v2005
  %v2007 = vand.u32 %v2006, 4294901760
  %v2008 = vsub.f32 %v2006, %v2007
  %v2009 = vand.u32 %v2008, 4294901760
  %2010 = vmatmul.mubr.f32.gmra.mrb[0].mxu0 %v2009
  %v2011 = vpop.f32.mrb[0].mxu0
  %v2012 = vadd.f32 %v1846, %v2011
  %v2013 = vpop.f32.mrb[0].mxu0
  %2014 = vmatprep.mubr.f32.mxu0 0.0
  %v2015 = vand.u32 %v1877, 4294901760
  %v2016 = vsub.f32 %v1877, %v2015
  %v2017 = vand.u32 %v2016, 4294901760
  %v2018 = vsub.f32 %v2016, %v2017
  %v2019 = vand.u32 %v2018, 4294901760
  %2020 = vmatmul.mubr.f32.gmra.mrb[0].mxu0 %v2019
  %v2021 = vpop.f32.mrb[0].mxu0
  %v2022 = vadd.f32 %v1851, %v2021
  %v2023 = vpop.f32.mrb[0].mxu0
  %2024 = vmatprep.mubr.f32.mxu0 0.0
  %v2025 = vand.u32 %v1880, 4294901760
  %v2026 = vsub.f32 %v1880, %v2025
  %v2027 = vand.u32 %v2026, 4294901760
  %v2028 = vsub.f32 %v2026, %v2027
  %v2029 = vand.u32 %v2028, 4294901760
  %2030 = vmatmul.mubr.f32.gmra.mrb[0].mxu0 %v2029
  %v2031 = vpop.f32.mrb[0].mxu0
  %v2032 = vadd.f32 %v1856, %v2031
  %v2033 = vpop.f32.mrb[0].mxu0
  %2034 = vdwg.mxu0
  %2035 = vmatprep.subr.mxu0 0.0
  %v2036 = vand.u32 %v1792, 4294901760
  %v2037 = vsub.f32 %v1792, %v2036
  %v2038 = vand.u32 %v2037, 4294901760
  %v2039 = vsub.f32 %v2037, %v2038
  %v2040 = vand.u32 %v2039, 4294901760
  %2041 = vmatpush1.msra.mxu0 %v2040
  %2042 = vmatprep.subr.mxu0 0.0
  %v2043 = vand.u32 %v1793, 4294901760
  %v2044 = vsub.f32 %v1793, %v2043
  %v2045 = vand.u32 %v2044, 4294901760
  %v2046 = vsub.f32 %v2044, %v2045
  %v2047 = vand.u32 %v2046, 4294901760
  %2048 = vmatpush1.msra.mxu0 %v2047
  %2049 = vmatprep.subr.mxu0 0.0
  %v2050 = vand.u32 %v1794, 4294901760
  %v2051 = vsub.f32 %v1794, %v2050
  %v2052 = vand.u32 %v2051, 4294901760
  %v2053 = vsub.f32 %v2051, %v2052
  %v2054 = vand.u32 %v2053, 4294901760
  %2055 = vmatpush1.msra.mxu0 %v2054
  %2056 = vmatprep.subr.mxu0 0.0
  %v2057 = vand.u32 %v1795, 4294901760
  %v2058 = vsub.f32 %v1795, %v2057
  %v2059 = vand.u32 %v2058, 4294901760
  %v2060 = vsub.f32 %v2058, %v2059
  %v2061 = vand.u32 %v2060, 4294901760
  %2062 = vmatpush1.msra.mxu0 %v2061
  %2063 = vmatprep.subr.mxu0 0.0
  %v2064 = vand.u32 %v1796, 4294901760
  %v2065 = vsub.f32 %v1796, %v2064
  %v2066 = vand.u32 %v2065, 4294901760
  %v2067 = vsub.f32 %v2065, %v2066
  %v2068 = vand.u32 %v2067, 4294901760
  %2069 = vmatpush1.msra.mxu0 %v2068
  %2070 = vmatprep.subr.mxu0 0.0
  %v2071 = vand.u32 %v1797, 4294901760
  %v2072 = vsub.f32 %v1797, %v2071
  %v2073 = vand.u32 %v2072, 4294901760
  %v2074 = vsub.f32 %v2072, %v2073
  %v2075 = vand.u32 %v2074, 4294901760
  %2076 = vmatpush1.msra.mxu0 %v2075
  %2077 = vmatprep.subr.mxu0 0.0
  %v2078 = vand.u32 %v1798, 4294901760
  %v2079 = vsub.f32 %v1798, %v2078
  %v2080 = vand.u32 %v2079, 4294901760
  %v2081 = vsub.f32 %v2079, %v2080
  %v2082 = vand.u32 %v2081, 4294901760
  %2083 = vmatpush1.msra.mxu0 %v2082
  %2084 = vmatprep.subr.mxu0 0.0
  %v2085 = vand.u32 %v1799, 4294901760
  %v2086 = vsub.f32 %v1799, %v2085
  %v2087 = vand.u32 %v2086, 4294901760
  %v2088 = vsub.f32 %v2086, %v2087
  %v2089 = vand.u32 %v2088, 4294901760
  %2090 = vmatpush1.msra.mxu0 %v2089
  %2091 = vmatprep.subr.mxu0 0.0
  %2092 = vmatpush1.msra.mxu0 0.0
  %2093 = vmatprep.subr.mxu0 0.0
  %2094 = vmatpush1.msra.mxu0 0.0
  %2095 = vmatprep.subr.mxu0 0.0
  %2096 = vmatpush1.msra.mxu0 0.0
  %2097 = vmatprep.subr.mxu0 0.0
  %2098 = vmatpush1.msra.mxu0 0.0
  %2099 = vmatprep.subr.mxu0 0.0
  %2100 = vmatpush1.msra.mxu0 0.0
  %2101 = vmatprep.subr.mxu0 0.0
  %2102 = vmatpush1.msra.mxu0 0.0
  %2103 = vmatprep.subr.mxu0 0.0
  %2104 = vmatpush1.msra.mxu0 0.0
  %2105 = vmatprep.subr.mxu0 0.0
  %2106 = vmatpush1.msra.mxu0 0.0
  %2107 = vmatprep.subr.mxu0 0.0
  %2108 = vmatpush1.msra.mxu0 0.0
  %2109 = vmatprep.subr.mxu0 0.0
  %2110 = vmatpush1.msra.mxu0 0.0
  %2111 = vmatprep.subr.mxu0 0.0
  %2112 = vmatpush1.msra.mxu0 0.0
  %2113 = vmatprep.subr.mxu0 0.0
  %2114 = vmatpush1.msra.mxu0 0.0
  %2115 = vmatprep.subr.mxu0 0.0
  %2116 = vmatpush1.msra.mxu0 0.0
  %2117 = vmatprep.subr.mxu0 0.0
  %2118 = vmatpush1.msra.mxu0 0.0
  %2119 = vmatprep.subr.mxu0 0.0
  %2120 = vmatpush1.msra.mxu0 0.0
  %2121 = vmatprep.subr.mxu0 0.0
  %2122 = vmatpush1.msra.mxu0 0.0
  %2123 = vmatprep.subr.mxu0 0.0
  %2124 = vmatpush1.msra.mxu0 0.0
  %2125 = vmatprep.subr.mxu0 0.0
  %2126 = vmatpush1.msra.mxu0 0.0
  %2127 = vmatprep.subr.mxu0 0.0
  %2128 = vmatpush1.msra.mxu0 0.0
  %2129 = vmatprep.subr.mxu0 0.0
  %2130 = vmatpush1.msra.mxu0 0.0
  %2131 = vmatprep.subr.mxu0 0.0
  %2132 = vmatpush1.msra.mxu0 0.0
  %2133 = vmatprep.subr.mxu0 0.0
  %2134 = vmatpush1.msra.mxu0 0.0
  %2135 = vmatprep.subr.mxu0 0.0
  %2136 = vmatpush1.msra.mxu0 0.0
  %2137 = vmatprep.subr.mxu0 0.0
  %2138 = vmatpush1.msra.mxu0 0.0
  %2139 = vmatprep.mubr.f32.mxu0 0.0
  %v2140 = vand.u32 %v1859, 4294901760
  %2141 = vmatmul.mubr.f32.gmra.mrb[0].mxu0 %v2140
  %v2142 = vpop.f32.mrb[0].mxu0
  %v2143 = vadd.f32 %v1962, %v2142
  %v2144 = vpop.f32.mrb[0].mxu0
  %2145 = vmatprep.mubr.f32.mxu0 0.0
  %v2146 = vand.u32 %v1862, 4294901760
  %2147 = vmatmul.mubr.f32.gmra.mrb[0].mxu0 %v2146
  %v2148 = vpop.f32.mrb[0].mxu0
  %v2149 = vadd.f32 %v1972, %v2148
  %v2150 = vpop.f32.mrb[0].mxu0
  %2151 = vmatprep.mubr.f32.mxu0 0.0
  %v2152 = vand.u32 %v1865, 4294901760
  %2153 = vmatmul.mubr.f32.gmra.mrb[0].mxu0 %v2152
  %v2154 = vpop.f32.mrb[0].mxu0
  %v2155 = vadd.f32 %v1982, %v2154
  %v2156 = vpop.f32.mrb[0].mxu0
  %2157 = vmatprep.mubr.f32.mxu0 0.0
  %v2158 = vand.u32 %v1868, 4294901760
  %2159 = vmatmul.mubr.f32.gmra.mrb[0].mxu0 %v2158
  %v2160 = vpop.f32.mrb[0].mxu0
  %v2161 = vadd.f32 %v1992, %v2160
  %v2162 = vpop.f32.mrb[0].mxu0
  %2163 = vmatprep.mubr.f32.mxu0 0.0
  %v2164 = vand.u32 %v1871, 4294901760
  %2165 = vmatmul.mubr.f32.gmra.mrb[0].mxu0 %v2164
  %v2166 = vpop.f32.mrb[0].mxu0
  %v2167 = vadd.f32 %v2002, %v2166
  %v2168 = vpop.f32.mrb[0].mxu0
  %2169 = vmatprep.mubr.f32.mxu0 0.0
  %v2170 = vand.u32 %v1874, 4294901760
  %2171 = vmatmul.mubr.f32.gmra.mrb[0].mxu0 %v2170
  %v2172 = vpop.f32.mrb[0].mxu0
  %v2173 = vadd.f32 %v2012, %v2172
  %v2174 = vpop.f32.mrb[0].mxu0
  %2175 = vmatprep.mubr.f32.mxu0 0.0
  %v2176 = vand.u32 %v1877, 4294901760
  %2177 = vmatmul.mubr.f32.gmra.mrb[0].mxu0 %v2176
  %v2178 = vpop.f32.mrb[0].mxu0
  %v2179 = vadd.f32 %v2022, %v2178
  %v2180 = vpop.f32.mrb[0].mxu0
  %2181 = vmatprep.mubr.f32.mxu0 0.0
  %v2182 = vand.u32 %v1880, 4294901760
  %2183 = vmatmul.mubr.f32.gmra.mrb[0].mxu0 %v2182
  %v2184 = vpop.f32.mrb[0].mxu0
  %v2185 = vadd.f32 %v2032, %v2184
  %v2186 = vpop.f32.mrb[0].mxu0
  %2187 = vdwg.mxu0
  %2188 = vmatprep.subr.mxu0 0.0
  %v2189 = vand.u32 %v1792, 4294901760
  %v2190 = vsub.f32 %v1792, %v2189
  %2191 = vmatpush1.msra.mxu0 %v2190
  %2192 = vmatprep.subr.mxu0 0.0
  %v2193 = vand.u32 %v1793, 4294901760
  %v2194 = vsub.f32 %v1793, %v2193
  %2195 = vmatpush1.msra.mxu0 %v2194
  %2196 = vmatprep.subr.mxu0 0.0
  %v2197 = vand.u32 %v1794, 4294901760
  %v2198 = vsub.f32 %v1794, %v2197
  %2199 = vmatpush1.msra.mxu0 %v2198
  %2200 = vmatprep.subr.mxu0 0.0
  %v2201 = vand.u32 %v1795, 4294901760
  %v2202 = vsub.f32 %v1795, %v2201
  %2203 = vmatpush1.msra.mxu0 %v2202
  %2204 = vmatprep.subr.mxu0 0.0
  %v2205 = vand.u32 %v1796, 4294901760
  %v2206 = vsub.f32 %v1796, %v2205
  %2207 = vmatpush1.msra.mxu0 %v2206
  %2208 = vmatprep.subr.mxu0 0.0
  %v2209 = vand.u32 %v1797, 4294901760
  %v2210 = vsub.f32 %v1797, %v2209
  %2211 = vmatpush1.msra.mxu0 %v2210
  %2212 = vmatprep.subr.mxu0 0.0
  %v2213 = vand.u32 %v1798, 4294901760
  %v2214 = vsub.f32 %v1798, %v2213
  %2215 = vmatpush1.msra.mxu0 %v2214
  %2216 = vmatprep.subr.mxu0 0.0
  %v2217 = vand.u32 %v1799, 4294901760
  %v2218 = vsub.f32 %v1799, %v2217
  %2219 = vmatpush1.msra.mxu0 %v2218
  %2220 = vmatprep.subr.mxu0 0.0
  %2221 = vmatpush1.msra.mxu0 0.0
  %2222 = vmatprep.subr.mxu0 0.0
  %2223 = vmatpush1.msra.mxu0 0.0
  %2224 = vmatprep.subr.mxu0 0.0
  %2225 = vmatpush1.msra.mxu0 0.0
  %2226 = vmatprep.subr.mxu0 0.0
  %2227 = vmatpush1.msra.mxu0 0.0
  %2228 = vmatprep.subr.mxu0 0.0
  %2229 = vmatpush1.msra.mxu0 0.0
  %2230 = vmatprep.subr.mxu0 0.0
  %2231 = vmatpush1.msra.mxu0 0.0
  %2232 = vmatprep.subr.mxu0 0.0
  %2233 = vmatpush1.msra.mxu0 0.0
  %2234 = vmatprep.subr.mxu0 0.0
  %2235 = vmatpush1.msra.mxu0 0.0
  %2236 = vmatprep.subr.mxu0 0.0
  %2237 = vmatpush1.msra.mxu0 0.0
  %2238 = vmatprep.subr.mxu0 0.0
  %2239 = vmatpush1.msra.mxu0 0.0
  %2240 = vmatprep.subr.mxu0 0.0
  %2241 = vmatpush1.msra.mxu0 0.0
  %2242 = vmatprep.subr.mxu0 0.0
  %2243 = vmatpush1.msra.mxu0 0.0
  %2244 = vmatprep.subr.mxu0 0.0
  %2245 = vmatpush1.msra.mxu0 0.0
  %2246 = vmatprep.subr.mxu0 0.0
  %2247 = vmatpush1.msra.mxu0 0.0
  %2248 = vmatprep.subr.mxu0 0.0
  %2249 = vmatpush1.msra.mxu0 0.0
  %2250 = vmatprep.subr.mxu0 0.0
  %2251 = vmatpush1.msra.mxu0 0.0
  %2252 = vmatprep.subr.mxu0 0.0
  %2253 = vmatpush1.msra.mxu0 0.0
  %2254 = vmatprep.subr.mxu0 0.0
  %2255 = vmatpush1.msra.mxu0 0.0
  %2256 = vmatprep.subr.mxu0 0.0
  %2257 = vmatpush1.msra.mxu0 0.0
  %2258 = vmatprep.subr.mxu0 0.0
  %2259 = vmatpush1.msra.mxu0 0.0
  %2260 = vmatprep.subr.mxu0 0.0
  %2261 = vmatpush1.msra.mxu0 0.0
  %2262 = vmatprep.subr.mxu0 0.0
  %2263 = vmatpush1.msra.mxu0 0.0
  %2264 = vmatprep.subr.mxu0 0.0
  %2265 = vmatpush1.msra.mxu0 0.0
  %2266 = vmatprep.subr.mxu0 0.0
  %2267 = vmatpush1.msra.mxu0 0.0
  %2268 = vmatprep.mubr.f32.mxu0 0.0
  %v2269 = vand.u32 %v1859, 4294901760
  %v2270 = vsub.f32 %v1859, %v2269
  %2271 = vmatmul.mubr.f32.gmra.mrb[0].mxu0 %v2270
  %v2272 = vpop.f32.mrb[0].mxu0
  %v2273 = vadd.f32 %v2143, %v2272
  %v2274 = vpop.f32.mrb[0].mxu0
  %2275 = vmatprep.mubr.f32.mxu0 0.0
  %v2276 = vand.u32 %v1862, 4294901760
  %v2277 = vsub.f32 %v1862, %v2276
  %2278 = vmatmul.mubr.f32.gmra.mrb[0].mxu0 %v2277
  %v2279 = vpop.f32.mrb[0].mxu0
  %v2280 = vadd.f32 %v2149, %v2279
  %v2281 = vpop.f32.mrb[0].mxu0
  %2282 = vmatprep.mubr.f32.mxu0 0.0
  %v2283 = vand.u32 %v1865, 4294901760
  %v2284 = vsub.f32 %v1865, %v2283
  %2285 = vmatmul.mubr.f32.gmra.mrb[0].mxu0 %v2284
  %v2286 = vpop.f32.mrb[0].mxu0
  %v2287 = vadd.f32 %v2155, %v2286
  %v2288 = vpop.f32.mrb[0].mxu0
  %2289 = vmatprep.mubr.f32.mxu0 0.0
  %v2290 = vand.u32 %v1868, 4294901760
  %v2291 = vsub.f32 %v1868, %v2290
  %2292 = vmatmul.mubr.f32.gmra.mrb[0].mxu0 %v2291
  %v2293 = vpop.f32.mrb[0].mxu0
  %v2294 = vadd.f32 %v2161, %v2293
  %v2295 = vpop.f32.mrb[0].mxu0
  %2296 = vmatprep.mubr.f32.mxu0 0.0
  %v2297 = vand.u32 %v1871, 4294901760
  %v2298 = vsub.f32 %v1871, %v2297
  %2299 = vmatmul.mubr.f32.gmra.mrb[0].mxu0 %v2298
  %v2300 = vpop.f32.mrb[0].mxu0
  %v2301 = vadd.f32 %v2167, %v2300
  %v2302 = vpop.f32.mrb[0].mxu0
  %2303 = vmatprep.mubr.f32.mxu0 0.0
  %v2304 = vand.u32 %v1874, 4294901760
  %v2305 = vsub.f32 %v1874, %v2304
  %2306 = vmatmul.mubr.f32.gmra.mrb[0].mxu0 %v2305
  %v2307 = vpop.f32.mrb[0].mxu0
  %v2308 = vadd.f32 %v2173, %v2307
  %v2309 = vpop.f32.mrb[0].mxu0
  %2310 = vmatprep.mubr.f32.mxu0 0.0
  %v2311 = vand.u32 %v1877, 4294901760
  %v2312 = vsub.f32 %v1877, %v2311
  %2313 = vmatmul.mubr.f32.gmra.mrb[0].mxu0 %v2312
  %v2314 = vpop.f32.mrb[0].mxu0
  %v2315 = vadd.f32 %v2179, %v2314
  %v2316 = vpop.f32.mrb[0].mxu0
  %2317 = vmatprep.mubr.f32.mxu0 0.0
  %v2318 = vand.u32 %v1880, 4294901760
  %v2319 = vsub.f32 %v1880, %v2318
  %2320 = vmatmul.mubr.f32.gmra.mrb[0].mxu0 %v2319
  %v2321 = vpop.f32.mrb[0].mxu0
  %v2322 = vadd.f32 %v2185, %v2321
  %v2323 = vpop.f32.mrb[0].mxu0
  %2324 = vdwg.mxu0
  %2325 = vmatprep.subr.mxu0 0.0
  %v2326 = vand.u32 %v1792, 4294901760
  %2327 = vmatpush1.msra.mxu0 %v2326
  %2328 = vmatprep.subr.mxu0 0.0
  %v2329 = vand.u32 %v1793, 4294901760
  %2330 = vmatpush1.msra.mxu0 %v2329
  %2331 = vmatprep.subr.mxu0 0.0
  %v2332 = vand.u32 %v1794, 4294901760
  %2333 = vmatpush1.msra.mxu0 %v2332
  %2334 = vmatprep.subr.mxu0 0.0
  %v2335 = vand.u32 %v1795, 4294901760
  %2336 = vmatpush1.msra.mxu0 %v2335
  %2337 = vmatprep.subr.mxu0 0.0
  %v2338 = vand.u32 %v1796, 4294901760
  %2339 = vmatpush1.msra.mxu0 %v2338
  %2340 = vmatprep.subr.mxu0 0.0
  %v2341 = vand.u32 %v1797, 4294901760
  %2342 = vmatpush1.msra.mxu0 %v2341
  %2343 = vmatprep.subr.mxu0 0.0
  %v2344 = vand.u32 %v1798, 4294901760
  %2345 = vmatpush1.msra.mxu0 %v2344
  %2346 = vmatprep.subr.mxu0 0.0
  %v2347 = vand.u32 %v1799, 4294901760
  %2348 = vmatpush1.msra.mxu0 %v2347
  %2349 = vmatprep.subr.mxu0 0.0
  %2350 = vmatpush1.msra.mxu0 0.0
  %2351 = vmatprep.subr.mxu0 0.0
  %2352 = vmatpush1.msra.mxu0 0.0
  %2353 = vmatprep.subr.mxu0 0.0
  %2354 = vmatpush1.msra.mxu0 0.0
  %2355 = vmatprep.subr.mxu0 0.0
  %2356 = vmatpush1.msra.mxu0 0.0
  %2357 = vmatprep.subr.mxu0 0.0
  %2358 = vmatpush1.msra.mxu0 0.0
  %2359 = vmatprep.subr.mxu0 0.0
  %2360 = vmatpush1.msra.mxu0 0.0
  %2361 = vmatprep.subr.mxu0 0.0
  %2362 = vmatpush1.msra.mxu0 0.0
  %2363 = vmatprep.subr.mxu0 0.0
  %2364 = vmatpush1.msra.mxu0 0.0
  %2365 = vmatprep.subr.mxu0 0.0
  %2366 = vmatpush1.msra.mxu0 0.0
  %2367 = vmatprep.subr.mxu0 0.0
  %2368 = vmatpush1.msra.mxu0 0.0
  %2369 = vmatprep.subr.mxu0 0.0
  %2370 = vmatpush1.msra.mxu0 0.0
  %2371 = vmatprep.subr.mxu0 0.0
  %2372 = vmatpush1.msra.mxu0 0.0
  %2373 = vmatprep.subr.mxu0 0.0
  %2374 = vmatpush1.msra.mxu0 0.0
  %2375 = vmatprep.subr.mxu0 0.0
  %2376 = vmatpush1.msra.mxu0 0.0
  %2377 = vmatprep.subr.mxu0 0.0
  %2378 = vmatpush1.msra.mxu0 0.0
  %2379 = vmatprep.subr.mxu0 0.0
  %2380 = vmatpush1.msra.mxu0 0.0
  %2381 = vmatprep.subr.mxu0 0.0
  %2382 = vmatpush1.msra.mxu0 0.0
  %2383 = vmatprep.subr.mxu0 0.0
  %2384 = vmatpush1.msra.mxu0 0.0
  %2385 = vmatprep.subr.mxu0 0.0
  %2386 = vmatpush1.msra.mxu0 0.0
  %2387 = vmatprep.subr.mxu0 0.0
  %2388 = vmatpush1.msra.mxu0 0.0
  %2389 = vmatprep.subr.mxu0 0.0
  %2390 = vmatpush1.msra.mxu0 0.0
  %2391 = vmatprep.subr.mxu0 0.0
  %2392 = vmatpush1.msra.mxu0 0.0
  %2393 = vmatprep.subr.mxu0 0.0
  %2394 = vmatpush1.msra.mxu0 0.0
  %2395 = vmatprep.subr.mxu0 0.0
  %2396 = vmatpush1.msra.mxu0 0.0
  %2397 = vmatprep.mubr.f32.mxu0 0.0
  %v2398 = vand.u32 %v1859, 4294901760
  %v2399 = vsub.f32 %v1859, %v2398
  %v2400 = vand.u32 %v2399, 4294901760
  %2401 = vmatmul.mubr.f32.gmra.mrb[0].mxu0 %v2400
  %v2402 = vpop.f32.mrb[0].mxu0
  %v2403 = vadd.f32 %v2273, %v2402
  %v2404 = vpop.f32.mrb[0].mxu0
  %2405 = vmatprep.mubr.f32.mxu0 0.0
  %v2406 = vand.u32 %v1862, 4294901760
  %v2407 = vsub.f32 %v1862, %v2406
  %v2408 = vand.u32 %v2407, 4294901760
  %2409 = vmatmul.mubr.f32.gmra.mrb[0].mxu0 %v2408
  %v2410 = vpop.f32.mrb[0].mxu0
  %v2411 = vadd.f32 %v2280, %v2410
  %v2412 = vpop.f32.mrb[0].mxu0
  %2413 = vmatprep.mubr.f32.mxu0 0.0
  %v2414 = vand.u32 %v1865, 4294901760
  %v2415 = vsub.f32 %v1865, %v2414
  %v2416 = vand.u32 %v2415, 4294901760
  %2417 = vmatmul.mubr.f32.gmra.mrb[0].mxu0 %v2416
  %v2418 = vpop.f32.mrb[0].mxu0
  %v2419 = vadd.f32 %v2287, %v2418
  %v2420 = vpop.f32.mrb[0].mxu0
  %2421 = vmatprep.mubr.f32.mxu0 0.0
  %v2422 = vand.u32 %v1868, 4294901760
  %v2423 = vsub.f32 %v1868, %v2422
  %v2424 = vand.u32 %v2423, 4294901760
  %2425 = vmatmul.mubr.f32.gmra.mrb[0].mxu0 %v2424
  %v2426 = vpop.f32.mrb[0].mxu0
  %v2427 = vadd.f32 %v2294, %v2426
  %v2428 = vpop.f32.mrb[0].mxu0
  %2429 = vmatprep.mubr.f32.mxu0 0.0
  %v2430 = vand.u32 %v1871, 4294901760
  %v2431 = vsub.f32 %v1871, %v2430
  %v2432 = vand.u32 %v2431, 4294901760
  %2433 = vmatmul.mubr.f32.gmra.mrb[0].mxu0 %v2432
  %v2434 = vpop.f32.mrb[0].mxu0
  %v2435 = vadd.f32 %v2301, %v2434
  %v2436 = vpop.f32.mrb[0].mxu0
  %2437 = vmatprep.mubr.f32.mxu0 0.0
  %v2438 = vand.u32 %v1874, 4294901760
  %v2439 = vsub.f32 %v1874, %v2438
  %v2440 = vand.u32 %v2439, 4294901760
  %2441 = vmatmul.mubr.f32.gmra.mrb[0].mxu0 %v2440
  %v2442 = vpop.f32.mrb[0].mxu0
  %v2443 = vadd.f32 %v2308, %v2442
  %v2444 = vpop.f32.mrb[0].mxu0
  %2445 = vmatprep.mubr.f32.mxu0 0.0
  %v2446 = vand.u32 %v1877, 4294901760
  %v2447 = vsub.f32 %v1877, %v2446
  %v2448 = vand.u32 %v2447, 4294901760
  %2449 = vmatmul.mubr.f32.gmra.mrb[0].mxu0 %v2448
  %v2450 = vpop.f32.mrb[0].mxu0
  %v2451 = vadd.f32 %v2315, %v2450
  %v2452 = vpop.f32.mrb[0].mxu0
  %2453 = vmatprep.mubr.f32.mxu0 0.0
  %v2454 = vand.u32 %v1880, 4294901760
  %v2455 = vsub.f32 %v1880, %v2454
  %v2456 = vand.u32 %v2455, 4294901760
  %2457 = vmatmul.mubr.f32.gmra.mrb[0].mxu0 %v2456
  %v2458 = vpop.f32.mrb[0].mxu0
  %v2459 = vadd.f32 %v2322, %v2458
  %v2460 = vpop.f32.mrb[0].mxu0
  %2461 = vdwg.mxu0
  %2462 = vmatprep.subr.mxu0 0.0
  %v2463 = vand.u32 %v1792, 4294901760
  %v2464 = vsub.f32 %v1792, %v2463
  %v2465 = vand.u32 %v2464, 4294901760
  %2466 = vmatpush1.msra.mxu0 %v2465
  %2467 = vmatprep.subr.mxu0 0.0
  %v2468 = vand.u32 %v1793, 4294901760
  %v2469 = vsub.f32 %v1793, %v2468
  %v2470 = vand.u32 %v2469, 4294901760
  %2471 = vmatpush1.msra.mxu0 %v2470
  %2472 = vmatprep.subr.mxu0 0.0
  %v2473 = vand.u32 %v1794, 4294901760
  %v2474 = vsub.f32 %v1794, %v2473
  %v2475 = vand.u32 %v2474, 4294901760
  %2476 = vmatpush1.msra.mxu0 %v2475
  %2477 = vmatprep.subr.mxu0 0.0
  %v2478 = vand.u32 %v1795, 4294901760
  %v2479 = vsub.f32 %v1795, %v2478
  %v2480 = vand.u32 %v2479, 4294901760
  %2481 = vmatpush1.msra.mxu0 %v2480
  %2482 = vmatprep.subr.mxu0 0.0
  %v2483 = vand.u32 %v1796, 4294901760
  %v2484 = vsub.f32 %v1796, %v2483
  %v2485 = vand.u32 %v2484, 4294901760
  %2486 = vmatpush1.msra.mxu0 %v2485
  %2487 = vmatprep.subr.mxu0 0.0
  %v2488 = vand.u32 %v1797, 4294901760
  %v2489 = vsub.f32 %v1797, %v2488
  %v2490 = vand.u32 %v2489, 4294901760
  %2491 = vmatpush1.msra.mxu0 %v2490
  %2492 = vmatprep.subr.mxu0 0.0
  %v2493 = vand.u32 %v1798, 4294901760
  %v2494 = vsub.f32 %v1798, %v2493
  %v2495 = vand.u32 %v2494, 4294901760
  %2496 = vmatpush1.msra.mxu0 %v2495
  %2497 = vmatprep.subr.mxu0 0.0
  %v2498 = vand.u32 %v1799, 4294901760
  %v2499 = vsub.f32 %v1799, %v2498
  %v2500 = vand.u32 %v2499, 4294901760
  %2501 = vmatpush1.msra.mxu0 %v2500
  %2502 = vmatprep.subr.mxu0 0.0
  %2503 = vmatpush1.msra.mxu0 0.0
  %2504 = vmatprep.subr.mxu0 0.0
  %2505 = vmatpush1.msra.mxu0 0.0
  %2506 = vmatprep.subr.mxu0 0.0
  %2507 = vmatpush1.msra.mxu0 0.0
  %2508 = vmatprep.subr.mxu0 0.0
  %2509 = vmatpush1.msra.mxu0 0.0
  %2510 = vmatprep.subr.mxu0 0.0
  %2511 = vmatpush1.msra.mxu0 0.0
  %2512 = vmatprep.subr.mxu0 0.0
  %2513 = vmatpush1.msra.mxu0 0.0
  %2514 = vmatprep.subr.mxu0 0.0
  %2515 = vmatpush1.msra.mxu0 0.0
  %2516 = vmatprep.subr.mxu0 0.0
  %2517 = vmatpush1.msra.mxu0 0.0
  %2518 = vmatprep.subr.mxu0 0.0
  %2519 = vmatpush1.msra.mxu0 0.0
  %2520 = vmatprep.subr.mxu0 0.0
  %2521 = vmatpush1.msra.mxu0 0.0
  %2522 = vmatprep.subr.mxu0 0.0
  %2523 = vmatpush1.msra.mxu0 0.0
  %2524 = vmatprep.subr.mxu0 0.0
  %2525 = vmatpush1.msra.mxu0 0.0
  %2526 = vmatprep.subr.mxu0 0.0
  %2527 = vmatpush1.msra.mxu0 0.0
  %2528 = vmatprep.subr.mxu0 0.0
  %2529 = vmatpush1.msra.mxu0 0.0
  %2530 = vmatprep.subr.mxu0 0.0
  %2531 = vmatpush1.msra.mxu0 0.0
  %2532 = vmatprep.subr.mxu0 0.0
  %2533 = vmatpush1.msra.mxu0 0.0
  %2534 = vmatprep.subr.mxu0 0.0
  %2535 = vmatpush1.msra.mxu0 0.0
  %2536 = vmatprep.subr.mxu0 0.0
  %2537 = vmatpush1.msra.mxu0 0.0
  %2538 = vmatprep.subr.mxu0 0.0
  %2539 = vmatpush1.msra.mxu0 0.0
  %2540 = vmatprep.subr.mxu0 0.0
  %2541 = vmatpush1.msra.mxu0 0.0
  %2542 = vmatprep.subr.mxu0 0.0
  %2543 = vmatpush1.msra.mxu0 0.0
  %2544 = vmatprep.subr.mxu0 0.0
  %2545 = vmatpush1.msra.mxu0 0.0
  %2546 = vmatprep.subr.mxu0 0.0
  %2547 = vmatpush1.msra.mxu0 0.0
  %2548 = vmatprep.subr.mxu0 0.0
  %2549 = vmatpush1.msra.mxu0 0.0
  %2550 = vmatprep.mubr.f32.mxu0 0.0
  %v2551 = vand.u32 %v1859, 4294901760
  %2552 = vmatmul.mubr.f32.gmra.mrb[0].mxu0 %v2551
  %v2553 = vpop.f32.mrb[0].mxu0
  %v2554 = vadd.f32 %v2403, %v2553
  %v2555 = vpop.f32.mrb[0].mxu0
  %2556 = vmatprep.mubr.f32.mxu0 0.0
  %v2557 = vand.u32 %v1862, 4294901760
  %2558 = vmatmul.mubr.f32.gmra.mrb[0].mxu0 %v2557
  %v2559 = vpop.f32.mrb[0].mxu0
  %v2560 = vadd.f32 %v2411, %v2559
  %v2561 = vpop.f32.mrb[0].mxu0
  %2562 = vmatprep.mubr.f32.mxu0 0.0
  %v2563 = vand.u32 %v1865, 4294901760
  %2564 = vmatmul.mubr.f32.gmra.mrb[0].mxu0 %v2563
  %v2565 = vpop.f32.mrb[0].mxu0
  %v2566 = vadd.f32 %v2419, %v2565
  %v2567 = vpop.f32.mrb[0].mxu0
  %2568 = vmatprep.mubr.f32.mxu0 0.0
  %v2569 = vand.u32 %v1868, 4294901760
  %2570 = vmatmul.mubr.f32.gmra.mrb[0].mxu0 %v2569
  %v2571 = vpop.f32.mrb[0].mxu0
  %v2572 = vadd.f32 %v2427, %v2571
  %v2573 = vpop.f32.mrb[0].mxu0
  %2574 = vmatprep.mubr.f32.mxu0 0.0
  %v2575 = vand.u32 %v1871, 4294901760
  %2576 = vmatmul.mubr.f32.gmra.mrb[0].mxu0 %v2575
  %v2577 = vpop.f32.mrb[0].mxu0
  %v2578 = vadd.f32 %v2435, %v2577
  %v2579 = vpop.f32.mrb[0].mxu0
  %2580 = vmatprep.mubr.f32.mxu0 0.0
  %v2581 = vand.u32 %v1874, 4294901760
  %2582 = vmatmul.mubr.f32.gmra.mrb[0].mxu0 %v2581
  %v2583 = vpop.f32.mrb[0].mxu0
  %v2584 = vadd.f32 %v2443, %v2583
  %v2585 = vpop.f32.mrb[0].mxu0
  %2586 = vmatprep.mubr.f32.mxu0 0.0
  %v2587 = vand.u32 %v1877, 4294901760
  %2588 = vmatmul.mubr.f32.gmra.mrb[0].mxu0 %v2587
  %v2589 = vpop.f32.mrb[0].mxu0
  %v2590 = vadd.f32 %v2451, %v2589
  %v2591 = vpop.f32.mrb[0].mxu0
  %2592 = vmatprep.mubr.f32.mxu0 0.0
  %v2593 = vand.u32 %v1880, 4294901760
  %2594 = vmatmul.mubr.f32.gmra.mrb[0].mxu0 %v2593
  %v2595 = vpop.f32.mrb[0].mxu0
  %v2596 = vadd.f32 %v2459, %v2595
  %v2597 = vpop.f32.mrb[0].mxu0
  %2598 = vdwg.mxu0
  %2599 = vmatprep.subr.mxu0 0.0
  %v2600 = vand.u32 %v1792, 4294901760
  %2601 = vmatpush1.msra.mxu0 %v2600
  %2602 = vmatprep.subr.mxu0 0.0
  %v2603 = vand.u32 %v1793, 4294901760
  %2604 = vmatpush1.msra.mxu0 %v2603
  %2605 = vmatprep.subr.mxu0 0.0
  %v2606 = vand.u32 %v1794, 4294901760
  %2607 = vmatpush1.msra.mxu0 %v2606
  %2608 = vmatprep.subr.mxu0 0.0
  %v2609 = vand.u32 %v1795, 4294901760
  %2610 = vmatpush1.msra.mxu0 %v2609
  %2611 = vmatprep.subr.mxu0 0.0
  %v2612 = vand.u32 %v1796, 4294901760
  %2613 = vmatpush1.msra.mxu0 %v2612
  %2614 = vmatprep.subr.mxu0 0.0
  %v2615 = vand.u32 %v1797, 4294901760
  %2616 = vmatpush1.msra.mxu0 %v2615
  %2617 = vmatprep.subr.mxu0 0.0
  %v2618 = vand.u32 %v1798, 4294901760
  %2619 = vmatpush1.msra.mxu0 %v2618
  %2620 = vmatprep.subr.mxu0 0.0
  %v2621 = vand.u32 %v1799, 4294901760
  %2622 = vmatpush1.msra.mxu0 %v2621
  %2623 = vmatprep.subr.mxu0 0.0
  %2624 = vmatpush1.msra.mxu0 0.0
  %2625 = vmatprep.subr.mxu0 0.0
  %2626 = vmatpush1.msra.mxu0 0.0
  %2627 = vmatprep.subr.mxu0 0.0
  %2628 = vmatpush1.msra.mxu0 0.0
  %2629 = vmatprep.subr.mxu0 0.0
  %2630 = vmatpush1.msra.mxu0 0.0
  %2631 = vmatprep.subr.mxu0 0.0
  %2632 = vmatpush1.msra.mxu0 0.0
  %2633 = vmatprep.subr.mxu0 0.0
  %2634 = vmatpush1.msra.mxu0 0.0
  %2635 = vmatprep.subr.mxu0 0.0
  %2636 = vmatpush1.msra.mxu0 0.0
  %2637 = vmatprep.subr.mxu0 0.0
  %2638 = vmatpush1.msra.mxu0 0.0
  %2639 = vmatprep.subr.mxu0 0.0
  %2640 = vmatpush1.msra.mxu0 0.0
  %2641 = vmatprep.subr.mxu0 0.0
  %2642 = vmatpush1.msra.mxu0 0.0
  %2643 = vmatprep.subr.mxu0 0.0
  %2644 = vmatpush1.msra.mxu0 0.0
  %2645 = vmatprep.subr.mxu0 0.0
  %2646 = vmatpush1.msra.mxu0 0.0
  %2647 = vmatprep.subr.mxu0 0.0
  %2648 = vmatpush1.msra.mxu0 0.0
  %2649 = vmatprep.subr.mxu0 0.0
  %2650 = vmatpush1.msra.mxu0 0.0
  %2651 = vmatprep.subr.mxu0 0.0
  %2652 = vmatpush1.msra.mxu0 0.0
  %2653 = vmatprep.subr.mxu0 0.0
  %2654 = vmatpush1.msra.mxu0 0.0
  %2655 = vmatprep.subr.mxu0 0.0
  %2656 = vmatpush1.msra.mxu0 0.0
  %2657 = vmatprep.subr.mxu0 0.0
  %2658 = vmatpush1.msra.mxu0 0.0
  %2659 = vmatprep.subr.mxu0 0.0
  %2660 = vmatpush1.msra.mxu0 0.0
  %2661 = vmatprep.subr.mxu0 0.0
  %2662 = vmatpush1.msra.mxu0 0.0
  %2663 = vmatprep.subr.mxu0 0.0
  %2664 = vmatpush1.msra.mxu0 0.0
  %2665 = vmatprep.subr.mxu0 0.0
  %2666 = vmatpush1.msra.mxu0 0.0
  %2667 = vmatprep.subr.mxu0 0.0
  %2668 = vmatpush1.msra.mxu0 0.0
  %2669 = vmatprep.subr.mxu0 0.0
  %2670 = vmatpush1.msra.mxu0 0.0
  %2671 = vmatprep.mubr.f32.mxu0 0.0
  %v2672 = vand.u32 %v1859, 4294901760
  %2673 = vmatmul.mubr.f32.gmra.mrb[0].mxu0 %v2672
  %v2674 = vpop.f32.mrb[0].mxu0
  %v2675 = vadd.f32 %v2554, %v2674
  %v2676 = vpop.f32.mrb[0].mxu0
  %2677 = vmatprep.mubr.f32.mxu0 0.0
  %v2678 = vand.u32 %v1862, 4294901760
  %2679 = vmatmul.mubr.f32.gmra.mrb[0].mxu0 %v2678
  %v2680 = vpop.f32.mrb[0].mxu0
  %v2681 = vadd.f32 %v2560, %v2680
  %v2682 = vpop.f32.mrb[0].mxu0
  %2683 = vmatprep.mubr.f32.mxu0 0.0
  %v2684 = vand.u32 %v1865, 4294901760
  %2685 = vmatmul.mubr.f32.gmra.mrb[0].mxu0 %v2684
  %v2686 = vpop.f32.mrb[0].mxu0
  %v2687 = vadd.f32 %v2566, %v2686
  %v2688 = vpop.f32.mrb[0].mxu0
  %2689 = vmatprep.mubr.f32.mxu0 0.0
  %v2690 = vand.u32 %v1868, 4294901760
  %2691 = vmatmul.mubr.f32.gmra.mrb[0].mxu0 %v2690
  %v2692 = vpop.f32.mrb[0].mxu0
  %v2693 = vadd.f32 %v2572, %v2692
  %v2694 = vpop.f32.mrb[0].mxu0
  %2695 = vmatprep.mubr.f32.mxu0 0.0
  %v2696 = vand.u32 %v1871, 4294901760
  %2697 = vmatmul.mubr.f32.gmra.mrb[0].mxu0 %v2696
  %v2698 = vpop.f32.mrb[0].mxu0
  %v2699 = vadd.f32 %v2578, %v2698
  %v2700 = vpop.f32.mrb[0].mxu0
  %2701 = vmatprep.mubr.f32.mxu0 0.0
  %v2702 = vand.u32 %v1874, 4294901760
  %2703 = vmatmul.mubr.f32.gmra.mrb[0].mxu0 %v2702
  %v2704 = vpop.f32.mrb[0].mxu0
  %v2705 = vadd.f32 %v2584, %v2704
  %v2706 = vpop.f32.mrb[0].mxu0
  %2707 = vmatprep.mubr.f32.mxu0 0.0
  %v2708 = vand.u32 %v1877, 4294901760
  %2709 = vmatmul.mubr.f32.gmra.mrb[0].mxu0 %v2708
  %v2710 = vpop.f32.mrb[0].mxu0
  %v2711 = vadd.f32 %v2590, %v2710
  %v2712 = vpop.f32.mrb[0].mxu0
  %2713 = vmatprep.mubr.f32.mxu0 0.0
  %v2714 = vand.u32 %v1880, 4294901760
  %2715 = vmatmul.mubr.f32.gmra.mrb[0].mxu0 %v2714
  %v2716 = vpop.f32.mrb[0].mxu0
  %v2717 = vadd.f32 %v2596, %v2716
  %v2718 = vpop.f32.mrb[0].mxu0
  %2719 = vdwg.mxu0
  %v2720 = vmax.f32 %v2675, 0.0
  %v2721 = vmax.f32 %v2681, 0.0
  %v2722 = vmax.f32 %v2687, 0.0
  %v2723 = vmax.f32 %v2693, 0.0
  %v2724 = vmax.f32 %v2699, 0.0
  %v2725 = vmax.f32 %v2705, 0.0
  %v2726 = vmax.f32 %v2711, 0.0
  %v2727 = vmax.f32 %v2717, 0.0
  %s2728 = scalar_lea.vmem %s1, 192
  %v2729 = vld [vmem:[%s2728] sm:$0xff]
  %s2730 = scalar_lea.vmem %s2, 192
  %v2731 = vld [vmem:[%s2730] sm:$0xff]
  %2733 = vset.pattern.permute.xlu0 0
  %2734 = vperm.xlu0 %2733, %v2731
  %v2735 = vpop.permute.xlu0 %2734
  %v2738 = vsel %vm929, %v2729, 0
  %2740 = vmatprep.subr.mxu0 0.0
  %v2741 = vand.u32 %v2720, 4294901760
  %2742 = vmatpush1.msra.mxu0 %v2741
  %2743 = vmatprep.subr.mxu0 0.0
  %v2744 = vand.u32 %v2721, 4294901760
  %2745 = vmatpush1.msra.mxu0 %v2744
  %2746 = vmatprep.subr.mxu0 0.0
  %v2747 = vand.u32 %v2722, 4294901760
  %2748 = vmatpush1.msra.mxu0 %v2747
  %2749 = vmatprep.subr.mxu0 0.0
  %v2750 = vand.u32 %v2723, 4294901760
  %2751 = vmatpush1.msra.mxu0 %v2750
  %2752 = vmatprep.subr.mxu0 0.0
  %v2753 = vand.u32 %v2724, 4294901760
  %2754 = vmatpush1.msra.mxu0 %v2753
  %2755 = vmatprep.subr.mxu0 0.0
  %v2756 = vand.u32 %v2725, 4294901760
  %2757 = vmatpush1.msra.mxu0 %v2756
  %2758 = vmatprep.subr.mxu0 0.0
  %v2759 = vand.u32 %v2726, 4294901760
  %2760 = vmatpush1.msra.mxu0 %v2759
  %2761 = vmatprep.subr.mxu0 0.0
  %v2762 = vand.u32 %v2727, 4294901760
  %2763 = vmatpush1.msra.mxu0 %v2762
  %2764 = vmatprep.subr.mxu0 0.0
  %2765 = vmatpush1.msra.mxu0 0.0
  %2766 = vmatprep.subr.mxu0 0.0
  %2767 = vmatpush1.msra.mxu0 0.0
  %2768 = vmatprep.subr.mxu0 0.0
  %2769 = vmatpush1.msra.mxu0 0.0
  %2770 = vmatprep.subr.mxu0 0.0
  %2771 = vmatpush1.msra.mxu0 0.0
  %2772 = vmatprep.subr.mxu0 0.0
  %2773 = vmatpush1.msra.mxu0 0.0
  %2774 = vmatprep.subr.mxu0 0.0
  %2775 = vmatpush1.msra.mxu0 0.0
  %2776 = vmatprep.subr.mxu0 0.0
  %2777 = vmatpush1.msra.mxu0 0.0
  %2778 = vmatprep.subr.mxu0 0.0
  %2779 = vmatpush1.msra.mxu0 0.0
  %2780 = vmatprep.subr.mxu0 0.0
  %2781 = vmatpush1.msra.mxu0 0.0
  %2782 = vmatprep.subr.mxu0 0.0
  %2783 = vmatpush1.msra.mxu0 0.0
  %2784 = vmatprep.subr.mxu0 0.0
  %2785 = vmatpush1.msra.mxu0 0.0
  %2786 = vmatprep.subr.mxu0 0.0
  %2787 = vmatpush1.msra.mxu0 0.0
  %2788 = vmatprep.subr.mxu0 0.0
  %2789 = vmatpush1.msra.mxu0 0.0
  %2790 = vmatprep.subr.mxu0 0.0
  %2791 = vmatpush1.msra.mxu0 0.0
  %2792 = vmatprep.subr.mxu0 0.0
  %2793 = vmatpush1.msra.mxu0 0.0
  %2794 = vmatprep.subr.mxu0 0.0
  %2795 = vmatpush1.msra.mxu0 0.0
  %2796 = vmatprep.subr.mxu0 0.0
  %2797 = vmatpush1.msra.mxu0 0.0
  %2798 = vmatprep.subr.mxu0 0.0
  %2799 = vmatpush1.msra.mxu0 0.0
  %2800 = vmatprep.subr.mxu0 0.0
  %2801 = vmatpush1.msra.mxu0 0.0
  %2802 = vmatprep.subr.mxu0 0.0
  %2803 = vmatpush1.msra.mxu0 0.0
  %2804 = vmatprep.subr.mxu0 0.0
  %2805 = vmatpush1.msra.mxu0 0.0
  %2806 = vmatprep.subr.mxu0 0.0
  %2807 = vmatpush1.msra.mxu0 0.0
  %2808 = vmatprep.subr.mxu0 0.0
  %2809 = vmatpush1.msra.mxu0 0.0
  %2810 = vmatprep.subr.mxu0 0.0
  %2811 = vmatpush1.msra.mxu0 0.0
  %2812 = vmatprep.mubr.f32.mxu0 0.0
  %v2813 = vand.u32 %v2738, 4294901760
  %v2814 = vsub.f32 %v2738, %v2813
  %v2815 = vand.u32 %v2814, 4294901760
  %v2816 = vsub.f32 %v2814, %v2815
  %v2817 = vand.u32 %v2816, 4294901760
  %2818 = vmatmul.mubr.f32.gmra.mrb[0].mxu0 %v2817
  %v2819 = vpop.f32.mrb[0].mxu0
  %v2820 = vadd.f32 %v2735, %v2819
  %v2821 = vpop.f32.mrb[0].mxu0
  %2822 = vdwg.mxu0
  %2823 = vmatprep.subr.mxu0 0.0
  %v2824 = vand.u32 %v2720, 4294901760
  %v2825 = vsub.f32 %v2720, %v2824
  %v2826 = vand.u32 %v2825, 4294901760
  %v2827 = vsub.f32 %v2825, %v2826
  %v2828 = vand.u32 %v2827, 4294901760
  %2829 = vmatpush1.msra.mxu0 %v2828
  %2830 = vmatprep.subr.mxu0 0.0
  %v2831 = vand.u32 %v2721, 4294901760
  %v2832 = vsub.f32 %v2721, %v2831
  %v2833 = vand.u32 %v2832, 4294901760
  %v2834 = vsub.f32 %v2832, %v2833
  %v2835 = vand.u32 %v2834, 4294901760
  %2836 = vmatpush1.msra.mxu0 %v2835
  %2837 = vmatprep.subr.mxu0 0.0
  %v2838 = vand.u32 %v2722, 4294901760
  %v2839 = vsub.f32 %v2722, %v2838
  %v2840 = vand.u32 %v2839, 4294901760
  %v2841 = vsub.f32 %v2839, %v2840
  %v2842 = vand.u32 %v2841, 4294901760
  %2843 = vmatpush1.msra.mxu0 %v2842
  %2844 = vmatprep.subr.mxu0 0.0
  %v2845 = vand.u32 %v2723, 4294901760
  %v2846 = vsub.f32 %v2723, %v2845
  %v2847 = vand.u32 %v2846, 4294901760
  %v2848 = vsub.f32 %v2846, %v2847
  %v2849 = vand.u32 %v2848, 4294901760
  %2850 = vmatpush1.msra.mxu0 %v2849
  %2851 = vmatprep.subr.mxu0 0.0
  %v2852 = vand.u32 %v2724, 4294901760
  %v2853 = vsub.f32 %v2724, %v2852
  %v2854 = vand.u32 %v2853, 4294901760
  %v2855 = vsub.f32 %v2853, %v2854
  %v2856 = vand.u32 %v2855, 4294901760
  %2857 = vmatpush1.msra.mxu0 %v2856
  %2858 = vmatprep.subr.mxu0 0.0
  %v2859 = vand.u32 %v2725, 4294901760
  %v2860 = vsub.f32 %v2725, %v2859
  %v2861 = vand.u32 %v2860, 4294901760
  %v2862 = vsub.f32 %v2860, %v2861
  %v2863 = vand.u32 %v2862, 4294901760
  %2864 = vmatpush1.msra.mxu0 %v2863
  %2865 = vmatprep.subr.mxu0 0.0
  %v2866 = vand.u32 %v2726, 4294901760
  %v2867 = vsub.f32 %v2726, %v2866
  %v2868 = vand.u32 %v2867, 4294901760
  %v2869 = vsub.f32 %v2867, %v2868
  %v2870 = vand.u32 %v2869, 4294901760
  %2871 = vmatpush1.msra.mxu0 %v2870
  %2872 = vmatprep.subr.mxu0 0.0
  %v2873 = vand.u32 %v2727, 4294901760
  %v2874 = vsub.f32 %v2727, %v2873
  %v2875 = vand.u32 %v2874, 4294901760
  %v2876 = vsub.f32 %v2874, %v2875
  %v2877 = vand.u32 %v2876, 4294901760
  %2878 = vmatpush1.msra.mxu0 %v2877
  %2879 = vmatprep.subr.mxu0 0.0
  %2880 = vmatpush1.msra.mxu0 0.0
  %2881 = vmatprep.subr.mxu0 0.0
  %2882 = vmatpush1.msra.mxu0 0.0
  %2883 = vmatprep.subr.mxu0 0.0
  %2884 = vmatpush1.msra.mxu0 0.0
  %2885 = vmatprep.subr.mxu0 0.0
  %2886 = vmatpush1.msra.mxu0 0.0
  %2887 = vmatprep.subr.mxu0 0.0
  %2888 = vmatpush1.msra.mxu0 0.0
  %2889 = vmatprep.subr.mxu0 0.0
  %2890 = vmatpush1.msra.mxu0 0.0
  %2891 = vmatprep.subr.mxu0 0.0
  %2892 = vmatpush1.msra.mxu0 0.0
  %2893 = vmatprep.subr.mxu0 0.0
  %2894 = vmatpush1.msra.mxu0 0.0
  %2895 = vmatprep.subr.mxu0 0.0
  %2896 = vmatpush1.msra.mxu0 0.0
  %2897 = vmatprep.subr.mxu0 0.0
  %2898 = vmatpush1.msra.mxu0 0.0
  %2899 = vmatprep.subr.mxu0 0.0
  %2900 = vmatpush1.msra.mxu0 0.0
  %2901 = vmatprep.subr.mxu0 0.0
  %2902 = vmatpush1.msra.mxu0 0.0
  %2903 = vmatprep.subr.mxu0 0.0
  %2904 = vmatpush1.msra.mxu0 0.0
  %2905 = vmatprep.subr.mxu0 0.0
  %2906 = vmatpush1.msra.mxu0 0.0
  %2907 = vmatprep.subr.mxu0 0.0
  %2908 = vmatpush1.msra.mxu0 0.0
  %2909 = vmatprep.subr.mxu0 0.0
  %2910 = vmatpush1.msra.mxu0 0.0
  %2911 = vmatprep.subr.mxu0 0.0
  %2912 = vmatpush1.msra.mxu0 0.0
  %2913 = vmatprep.subr.mxu0 0.0
  %2914 = vmatpush1.msra.mxu0 0.0
  %2915 = vmatprep.subr.mxu0 0.0
  %2916 = vmatpush1.msra.mxu0 0.0
  %2917 = vmatprep.subr.mxu0 0.0
  %2918 = vmatpush1.msra.mxu0 0.0
  %2919 = vmatprep.subr.mxu0 0.0
  %2920 = vmatpush1.msra.mxu0 0.0
  %2921 = vmatprep.subr.mxu0 0.0
  %2922 = vmatpush1.msra.mxu0 0.0
  %2923 = vmatprep.subr.mxu0 0.0
  %2924 = vmatpush1.msra.mxu0 0.0
  %2925 = vmatprep.subr.mxu0 0.0
  %2926 = vmatpush1.msra.mxu0 0.0
  %2927 = vmatprep.mubr.f32.mxu0 0.0
  %v2928 = vand.u32 %v2738, 4294901760
  %2929 = vmatmul.mubr.f32.gmra.mrb[0].mxu0 %v2928
  %v2930 = vpop.f32.mrb[0].mxu0
  %v2931 = vadd.f32 %v2820, %v2930
  %v2932 = vpop.f32.mrb[0].mxu0
  %2933 = vdwg.mxu0
  %2934 = vmatprep.subr.mxu0 0.0
  %v2935 = vand.u32 %v2720, 4294901760
  %v2936 = vsub.f32 %v2720, %v2935
  %2937 = vmatpush1.msra.mxu0 %v2936
  %2938 = vmatprep.subr.mxu0 0.0
  %v2939 = vand.u32 %v2721, 4294901760
  %v2940 = vsub.f32 %v2721, %v2939
  %2941 = vmatpush1.msra.mxu0 %v2940
  %2942 = vmatprep.subr.mxu0 0.0
  %v2943 = vand.u32 %v2722, 4294901760
  %v2944 = vsub.f32 %v2722, %v2943
  %2945 = vmatpush1.msra.mxu0 %v2944
  %2946 = vmatprep.subr.mxu0 0.0
  %v2947 = vand.u32 %v2723, 4294901760
  %v2948 = vsub.f32 %v2723, %v2947
  %2949 = vmatpush1.msra.mxu0 %v2948
  %2950 = vmatprep.subr.mxu0 0.0
  %v2951 = vand.u32 %v2724, 4294901760
  %v2952 = vsub.f32 %v2724, %v2951
  %2953 = vmatpush1.msra.mxu0 %v2952
  %2954 = vmatprep.subr.mxu0 0.0
  %v2955 = vand.u32 %v2725, 4294901760
  %v2956 = vsub.f32 %v2725, %v2955
  %2957 = vmatpush1.msra.mxu0 %v2956
  %2958 = vmatprep.subr.mxu0 0.0
  %v2959 = vand.u32 %v2726, 4294901760
  %v2960 = vsub.f32 %v2726, %v2959
  %2961 = vmatpush1.msra.mxu0 %v2960
  %2962 = vmatprep.subr.mxu0 0.0
  %v2963 = vand.u32 %v2727, 4294901760
  %v2964 = vsub.f32 %v2727, %v2963
  %2965 = vmatpush1.msra.mxu0 %v2964
  %2966 = vmatprep.subr.mxu0 0.0
  %2967 = vmatpush1.msra.mxu0 0.0
  %2968 = vmatprep.subr.mxu0 0.0
  %2969 = vmatpush1.msra.mxu0 0.0
  %2970 = vmatprep.subr.mxu0 0.0
  %2971 = vmatpush1.msra.mxu0 0.0
  %2972 = vmatprep.subr.mxu0 0.0
  %2973 = vmatpush1.msra.mxu0 0.0
  %2974 = vmatprep.subr.mxu0 0.0
  %2975 = vmatpush1.msra.mxu0 0.0
  %2976 = vmatprep.subr.mxu0 0.0
  %2977 = vmatpush1.msra.mxu0 0.0
  %2978 = vmatprep.subr.mxu0 0.0
  %2979 = vmatpush1.msra.mxu0 0.0
  %2980 = vmatprep.subr.mxu0 0.0
  %2981 = vmatpush1.msra.mxu0 0.0
  %2982 = vmatprep.subr.mxu0 0.0
  %2983 = vmatpush1.msra.mxu0 0.0
  %2984 = vmatprep.subr.mxu0 0.0
  %2985 = vmatpush1.msra.mxu0 0.0
  %2986 = vmatprep.subr.mxu0 0.0
  %2987 = vmatpush1.msra.mxu0 0.0
  %2988 = vmatprep.subr.mxu0 0.0
  %2989 = vmatpush1.msra.mxu0 0.0
  %2990 = vmatprep.subr.mxu0 0.0
  %2991 = vmatpush1.msra.mxu0 0.0
  %2992 = vmatprep.subr.mxu0 0.0
  %2993 = vmatpush1.msra.mxu0 0.0
  %2994 = vmatprep.subr.mxu0 0.0
  %2995 = vmatpush1.msra.mxu0 0.0
  %2996 = vmatprep.subr.mxu0 0.0
  %2997 = vmatpush1.msra.mxu0 0.0
  %2998 = vmatprep.subr.mxu0 0.0
  %2999 = vmatpush1.msra.mxu0 0.0
  %3000 = vmatprep.subr.mxu0 0.0
  %3001 = vmatpush1.msra.mxu0 0.0
  %3002 = vmatprep.subr.mxu0 0.0
  %3003 = vmatpush1.msra.mxu0 0.0
  %3004 = vmatprep.subr.mxu0 0.0
  %3005 = vmatpush1.msra.mxu0 0.0
  %3006 = vmatprep.subr.mxu0 0.0
  %3007 = vmatpush1.msra.mxu0 0.0
  %3008 = vmatprep.subr.mxu0 0.0
  %3009 = vmatpush1.msra.mxu0 0.0
  %3010 = vmatprep.subr.mxu0 0.0
  %3011 = vmatpush1.msra.mxu0 0.0
  %3012 = vmatprep.subr.mxu0 0.0
  %3013 = vmatpush1.msra.mxu0 0.0
  %3014 = vmatprep.mubr.f32.mxu0 0.0
  %v3015 = vand.u32 %v2738, 4294901760
  %v3016 = vsub.f32 %v2738, %v3015
  %3017 = vmatmul.mubr.f32.gmra.mrb[0].mxu0 %v3016
  %v3018 = vpop.f32.mrb[0].mxu0
  %v3019 = vadd.f32 %v2931, %v3018
  %v3020 = vpop.f32.mrb[0].mxu0
  %3021 = vdwg.mxu0
  %3022 = vmatprep.subr.mxu0 0.0
  %v3023 = vand.u32 %v2720, 4294901760
  %3024 = vmatpush1.msra.mxu0 %v3023
  %3025 = vmatprep.subr.mxu0 0.0
  %v3026 = vand.u32 %v2721, 4294901760
  %3027 = vmatpush1.msra.mxu0 %v3026
  %3028 = vmatprep.subr.mxu0 0.0
  %v3029 = vand.u32 %v2722, 4294901760
  %3030 = vmatpush1.msra.mxu0 %v3029
  %3031 = vmatprep.subr.mxu0 0.0
  %v3032 = vand.u32 %v2723, 4294901760
  %3033 = vmatpush1.msra.mxu0 %v3032
  %3034 = vmatprep.subr.mxu0 0.0
  %v3035 = vand.u32 %v2724, 4294901760
  %3036 = vmatpush1.msra.mxu0 %v3035
  %3037 = vmatprep.subr.mxu0 0.0
  %v3038 = vand.u32 %v2725, 4294901760
  %3039 = vmatpush1.msra.mxu0 %v3038
  %3040 = vmatprep.subr.mxu0 0.0
  %v3041 = vand.u32 %v2726, 4294901760
  %3042 = vmatpush1.msra.mxu0 %v3041
  %3043 = vmatprep.subr.mxu0 0.0
  %v3044 = vand.u32 %v2727, 4294901760
  %3045 = vmatpush1.msra.mxu0 %v3044
  %3046 = vmatprep.subr.mxu0 0.0
  %3047 = vmatpush1.msra.mxu0 0.0
  %3048 = vmatprep.subr.mxu0 0.0
  %3049 = vmatpush1.msra.mxu0 0.0
  %3050 = vmatprep.subr.mxu0 0.0
  %3051 = vmatpush1.msra.mxu0 0.0
  %3052 = vmatprep.subr.mxu0 0.0
  %3053 = vmatpush1.msra.mxu0 0.0
  %3054 = vmatprep.subr.mxu0 0.0
  %3055 = vmatpush1.msra.mxu0 0.0
  %3056 = vmatprep.subr.mxu0 0.0
  %3057 = vmatpush1.msra.mxu0 0.0
  %3058 = vmatprep.subr.mxu0 0.0
  %3059 = vmatpush1.msra.mxu0 0.0
  %3060 = vmatprep.subr.mxu0 0.0
  %3061 = vmatpush1.msra.mxu0 0.0
  %3062 = vmatprep.subr.mxu0 0.0
  %3063 = vmatpush1.msra.mxu0 0.0
  %3064 = vmatprep.subr.mxu0 0.0
  %3065 = vmatpush1.msra.mxu0 0.0
  %3066 = vmatprep.subr.mxu0 0.0
  %3067 = vmatpush1.msra.mxu0 0.0
  %3068 = vmatprep.subr.mxu0 0.0
  %3069 = vmatpush1.msra.mxu0 0.0
  %3070 = vmatprep.subr.mxu0 0.0
  %3071 = vmatpush1.msra.mxu0 0.0
  %3072 = vmatprep.subr.mxu0 0.0
  %3073 = vmatpush1.msra.mxu0 0.0
  %3074 = vmatprep.subr.mxu0 0.0
  %3075 = vmatpush1.msra.mxu0 0.0
  %3076 = vmatprep.subr.mxu0 0.0
  %3077 = vmatpush1.msra.mxu0 0.0
  %3078 = vmatprep.subr.mxu0 0.0
  %3079 = vmatpush1.msra.mxu0 0.0
  %3080 = vmatprep.subr.mxu0 0.0
  %3081 = vmatpush1.msra.mxu0 0.0
  %3082 = vmatprep.subr.mxu0 0.0
  %3083 = vmatpush1.msra.mxu0 0.0
  %3084 = vmatprep.subr.mxu0 0.0
  %3085 = vmatpush1.msra.mxu0 0.0
  %3086 = vmatprep.subr.mxu0 0.0
  %3087 = vmatpush1.msra.mxu0 0.0
  %3088 = vmatprep.subr.mxu0 0.0
  %3089 = vmatpush1.msra.mxu0 0.0
  %3090 = vmatprep.subr.mxu0 0.0
  %3091 = vmatpush1.msra.mxu0 0.0
  %3092 = vmatprep.subr.mxu0 0.0
  %3093 = vmatpush1.msra.mxu0 0.0
  %3094 = vmatprep.mubr.f32.mxu0 0.0
  %v3095 = vand.u32 %v2738, 4294901760
  %v3096 = vsub.f32 %v2738, %v3095
  %v3097 = vand.u32 %v3096, 4294901760
  %3098 = vmatmul.mubr.f32.gmra.mrb[0].mxu0 %v3097
  %v3099 = vpop.f32.mrb[0].mxu0
  %v3100 = vadd.f32 %v3019, %v3099
  %v3101 = vpop.f32.mrb[0].mxu0
  %3102 = vdwg.mxu0
  %3103 = vmatprep.subr.mxu0 0.0
  %v3104 = vand.u32 %v2720, 4294901760
  %v3105 = vsub.f32 %v2720, %v3104
  %v3106 = vand.u32 %v3105, 4294901760
  %3107 = vmatpush1.msra.mxu0 %v3106
  %3108 = vmatprep.subr.mxu0 0.0
  %v3109 = vand.u32 %v2721, 4294901760
  %v3110 = vsub.f32 %v2721, %v3109
  %v3111 = vand.u32 %v3110, 4294901760
  %3112 = vmatpush1.msra.mxu0 %v3111
  %3113 = vmatprep.subr.mxu0 0.0
  %v3114 = vand.u32 %v2722, 4294901760
  %v3115 = vsub.f32 %v2722, %v3114
  %v3116 = vand.u32 %v3115, 4294901760
  %3117 = vmatpush1.msra.mxu0 %v3116
  %3118 = vmatprep.subr.mxu0 0.0
  %v3119 = vand.u32 %v2723, 4294901760
  %v3120 = vsub.f32 %v2723, %v3119
  %v3121 = vand.u32 %v3120, 4294901760
  %3122 = vmatpush1.msra.mxu0 %v3121
  %3123 = vmatprep.subr.mxu0 0.0
  %v3124 = vand.u32 %v2724, 4294901760
  %v3125 = vsub.f32 %v2724, %v3124
  %v3126 = vand.u32 %v3125, 4294901760
  %3127 = vmatpush1.msra.mxu0 %v3126
  %3128 = vmatprep.subr.mxu0 0.0
  %v3129 = vand.u32 %v2725, 4294901760
  %v3130 = vsub.f32 %v2725, %v3129
  %v3131 = vand.u32 %v3130, 4294901760
  %3132 = vmatpush1.msra.mxu0 %v3131
  %3133 = vmatprep.subr.mxu0 0.0
  %v3134 = vand.u32 %v2726, 4294901760
  %v3135 = vsub.f32 %v2726, %v3134
  %v3136 = vand.u32 %v3135, 4294901760
  %3137 = vmatpush1.msra.mxu0 %v3136
  %3138 = vmatprep.subr.mxu0 0.0
  %v3139 = vand.u32 %v2727, 4294901760
  %v3140 = vsub.f32 %v2727, %v3139
  %v3141 = vand.u32 %v3140, 4294901760
  %3142 = vmatpush1.msra.mxu0 %v3141
  %3143 = vmatprep.subr.mxu0 0.0
  %3144 = vmatpush1.msra.mxu0 0.0
  %3145 = vmatprep.subr.mxu0 0.0
  %3146 = vmatpush1.msra.mxu0 0.0
  %3147 = vmatprep.subr.mxu0 0.0
  %3148 = vmatpush1.msra.mxu0 0.0
  %3149 = vmatprep.subr.mxu0 0.0
  %3150 = vmatpush1.msra.mxu0 0.0
  %3151 = vmatprep.subr.mxu0 0.0
  %3152 = vmatpush1.msra.mxu0 0.0
  %3153 = vmatprep.subr.mxu0 0.0
  %3154 = vmatpush1.msra.mxu0 0.0
  %3155 = vmatprep.subr.mxu0 0.0
  %3156 = vmatpush1.msra.mxu0 0.0
  %3157 = vmatprep.subr.mxu0 0.0
  %3158 = vmatpush1.msra.mxu0 0.0
  %3159 = vmatprep.subr.mxu0 0.0
  %3160 = vmatpush1.msra.mxu0 0.0
  %3161 = vmatprep.subr.mxu0 0.0
  %3162 = vmatpush1.msra.mxu0 0.0
  %3163 = vmatprep.subr.mxu0 0.0
  %3164 = vmatpush1.msra.mxu0 0.0
  %3165 = vmatprep.subr.mxu0 0.0
  %3166 = vmatpush1.msra.mxu0 0.0
  %3167 = vmatprep.subr.mxu0 0.0
  %3168 = vmatpush1.msra.mxu0 0.0
  %3169 = vmatprep.subr.mxu0 0.0
  %3170 = vmatpush1.msra.mxu0 0.0
  %3171 = vmatprep.subr.mxu0 0.0
  %3172 = vmatpush1.msra.mxu0 0.0
  %3173 = vmatprep.subr.mxu0 0.0
  %3174 = vmatpush1.msra.mxu0 0.0
  %3175 = vmatprep.subr.mxu0 0.0
  %3176 = vmatpush1.msra.mxu0 0.0
  %3177 = vmatprep.subr.mxu0 0.0
  %3178 = vmatpush1.msra.mxu0 0.0
  %3179 = vmatprep.subr.mxu0 0.0
  %3180 = vmatpush1.msra.mxu0 0.0
  %3181 = vmatprep.subr.mxu0 0.0
  %3182 = vmatpush1.msra.mxu0 0.0
  %3183 = vmatprep.subr.mxu0 0.0
  %3184 = vmatpush1.msra.mxu0 0.0
  %3185 = vmatprep.subr.mxu0 0.0
  %3186 = vmatpush1.msra.mxu0 0.0
  %3187 = vmatprep.subr.mxu0 0.0
  %3188 = vmatpush1.msra.mxu0 0.0
  %3189 = vmatprep.subr.mxu0 0.0
  %3190 = vmatpush1.msra.mxu0 0.0
  %3191 = vmatprep.mubr.f32.mxu0 0.0
  %v3192 = vand.u32 %v2738, 4294901760
  %3193 = vmatmul.mubr.f32.gmra.mrb[0].mxu0 %v3192
  %v3194 = vpop.f32.mrb[0].mxu0
  %v3195 = vadd.f32 %v3100, %v3194
  %v3196 = vpop.f32.mrb[0].mxu0
  %3197 = vdwg.mxu0
  %3198 = vmatprep.subr.mxu0 0.0
  %v3199 = vand.u32 %v2720, 4294901760
  %3200 = vmatpush1.msra.mxu0 %v3199
  %3201 = vmatprep.subr.mxu0 0.0
  %v3202 = vand.u32 %v2721, 4294901760
  %3203 = vmatpush1.msra.mxu0 %v3202
  %3204 = vmatprep.subr.mxu0 0.0
  %v3205 = vand.u32 %v2722, 4294901760
  %3206 = vmatpush1.msra.mxu0 %v3205
  %3207 = vmatprep.subr.mxu0 0.0
  %v3208 = vand.u32 %v2723, 4294901760
  %3209 = vmatpush1.msra.mxu0 %v3208
  %3210 = vmatprep.subr.mxu0 0.0
  %v3211 = vand.u32 %v2724, 4294901760
  %3212 = vmatpush1.msra.mxu0 %v3211
  %3213 = vmatprep.subr.mxu0 0.0
  %v3214 = vand.u32 %v2725, 4294901760
  %3215 = vmatpush1.msra.mxu0 %v3214
  %3216 = vmatprep.subr.mxu0 0.0
  %v3217 = vand.u32 %v2726, 4294901760
  %3218 = vmatpush1.msra.mxu0 %v3217
  %3219 = vmatprep.subr.mxu0 0.0
  %v3220 = vand.u32 %v2727, 4294901760
  %3221 = vmatpush1.msra.mxu0 %v3220
  %3222 = vmatprep.subr.mxu0 0.0
  %3223 = vmatpush1.msra.mxu0 0.0
  %3224 = vmatprep.subr.mxu0 0.0
  %3225 = vmatpush1.msra.mxu0 0.0
  %3226 = vmatprep.subr.mxu0 0.0
  %3227 = vmatpush1.msra.mxu0 0.0
  %3228 = vmatprep.subr.mxu0 0.0
  %3229 = vmatpush1.msra.mxu0 0.0
  %3230 = vmatprep.subr.mxu0 0.0
  %3231 = vmatpush1.msra.mxu0 0.0
  %3232 = vmatprep.subr.mxu0 0.0
  %3233 = vmatpush1.msra.mxu0 0.0
  %3234 = vmatprep.subr.mxu0 0.0
  %3235 = vmatpush1.msra.mxu0 0.0
  %3236 = vmatprep.subr.mxu0 0.0
  %3237 = vmatpush1.msra.mxu0 0.0
  %3238 = vmatprep.subr.mxu0 0.0
  %3239 = vmatpush1.msra.mxu0 0.0
  %3240 = vmatprep.subr.mxu0 0.0
  %3241 = vmatpush1.msra.mxu0 0.0
  %3242 = vmatprep.subr.mxu0 0.0
  %3243 = vmatpush1.msra.mxu0 0.0
  %3244 = vmatprep.subr.mxu0 0.0
  %3245 = vmatpush1.msra.mxu0 0.0
  %3246 = vmatprep.subr.mxu0 0.0
  %3247 = vmatpush1.msra.mxu0 0.0
  %3248 = vmatprep.subr.mxu0 0.0
  %3249 = vmatpush1.msra.mxu0 0.0
  %3250 = vmatprep.subr.mxu0 0.0
  %3251 = vmatpush1.msra.mxu0 0.0
  %3252 = vmatprep.subr.mxu0 0.0
  %3253 = vmatpush1.msra.mxu0 0.0
  %3254 = vmatprep.subr.mxu0 0.0
  %3255 = vmatpush1.msra.mxu0 0.0
  %3256 = vmatprep.subr.mxu0 0.0
  %3257 = vmatpush1.msra.mxu0 0.0
  %3258 = vmatprep.subr.mxu0 0.0
  %3259 = vmatpush1.msra.mxu0 0.0
  %3260 = vmatprep.subr.mxu0 0.0
  %3261 = vmatpush1.msra.mxu0 0.0
  %3262 = vmatprep.subr.mxu0 0.0
  %3263 = vmatpush1.msra.mxu0 0.0
  %3264 = vmatprep.subr.mxu0 0.0
  %3265 = vmatpush1.msra.mxu0 0.0
  %3266 = vmatprep.subr.mxu0 0.0
  %3267 = vmatpush1.msra.mxu0 0.0
  %3268 = vmatprep.subr.mxu0 0.0
  %3269 = vmatpush1.msra.mxu0 0.0
  %3270 = vmatprep.mubr.f32.mxu0 0.0
  %v3271 = vand.u32 %v2738, 4294901760
  %3272 = vmatmul.mubr.f32.gmra.mrb[0].mxu0 %v3271
  %v3273 = vpop.f32.mrb[0].mxu0
  %v3274 = vadd.f32 %v3195, %v3273
  %v3275 = vpop.f32.mrb[0].mxu0
  %3276 = vdwg.mxu0
  %3277 = vxpose.xlu0.b32.start [1/16] %v3274, 128
  %3278 = vxpose.xlu0.b32.cont [2/16] 0.0, 128
  %3279 = vxpose.xlu0.b32.cont [3/16] 0.0, 128
  %3280 = vxpose.xlu0.b32.cont [4/16] 0.0, 128
  %3281 = vxpose.xlu0.b32.cont [5/16] 0.0, 128
  %3282 = vxpose.xlu0.b32.cont [6/16] 0.0, 128
  %3283 = vxpose.xlu0.b32.cont [7/16] 0.0, 128
  %3284 = vxpose.xlu0.b32.cont [8/16] 0.0, 128
  %3285 = vxpose.xlu0.b32.cont [9/16] 0.0, 128
  %3286 = vxpose.xlu0.b32.cont [10/16] 0.0, 128
  %3287 = vxpose.xlu0.b32.cont [11/16] 0.0, 128
  %3288 = vxpose.xlu0.b32.cont [12/16] 0.0, 128
  %3289 = vxpose.xlu0.b32.cont [13/16] 0.0, 128
  %3290 = vxpose.xlu0.b32.cont [14/16] 0.0, 128
  %3291 = vxpose.xlu0.b32.cont [15/16] 0.0, 128
  %3292 = vxpose.xlu0.b32.end [16/16] 0.0, 128
  %v3293 = vpop.trf.xlu0
  %v3294 = vpop.trf.xlu0
  %v3295 = vpop.trf.xlu0
  %v3296 = vpop.trf.xlu0
  %v3297 = vpop.trf.xlu0
  %v3298 = vpop.trf.xlu0
  %v3299 = vpop.trf.xlu0
  %v3300 = vpop.trf.xlu0
  %v3301 = vpop.trf.xlu0
  %v3302 = vpop.trf.xlu0
  %v3303 = vpop.trf.xlu0
  %v3304 = vpop.trf.xlu0
  %v3305 = vpop.trf.xlu0
  %v3306 = vpop.trf.xlu0
  %v3307 = vpop.trf.xlu0
  %v3308 = vpop.trf.xlu0
  %3309 = vst.msk [vmem:[%s3] sm:$0xff] %vm72, %v3293
  %3310 = vst.msk [vmem:[%s3 + $0x8] sm:$0xff] %vm72, %v3294
  // Predicated region
  $region14: #{mlp_forward.1} parent=0 // pred_check
    _
  $region15: #{mlp_forward.1} parent=0 // pred_check_branch
    %3312 = sbr.rel (0) target = $region17
  $region16: #{mlp_forward.1} parent=0 // pred_region
    _
  $region17: #{mlp_forward.1} parent=0 // pred_fallthru
    _
  // Predicated region
  $region18: #{mlp_forward.1} parent=0 // pred_check
    _
  $region19: #{mlp_forward.1} parent=0 // pred_check_branch
    %3314 = sbr.rel (0) target = $region21
  $region20: #{mlp_forward.1} parent=0 // pred_region
    _
  $region21: #{mlp_forward.1} parent=0 // pred_fallthru
    _

</llo_original>
